<compile_context>
chip_gen: v6e
topology: v6e:2x2x1
jax: 0.10.0
libtpu: 0.0.40
codegen_flags: <defaults>
</compile_context>

<pallas_src>
import jax
import jax.numpy as jnp
from jax import lax
from jax.experimental import pallas as pl
from jax.experimental.pallas import tpu as pltpu

C = 256            # in/out channels (hard-coded in the module)
K = 9              # kernel size
P = (K - 1) // 2   # conv padding (4)
PH = P // 2        # per-phase halo for the deinterleaved stride-2 path (2)
NEG_SLOPE = 0.01   # F.leaky_relu default
BN_EPS = 1e-5      # nn.BatchNorm1d default eps


def _leaky_relu(x):
    return jnp.where(x >= 0, x, NEG_SLOPE * x)


def _make_kernel(downsample: bool, L: int, L_out: int):
    f32 = jnp.float32
    bf16 = jnp.bfloat16

    if downsample:
        L2 = L // 2            # == L_out

        def kernel(x_ref, w1_ref, b1_ref, w2_ref, b2_ref, wid_ref, o_ref,
                   xpe, xpo, xp2):
            # Zero only the halo rows (12 rows total).  Unconditional because
            # with "parallel" grid semantics program_id(0)==0 may not execute
            # on every core; the interior is fully overwritten each step.
            zh2 = jnp.zeros((PH, C), bf16)
            zh4 = jnp.zeros((P, C), bf16)
            xpe[pl.ds(0, PH), :] = zh2
            xpe[pl.ds(PH + L2, PH), :] = zh2
            xpo[pl.ds(0, PH), :] = zh2
            xpo[pl.ds(PH + L2, PH), :] = zh2
            xp2[pl.ds(0, P), :] = zh4
            xp2[pl.ds(P + L_out, P), :] = zh4

            # x_ref row j = [x[2j] | x[2j+1]]  (deinterleaved by the wrapper)
            xv = x_ref[0]                       # (L2, 2C) bf16
            xe = xv[:, :C]                      # even-phase samples
            xo = xv[:, C:]                      # odd-phase samples
            xpe[pl.ds(PH, L2), :] = xe
            xpo[pl.ds(PH, L2), :] = xo

            # ---- conv1 (kernel 9, pad 4, stride 2) as 9 MXU matmuls -------
            # padded_x[2t + k] == (even phase)[t + k//2] if k even
            #                     (odd  phase)[t + k//2] if k odd
            acc = jnp.dot(xpe[pl.ds(0, L_out), :], w1_ref[0],
                          preferred_element_type=f32)
            for k in range(1, K):
                src = xpe if (k % 2 == 0) else xpo
                acc = acc + jnp.dot(src[pl.ds(k // 2, L_out), :], w1_ref[k],
                                    preferred_element_type=f32)
            h = _leaky_relu(acc + b1_ref[...])   # BN1 scale folded into w1

            # ---- conv2 (kernel 9, pad 4, stride 1) ------------------------
            xp2[pl.ds(P, L_out), :] = h.astype(bf16)
            acc2 = jnp.dot(xp2[pl.ds(0, L_out), :], w2_ref[0],
                           preferred_element_type=f32)
            for k in range(1, K):
                acc2 = acc2 + jnp.dot(xp2[pl.ds(k, L_out), :], w2_ref[k],
                                      preferred_element_type=f32)
            h2 = _leaky_relu(acc2 + b2_ref[...])

            # ---- identity: AvgPool1d(2,2) + 1x1 conv (no bias) ------------
            avg = ((xe.astype(f32) + xo.astype(f32)) * 0.5).astype(bf16)
            ident = jnp.dot(avg, wid_ref[...], preferred_element_type=f32)

            o_ref[0] = (h2 + ident).astype(o_ref.dtype)

        return kernel

    def kernel(x_ref, w1_ref, b1_ref, w2_ref, b2_ref, o_ref, xp1, xp2):
        zh = jnp.zeros((P, C), bf16)
        xp1[pl.ds(0, P), :] = zh
        xp1[pl.ds(P + L, P), :] = zh
        xp2[pl.ds(0, P), :] = zh
        xp2[pl.ds(P + L_out, P), :] = zh

        xv = x_ref[0]                           # (L, C) bf16
        xp1[pl.ds(P, L), :] = xv

        # ---- conv1 (kernel 9, pad 4, stride 1) ----------------------------
        acc = jnp.dot(xp1[pl.ds(0, L_out), :], w1_ref[0],
                      preferred_element_type=f32)
        for k in range(1, K):
            acc = acc + jnp.dot(xp1[pl.ds(k, L_out), :], w1_ref[k],
                                preferred_element_type=f32)
        h = _leaky_relu(acc + b1_ref[...])

        # ---- conv2 --------------------------------------------------------
        xp2[pl.ds(P, L_out), :] = h.astype(bf16)
        acc2 = jnp.dot(xp2[pl.ds(0, L_out), :], w2_ref[0],
                       preferred_element_type=f32)
        for k in range(1, K):
            acc2 = acc2 + jnp.dot(xp2[pl.ds(k, L_out), :], w2_ref[k],
                                  preferred_element_type=f32)
        h2 = _leaky_relu(acc2 + b2_ref[...])

        o_ref[0] = (h2 + xv.astype(f32)).astype(o_ref.dtype)

    return kernel


def simple_residual_block(x_ncl, params, downsample: bool):
    """Pallas implementation of SimpleResidualBlock.forward (eval-mode BN).

    Input/output layout: NCL, like the PyTorch module.
    """
    B, Cin, L = x_ncl.shape
    assert Cin == C
    stride = 2 if downsample else 1
    L_out = (L + 2 * P - K) // stride + 1
    if downsample:
        assert L % 2 == 0 and L_out == L // 2

    # NCL -> NLC so channels sit on the lane axis.
    x_nlc = jnp.transpose(x_ncl, (0, 2, 1))
    x_bf = x_nlc.astype(jnp.bfloat16)

    # PyTorch conv weights (Cout, Cin, K) -> per-tap (K, Cin, Cout), with the
    # eval-mode BN scale folded into the output-channel columns; bias kept.
    def _fold(w, g, b, m, v):
        s = g / jnp.sqrt(v + BN_EPS)                              # (Cout,)
        w_t = jnp.transpose(w, (2, 1, 0)) * s[None, None, :]      # (K, Cin, Cout)
        bias = (b - m * s).reshape(1, C).astype(jnp.float32)
        return w_t.astype(jnp.bfloat16), bias

    w1_t, bias1 = _fold(params["w1"], params["g1"], params["b1"],
                        params["m1"], params["v1"])
    w2_t, bias2 = _fold(params["w2"], params["g2"], params["b2"],
                        params["m2"], params["v2"])

    if downsample:
        L2 = L // 2
        # Deinterleave even/odd samples along the lane axis (free reshape):
        # row j of (L2, 2C) = [x[2j] | x[2j+1]].
        x_in = x_bf.reshape(B, L2, 2 * C)
        x_spec = pl.BlockSpec((1, L2, 2 * C), lambda b: (b, 0, 0))
    else:
        x_in = x_bf
        x_spec = pl.BlockSpec((1, L, C), lambda b: (b, 0, 0))

    inputs = [x_in, w1_t, bias1, w2_t, bias2]
    in_specs = [
        x_spec,
        pl.BlockSpec((K, C, C), lambda b: (0, 0, 0)),
        pl.BlockSpec((1, C), lambda b: (0, 0)),
        pl.BlockSpec((K, C, C), lambda b: (0, 0, 0)),
        pl.BlockSpec((1, C), lambda b: (0, 0)),
    ]
    if downsample:
        wid_t = jnp.transpose(params["wid"][:, :, 0], (1, 0)).astype(jnp.bfloat16)
        inputs.append(wid_t)
        in_specs.append(pl.BlockSpec((C, C), lambda b: (0, 0)))
        scratch = [
            pltpu.VMEM((L // 2 + 2 * PH, C), jnp.bfloat16),   # even-phase, padded
            pltpu.VMEM((L // 2 + 2 * PH, C), jnp.bfloat16),   # odd-phase, padded
            pltpu.VMEM((L_out + 2 * P, C), jnp.bfloat16),     # conv2 input, padded
        ]
    else:
        scratch = [
            pltpu.VMEM((L + 2 * P, C), jnp.bfloat16),         # conv1 input, padded
            pltpu.VMEM((L_out + 2 * P, C), jnp.bfloat16),     # conv2 input, padded
        ]

    out = pl.pallas_call(
        _make_kernel(downsample, L, L_out),
        out_shape=jax.ShapeDtypeStruct((B, L_out, C), jnp.float32),
        grid_spec=pltpu.PrefetchScalarGridSpec(
            num_scalar_prefetch=0,
            grid=(B,),
            in_specs=in_specs,
            out_specs=pl.BlockSpec((1, L_out, C), lambda b: (b, 0, 0)),
            scratch_shapes=scratch,
        ),
        compiler_params=pltpu.CompilerParams(
            dimension_semantics=("parallel",),       # batch items independent
            vmem_limit_bytes=64 * 1024 * 1024,
        ),
    )(*inputs)

    return jnp.transpose(out, (0, 2, 1))             # back to NCL


# ---------------- pure-JAX reference (for correctness check) ----------------
def _ref_block(x_ncl, params, downsample):
    stride = 2 if downsample else 1

    def conv1d(x, w, s):
        dn = lax.conv_dimension_numbers(x.shape, w.shape, ("NCH", "OIH", "NCH"))
        return lax.conv_general_dilated(x, w, (s,), [(P, P)],
                                        dimension_numbers=dn,
                                        precision=lax.Precision.HIGHEST)

    def bn(x, g, b, m, v):
        sc = g / jnp.sqrt(v + BN_EPS)
        return x * sc[None, :, None] + (b - m * sc)[None, :, None]

    def lrelu(x):
        return jnp.where(x >= 0, x, NEG_SLOPE * x)

    h = lrelu(bn(conv1d(x_ncl, params["w1"], stride),
                 params["g1"], params["b1"], params["m1"], params["v1"]))
    h = lrelu(bn(conv1d(h, params["w2"], 1),
                 params["g2"], params["b2"], params["m2"], params["v2"]))
    ident = x_ncl
    if downsample:
        B, Cc, L = x_ncl.shape
        ident = x_ncl.reshape(B, Cc, L // 2, 2).mean(-1)
        ident = jnp.einsum("oc,bcl->bol", params["wid"][:, :, 0], ident,
                           precision=lax.Precision.HIGHEST)
    return h + ident


if __name__ == "__main__":
    key = jax.random.PRNGKey(0)
    ks = jax.random.split(key, 14)

    B, L = 2, 64
    x = jax.random.normal(ks[0], (B, C, L), jnp.float32)

    params = {
        "w1": 0.02 * jax.random.normal(ks[1], (C, C, K), jnp.float32),
        "g1": 1.0 + 0.1 * jax.random.normal(ks[2], (C,), jnp.float32),
        "b1": 0.1 * jax.random.normal(ks[3], (C,), jnp.float32),
        "m1": 0.1 * jax.random.normal(ks[4], (C,), jnp.float32),
        "v1": jax.random.uniform(ks[5], (C,), jnp.float32, 0.5, 1.5),
        "w2": 0.02 * jax.random.normal(ks[6], (C, C, K), jnp.float32),
        "g2": 1.0 + 0.1 * jax.random.normal(ks[7], (C,), jnp.float32),
        "b2": 0.1 * jax.random.normal(ks[8], (C,), jnp.float32),
        "m2": 0.1 * jax.random.normal(ks[9], (C,), jnp.float32),
        "v2": jax.random.uniform(ks[10], (C,), jnp.float32, 0.5, 1.5),
        "wid": 0.05 * jax.random.normal(ks[11], (C, C, 1), jnp.float32),
    }

    for downsample in (True, False):
        out = jax.block_until_ready(simple_residual_block(x, params, downsample))
        ref = _ref_block(x, params, downsample)
        assert out.shape == ref.shape, (out.shape, ref.shape)
        err = float(jnp.max(jnp.abs(out - ref)))
        scale = float(jnp.max(jnp.abs(ref)))
        # bf16 MXU operands vs. an f32 HIGHEST reference -> loosened tolerance.
        tol = 2.5e-2 * max(scale, 1.0) + 2.5e-2
        if not err <= tol:
            raise SystemExit(
                f"mismatch (downsample={downsample}): max abs err {err} "
                f"(ref max {scale}, tol {tol})")

    print("KERNEL_OK")
</pallas_src>

<mosaic_0001>
module attributes {stable_mosaic.version = 11 : i64} {
  func.func @kernel(%arg0: i32, %arg1: memref<1x32x512xbf16, #tpu.memory_space<vmem>>, %arg2: memref<9x256x256xbf16, #tpu.memory_space<vmem>>, %arg3: memref<1x256xf32, #tpu.memory_space<vmem>>, %arg4: memref<9x256x256xbf16, #tpu.memory_space<vmem>>, %arg5: memref<1x256xf32, #tpu.memory_space<vmem>>, %arg6: memref<256x256xbf16, #tpu.memory_space<vmem>>, %arg7: memref<1x32x256xf32, #tpu.memory_space<vmem>>, %arg8: memref<36x256xbf16, #tpu.memory_space<vmem>>, %arg9: memref<36x256xbf16, #tpu.memory_space<vmem>>, %arg10: memref<40x256xbf16, #tpu.memory_space<vmem>>) attributes {dimension_semantics = [#tpu.dimension_semantics<parallel>], iteration_bounds = array<i64: 2>, scalar_prefetch = 0 : i64, scratch_operands = 3 : i64, tpu.core_type = #tpu.core_type<tc>, window_params = [{transform_indices = @transform_0, window_bounds = array<i64: 1, 32, 512>}, {pipeline_mode = #tpu.pipeline_mode<synchronous>, transform_indices = @transform_1, window_bounds = array<i64: 9, 256, 256>}, {pipeline_mode = #tpu.pipeline_mode<synchronous>, transform_indices = @transform_2, window_bounds = array<i64: 1, 256>}, {pipeline_mode = #tpu.pipeline_mode<synchronous>, transform_indices = @transform_3, window_bounds = array<i64: 9, 256, 256>}, {pipeline_mode = #tpu.pipeline_mode<synchronous>, transform_indices = @transform_4, window_bounds = array<i64: 1, 256>}, {pipeline_mode = #tpu.pipeline_mode<synchronous>, transform_indices = @transform_5, window_bounds = array<i64: 256, 256>}, {transform_indices = @transform_6, window_bounds = array<i64: 1, 32, 256>}]} {
    %cst = arith.constant 0.000000e+00 : bf16
    %0 = vector.broadcast %cst : bf16 to vector<2x256xbf16>
    %cst_0 = arith.constant 0.000000e+00 : bf16
    %1 = vector.broadcast %cst_0 : bf16 to vector<4x256xbf16>
    %c0 = arith.constant 0 : index
    %c0_1 = arith.constant 0 : index
    %2 = vector.load %arg8[%c0, %c0_1] : memref<36x256xbf16, #tpu.memory_space<vmem>>, vector<2x256xbf16>
    tpu.vector_store %arg8[%c0, %c0_1], %0 {strides = array<i32>} : memref<36x256xbf16, #tpu.memory_space<vmem>>, vector<2x256xbf16>,
    %c34 = arith.constant 34 : index
    %c0_2 = arith.constant 0 : index
    %3 = vector.load %arg8[%c34, %c0_2] : memref<36x256xbf16, #tpu.memory_space<vmem>>, vector<2x256xbf16>
    tpu.vector_store %arg8[%c34, %c0_2], %0 {strides = array<i32>} : memref<36x256xbf16, #tpu.memory_space<vmem>>, vector<2x256xbf16>,
    %c0_3 = arith.constant 0 : index
    %c0_4 = arith.constant 0 : index
    %4 = vector.load %arg9[%c0_3, %c0_4] : memref<36x256xbf16, #tpu.memory_space<vmem>>, vector<2x256xbf16>
    tpu.vector_store %arg9[%c0_3, %c0_4], %0 {strides = array<i32>} : memref<36x256xbf16, #tpu.memory_space<vmem>>, vector<2x256xbf16>,
    %c34_5 = arith.constant 34 : index
    %c0_6 = arith.constant 0 : index
    %5 = vector.load %arg9[%c34_5, %c0_6] : memref<36x256xbf16, #tpu.memory_space<vmem>>, vector<2x256xbf16>
    tpu.vector_store %arg9[%c34_5, %c0_6], %0 {strides = array<i32>} : memref<36x256xbf16, #tpu.memory_space<vmem>>, vector<2x256xbf16>,
    %c0_7 = arith.constant 0 : index
    %c0_8 = arith.constant 0 : index
    %6 = vector.load %arg10[%c0_7, %c0_8] : memref<40x256xbf16, #tpu.memory_space<vmem>>, vector<4x256xbf16>
    tpu.vector_store %arg10[%c0_7, %c0_8], %1 {strides = array<i32>} : memref<40x256xbf16, #tpu.memory_space<vmem>>, vector<4x256xbf16>,
    %c36 = arith.constant 36 : index
    %c0_9 = arith.constant 0 : index
    %7 = vector.load %arg10[%c36, %c0_9] : memref<40x256xbf16, #tpu.memory_space<vmem>>, vector<4x256xbf16>
    tpu.vector_store %arg10[%c36, %c0_9], %1 {strides = array<i32>} : memref<40x256xbf16, #tpu.memory_space<vmem>>, vector<4x256xbf16>,
    %c0_10 = arith.constant 0 : index
    %c0_11 = arith.constant 0 : index
    %c0_12 = arith.constant 0 : index
    %8 = vector.load %arg1[%c0_10, %c0_11, %c0_12] : memref<1x32x512xbf16, #tpu.memory_space<vmem>>, vector<1x32x512xbf16>
    %9 = vector.shape_cast %8 : vector<1x32x512xbf16> to vector<32x512xbf16>
    %10 = vector.extract_strided_slice %9 {offsets = [0, 0], sizes = [32, 256], strides = [1, 1]} : vector<32x512xbf16> to vector<32x256xbf16>
    %11 = vector.extract_strided_slice %9 {offsets = [0, 256], sizes = [32, 256], strides = [1, 1]} : vector<32x512xbf16> to vector<32x256xbf16>
    %c2 = arith.constant 2 : index
    %c0_13 = arith.constant 0 : index
    %12 = vector.load %arg8[%c2, %c0_13] : memref<36x256xbf16, #tpu.memory_space<vmem>>, vector<32x256xbf16>
    tpu.vector_store %arg8[%c2, %c0_13], %10 {strides = array<i32>} : memref<36x256xbf16, #tpu.memory_space<vmem>>, vector<32x256xbf16>,
    %c2_14 = arith.constant 2 : index
    %c0_15 = arith.constant 0 : index
    %13 = vector.load %arg9[%c2_14, %c0_15] : memref<36x256xbf16, #tpu.memory_space<vmem>>, vector<32x256xbf16>
    tpu.vector_store %arg9[%c2_14, %c0_15], %11 {strides = array<i32>} : memref<36x256xbf16, #tpu.memory_space<vmem>>, vector<32x256xbf16>,
    %c0_16 = arith.constant 0 : index
    %c0_17 = arith.constant 0 : index
    %14 = vector.load %arg8[%c0_16, %c0_17] : memref<36x256xbf16, #tpu.memory_space<vmem>>, vector<32x256xbf16>
    %c0_18 = arith.constant 0 : index
    %c0_19 = arith.constant 0 : index
    %c0_20 = arith.constant 0 : index
    %15 = vector.load %arg2[%c0_18, %c0_19, %c0_20] : memref<9x256x256xbf16, #tpu.memory_space<vmem>>, vector<1x256x256xbf16>
    %16 = vector.shape_cast %15 : vector<1x256x256xbf16> to vector<256x256xbf16>
    %cst_21 = arith.constant dense<0.000000e+00> : vector<32x256xf32>
    %17 = tpu.matmul %14, %16, %cst_21 {dimension_numbers = #tpu.dot_dimension_numbers<[1], [0], [0], [1], [0, 0, 1, 1], [], []>} : vector<32x256xbf16>, vector<256x256xbf16>, vector<32x256xf32> -> vector<32x256xf32>
    %c0_22 = arith.constant 0 : index
    %c0_23 = arith.constant 0 : index
    %18 = vector.load %arg9[%c0_22, %c0_23] : memref<36x256xbf16, #tpu.memory_space<vmem>>, vector<32x256xbf16>
    %c1 = arith.constant 1 : index
    %c0_24 = arith.constant 0 : index
    %c0_25 = arith.constant 0 : index
    %19 = vector.load %arg2[%c1, %c0_24, %c0_25] : memref<9x256x256xbf16, #tpu.memory_space<vmem>>, vector<1x256x256xbf16>
    %20 = vector.shape_cast %19 : vector<1x256x256xbf16> to vector<256x256xbf16>
    %cst_26 = arith.constant dense<0.000000e+00> : vector<32x256xf32>
    %21 = tpu.matmul %18, %20, %cst_26 {dimension_numbers = #tpu.dot_dimension_numbers<[1], [0], [0], [1], [0, 0, 1, 1], [], []>} : vector<32x256xbf16>, vector<256x256xbf16>, vector<32x256xf32> -> vector<32x256xf32>
    %22 = arith.addf %17, %21 : vector<32x256xf32>
    %c1_27 = arith.constant 1 : index
    %c0_28 = arith.constant 0 : index
    %23 = vector.load %arg8[%c1_27, %c0_28] : memref<36x256xbf16, #tpu.memory_space<vmem>>, vector<32x256xbf16>
    %c2_29 = arith.constant 2 : index
    %c0_30 = arith.constant 0 : index
    %c0_31 = arith.constant 0 : index
    %24 = vector.load %arg2[%c2_29, %c0_30, %c0_31] : memref<9x256x256xbf16, #tpu.memory_space<vmem>>, vector<1x256x256xbf16>
    %25 = vector.shape_cast %24 : vector<1x256x256xbf16> to vector<256x256xbf16>
    %cst_32 = arith.constant dense<0.000000e+00> : vector<32x256xf32>
    %26 = tpu.matmul %23, %25, %cst_32 {dimension_numbers = #tpu.dot_dimension_numbers<[1], [0], [0], [1], [0, 0, 1, 1], [], []>} : vector<32x256xbf16>, vector<256x256xbf16>, vector<32x256xf32> -> vector<32x256xf32>
    %27 = arith.addf %22, %26 : vector<32x256xf32>
    %c1_33 = arith.constant 1 : index
    %c0_34 = arith.constant 0 : index
    %28 = vector.load %arg9[%c1_33, %c0_34] : memref<36x256xbf16, #tpu.memory_space<vmem>>, vector<32x256xbf16>
    %c3 = arith.constant 3 : index
    %c0_35 = arith.constant 0 : index
    %c0_36 = arith.constant 0 : index
    %29 = vector.load %arg2[%c3, %c0_35, %c0_36] : memref<9x256x256xbf16, #tpu.memory_space<vmem>>, vector<1x256x256xbf16>
    %30 = vector.shape_cast %29 : vector<1x256x256xbf16> to vector<256x256xbf16>
    %cst_37 = arith.constant dense<0.000000e+00> : vector<32x256xf32>
    %31 = tpu.matmul %28, %30, %cst_37 {dimension_numbers = #tpu.dot_dimension_numbers<[1], [0], [0], [1], [0, 0, 1, 1], [], []>} : vector<32x256xbf16>, vector<256x256xbf16>, vector<32x256xf32> -> vector<32x256xf32>
    %32 = arith.addf %27, %31 : vector<32x256xf32>
    %c2_38 = arith.constant 2 : index
    %c0_39 = arith.constant 0 : index
    %33 = vector.load %arg8[%c2_38, %c0_39] : memref<36x256xbf16, #tpu.memory_space<vmem>>, vector<32x256xbf16>
    %c4 = arith.constant 4 : index
    %c0_40 = arith.constant 0 : index
    %c0_41 = arith.constant 0 : index
    %34 = vector.load %arg2[%c4, %c0_40, %c0_41] : memref<9x256x256xbf16, #tpu.memory_space<vmem>>, vector<1x256x256xbf16>
    %35 = vector.shape_cast %34 : vector<1x256x256xbf16> to vector<256x256xbf16>
    %cst_42 = arith.constant dense<0.000000e+00> : vector<32x256xf32>
    %36 = tpu.matmul %33, %35, %cst_42 {dimension_numbers = #tpu.dot_dimension_numbers<[1], [0], [0], [1], [0, 0, 1, 1], [], []>} : vector<32x256xbf16>, vector<256x256xbf16>, vector<32x256xf32> -> vector<32x256xf32>
    %37 = arith.addf %32, %36 : vector<32x256xf32>
    %c2_43 = arith.constant 2 : index
    %c0_44 = arith.constant 0 : index
    %38 = vector.load %arg9[%c2_43, %c0_44] : memref<36x256xbf16, #tpu.memory_space<vmem>>, vector<32x256xbf16>
    %c5 = arith.constant 5 : index
    %c0_45 = arith.constant 0 : index
    %c0_46 = arith.constant 0 : index
    %39 = vector.load %arg2[%c5, %c0_45, %c0_46] : memref<9x256x256xbf16, #tpu.memory_space<vmem>>, vector<1x256x256xbf16>
    %40 = vector.shape_cast %39 : vector<1x256x256xbf16> to vector<256x256xbf16>
    %cst_47 = arith.constant dense<0.000000e+00> : vector<32x256xf32>
    %41 = tpu.matmul %38, %40, %cst_47 {dimension_numbers = #tpu.dot_dimension_numbers<[1], [0], [0], [1], [0, 0, 1, 1], [], []>} : vector<32x256xbf16>, vector<256x256xbf16>, vector<32x256xf32> -> vector<32x256xf32>
    %42 = arith.addf %37, %41 : vector<32x256xf32>
    %c3_48 = arith.constant 3 : index
    %c0_49 = arith.constant 0 : index
    %43 = vector.load %arg8[%c3_48, %c0_49] : memref<36x256xbf16, #tpu.memory_space<vmem>>, vector<32x256xbf16>
    %c6 = arith.constant 6 : index
    %c0_50 = arith.constant 0 : index
    %c0_51 = arith.constant 0 : index
    %44 = vector.load %arg2[%c6, %c0_50, %c0_51] : memref<9x256x256xbf16, #tpu.memory_space<vmem>>, vector<1x256x256xbf16>
    %45 = vector.shape_cast %44 : vector<1x256x256xbf16> to vector<256x256xbf16>
    %cst_52 = arith.constant dense<0.000000e+00> : vector<32x256xf32>
    %46 = tpu.matmul %43, %45, %cst_52 {dimension_numbers = #tpu.dot_dimension_numbers<[1], [0], [0], [1], [0, 0, 1, 1], [], []>} : vector<32x256xbf16>, vector<256x256xbf16>, vector<32x256xf32> -> vector<32x256xf32>
    %47 = arith.addf %42, %46 : vector<32x256xf32>
    %c3_53 = arith.constant 3 : index
    %c0_54 = arith.constant 0 : index
    %48 = vector.load %arg9[%c3_53, %c0_54] : memref<36x256xbf16, #tpu.memory_space<vmem>>, vector<32x256xbf16>
    %c7 = arith.constant 7 : index
    %c0_55 = arith.constant 0 : index
    %c0_56 = arith.constant 0 : index
    %49 = vector.load %arg2[%c7, %c0_55, %c0_56] : memref<9x256x256xbf16, #tpu.memory_space<vmem>>, vector<1x256x256xbf16>
    %50 = vector.shape_cast %49 : vector<1x256x256xbf16> to vector<256x256xbf16>
    %cst_57 = arith.constant dense<0.000000e+00> : vector<32x256xf32>
    %51 = tpu.matmul %48, %50, %cst_57 {dimension_numbers = #tpu.dot_dimension_numbers<[1], [0], [0], [1], [0, 0, 1, 1], [], []>} : vector<32x256xbf16>, vector<256x256xbf16>, vector<32x256xf32> -> vector<32x256xf32>
    %52 = arith.addf %47, %51 : vector<32x256xf32>
    %c4_58 = arith.constant 4 : index
    %c0_59 = arith.constant 0 : index
    %53 = vector.load %arg8[%c4_58, %c0_59] : memref<36x256xbf16, #tpu.memory_space<vmem>>, vector<32x256xbf16>
    %c8 = arith.constant 8 : index
    %c0_60 = arith.constant 0 : index
    %c0_61 = arith.constant 0 : index
    %54 = vector.load %arg2[%c8, %c0_60, %c0_61] : memref<9x256x256xbf16, #tpu.memory_space<vmem>>, vector<1x256x256xbf16>
    %55 = vector.shape_cast %54 : vector<1x256x256xbf16> to vector<256x256xbf16>
    %cst_62 = arith.constant dense<0.000000e+00> : vector<32x256xf32>
    %56 = tpu.matmul %53, %55, %cst_62 {dimension_numbers = #tpu.dot_dimension_numbers<[1], [0], [0], [1], [0, 0, 1, 1], [], []>} : vector<32x256xbf16>, vector<256x256xbf16>, vector<32x256xf32> -> vector<32x256xf32>
    %57 = arith.addf %52, %56 : vector<32x256xf32>
    %c0_63 = arith.constant 0 : index
    %c0_64 = arith.constant 0 : index
    %58 = vector.load %arg3[%c0_63, %c0_64] : memref<1x256xf32, #tpu.memory_space<vmem>>, vector<1x256xf32>
    %59 = vector.broadcast %58 : vector<1x256xf32> to vector<32x256xf32>
    %60 = arith.addf %57, %59 : vector<32x256xf32>
    %cst_65 = arith.constant 0.000000e+00 : f32
    %61 = vector.broadcast %cst_65 : f32 to vector<32x256xf32>
    %62 = arith.cmpf oge, %60, %61 : vector<32x256xf32>
    %cst_66 = arith.constant 0.00999999977 : f32
    %63 = vector.broadcast %cst_66 : f32 to vector<32x256xf32>
    %64 = arith.mulf %63, %60 : vector<32x256xf32>
    %65 = arith.select %62, %60, %64 : vector<32x256xi1>, vector<32x256xf32>
    %66 = arith.truncf %65 : vector<32x256xf32> to vector<32x256xbf16>
    %c4_67 = arith.constant 4 : index
    %c0_68 = arith.constant 0 : index
    %67 = vector.load %arg10[%c4_67, %c0_68] : memref<40x256xbf16, #tpu.memory_space<vmem>>, vector<32x256xbf16>
    tpu.vector_store %arg10[%c4_67, %c0_68], %66 {strides = array<i32>} : memref<40x256xbf16, #tpu.memory_space<vmem>>, vector<32x256xbf16>,
    %c0_69 = arith.constant 0 : index
    %c0_70 = arith.constant 0 : index
    %68 = vector.load %arg10[%c0_69, %c0_70] : memref<40x256xbf16, #tpu.memory_space<vmem>>, vector<32x256xbf16>
    %c0_71 = arith.constant 0 : index
    %c0_72 = arith.constant 0 : index
    %c0_73 = arith.constant 0 : index
    %69 = vector.load %arg4[%c0_71, %c0_72, %c0_73] : memref<9x256x256xbf16, #tpu.memory_space<vmem>>, vector<1x256x256xbf16>
    %70 = vector.shape_cast %69 : vector<1x256x256xbf16> to vector<256x256xbf16>
    %cst_74 = arith.constant dense<0.000000e+00> : vector<32x256xf32>
    %71 = tpu.matmul %68, %70, %cst_74 {dimension_numbers = #tpu.dot_dimension_numbers<[1], [0], [0], [1], [0, 0, 1, 1], [], []>} : vector<32x256xbf16>, vector<256x256xbf16>, vector<32x256xf32> -> vector<32x256xf32>
    %c1_75 = arith.constant 1 : index
    %c0_76 = arith.constant 0 : index
    %72 = vector.load %arg10[%c1_75, %c0_76] : memref<40x256xbf16, #tpu.memory_space<vmem>>, vector<32x256xbf16>
    %c1_77 = arith.constant 1 : index
    %c0_78 = arith.constant 0 : index
    %c0_79 = arith.constant 0 : index
    %73 = vector.load %arg4[%c1_77, %c0_78, %c0_79] : memref<9x256x256xbf16, #tpu.memory_space<vmem>>, vector<1x256x256xbf16>
    %74 = vector.shape_cast %73 : vector<1x256x256xbf16> to vector<256x256xbf16>
    %cst_80 = arith.constant dense<0.000000e+00> : vector<32x256xf32>
    %75 = tpu.matmul %72, %74, %cst_80 {dimension_numbers = #tpu.dot_dimension_numbers<[1], [0], [0], [1], [0, 0, 1, 1], [], []>} : vector<32x256xbf16>, vector<256x256xbf16>, vector<32x256xf32> -> vector<32x256xf32>
    %76 = arith.addf %71, %75 : vector<32x256xf32>
    %c2_81 = arith.constant 2 : index
    %c0_82 = arith.constant 0 : index
    %77 = vector.load %arg10[%c2_81, %c0_82] : memref<40x256xbf16, #tpu.memory_space<vmem>>, vector<32x256xbf16>
    %c2_83 = arith.constant 2 : index
    %c0_84 = arith.constant 0 : index
    %c0_85 = arith.constant 0 : index
    %78 = vector.load %arg4[%c2_83, %c0_84, %c0_85] : memref<9x256x256xbf16, #tpu.memory_space<vmem>>, vector<1x256x256xbf16>
    %79 = vector.shape_cast %78 : vector<1x256x256xbf16> to vector<256x256xbf16>
    %cst_86 = arith.constant dense<0.000000e+00> : vector<32x256xf32>
    %80 = tpu.matmul %77, %79, %cst_86 {dimension_numbers = #tpu.dot_dimension_numbers<[1], [0], [0], [1], [0, 0, 1, 1], [], []>} : vector<32x256xbf16>, vector<256x256xbf16>, vector<32x256xf32> -> vector<32x256xf32>
    %81 = arith.addf %76, %80 : vector<32x256xf32>
    %c3_87 = arith.constant 3 : index
    %c0_88 = arith.constant 0 : index
    %82 = vector.load %arg10[%c3_87, %c0_88] : memref<40x256xbf16, #tpu.memory_space<vmem>>, vector<32x256xbf16>
    %c3_89 = arith.constant 3 : index
    %c0_90 = arith.constant 0 : index
    %c0_91 = arith.constant 0 : index
    %83 = vector.load %arg4[%c3_89, %c0_90, %c0_91] : memref<9x256x256xbf16, #tpu.memory_space<vmem>>, vector<1x256x256xbf16>
    %84 = vector.shape_cast %83 : vector<1x256x256xbf16> to vector<256x256xbf16>
    %cst_92 = arith.constant dense<0.000000e+00> : vector<32x256xf32>
    %85 = tpu.matmul %82, %84, %cst_92 {dimension_numbers = #tpu.dot_dimension_numbers<[1], [0], [0], [1], [0, 0, 1, 1], [], []>} : vector<32x256xbf16>, vector<256x256xbf16>, vector<32x256xf32> -> vector<32x256xf32>
    %86 = arith.addf %81, %85 : vector<32x256xf32>
    %c4_93 = arith.constant 4 : index
    %c0_94 = arith.constant 0 : index
    %87 = vector.load %arg10[%c4_93, %c0_94] : memref<40x256xbf16, #tpu.memory_space<vmem>>, vector<32x256xbf16>
    %c4_95 = arith.constant 4 : index
    %c0_96 = arith.constant 0 : index
    %c0_97 = arith.constant 0 : index
    %88 = vector.load %arg4[%c4_95, %c0_96, %c0_97] : memref<9x256x256xbf16, #tpu.memory_space<vmem>>, vector<1x256x256xbf16>
    %89 = vector.shape_cast %88 : vector<1x256x256xbf16> to vector<256x256xbf16>
    %cst_98 = arith.constant dense<0.000000e+00> : vector<32x256xf32>
    %90 = tpu.matmul %87, %89, %cst_98 {dimension_numbers = #tpu.dot_dimension_numbers<[1], [0], [0], [1], [0, 0, 1, 1], [], []>} : vector<32x256xbf16>, vector<256x256xbf16>, vector<32x256xf32> -> vector<32x256xf32>
    %91 = arith.addf %86, %90 : vector<32x256xf32>
    %c5_99 = arith.constant 5 : index
    %c0_100 = arith.constant 0 : index
    %92 = vector.load %arg10[%c5_99, %c0_100] : memref<40x256xbf16, #tpu.memory_space<vmem>>, vector<32x256xbf16>
    %c5_101 = arith.constant 5 : index
    %c0_102 = arith.constant 0 : index
    %c0_103 = arith.constant 0 : index
    %93 = vector.load %arg4[%c5_101, %c0_102, %c0_103] : memref<9x256x256xbf16, #tpu.memory_space<vmem>>, vector<1x256x256xbf16>
    %94 = vector.shape_cast %93 : vector<1x256x256xbf16> to vector<256x256xbf16>
    %cst_104 = arith.constant dense<0.000000e+00> : vector<32x256xf32>
    %95 = tpu.matmul %92, %94, %cst_104 {dimension_numbers = #tpu.dot_dimension_numbers<[1], [0], [0], [1], [0, 0, 1, 1], [], []>} : vector<32x256xbf16>, vector<256x256xbf16>, vector<32x256xf32> -> vector<32x256xf32>
    %96 = arith.addf %91, %95 : vector<32x256xf32>
    %c6_105 = arith.constant 6 : index
    %c0_106 = arith.constant 0 : index
    %97 = vector.load %arg10[%c6_105, %c0_106] : memref<40x256xbf16, #tpu.memory_space<vmem>>, vector<32x256xbf16>
    %c6_107 = arith.constant 6 : index
    %c0_108 = arith.constant 0 : index
    %c0_109 = arith.constant 0 : index
    %98 = vector.load %arg4[%c6_107, %c0_108, %c0_109] : memref<9x256x256xbf16, #tpu.memory_space<vmem>>, vector<1x256x256xbf16>
    %99 = vector.shape_cast %98 : vector<1x256x256xbf16> to vector<256x256xbf16>
    %cst_110 = arith.constant dense<0.000000e+00> : vector<32x256xf32>
    %100 = tpu.matmul %97, %99, %cst_110 {dimension_numbers = #tpu.dot_dimension_numbers<[1], [0], [0], [1], [0, 0, 1, 1], [], []>} : vector<32x256xbf16>, vector<256x256xbf16>, vector<32x256xf32> -> vector<32x256xf32>
    %101 = arith.addf %96, %100 : vector<32x256xf32>
    %c7_111 = arith.constant 7 : index
    %c0_112 = arith.constant 0 : index
    %102 = vector.load %arg10[%c7_111, %c0_112] : memref<40x256xbf16, #tpu.memory_space<vmem>>, vector<32x256xbf16>
    %c7_113 = arith.constant 7 : index
    %c0_114 = arith.constant 0 : index
    %c0_115 = arith.constant 0 : index
    %103 = vector.load %arg4[%c7_113, %c0_114, %c0_115] : memref<9x256x256xbf16, #tpu.memory_space<vmem>>, vector<1x256x256xbf16>
    %104 = vector.shape_cast %103 : vector<1x256x256xbf16> to vector<256x256xbf16>
    %cst_116 = arith.constant dense<0.000000e+00> : vector<32x256xf32>
    %105 = tpu.matmul %102, %104, %cst_116 {dimension_numbers = #tpu.dot_dimension_numbers<[1], [0], [0], [1], [0, 0, 1, 1], [], []>} : vector<32x256xbf16>, vector<256x256xbf16>, vector<32x256xf32> -> vector<32x256xf32>
    %106 = arith.addf %101, %105 : vector<32x256xf32>
    %c8_117 = arith.constant 8 : index
    %c0_118 = arith.constant 0 : index
    %107 = vector.load %arg10[%c8_117, %c0_118] : memref<40x256xbf16, #tpu.memory_space<vmem>>, vector<32x256xbf16>
    %c8_119 = arith.constant 8 : index
    %c0_120 = arith.constant 0 : index
    %c0_121 = arith.constant 0 : index
    %108 = vector.load %arg4[%c8_119, %c0_120, %c0_121] : memref<9x256x256xbf16, #tpu.memory_space<vmem>>, vector<1x256x256xbf16>
    %109 = vector.shape_cast %108 : vector<1x256x256xbf16> to vector<256x256xbf16>
    %cst_122 = arith.constant dense<0.000000e+00> : vector<32x256xf32>
    %110 = tpu.matmul %107, %109, %cst_122 {dimension_numbers = #tpu.dot_dimension_numbers<[1], [0], [0], [1], [0, 0, 1, 1], [], []>} : vector<32x256xbf16>, vector<256x256xbf16>, vector<32x256xf32> -> vector<32x256xf32>
    %111 = arith.addf %106, %110 : vector<32x256xf32>
    %c0_123 = arith.constant 0 : index
    %c0_124 = arith.constant 0 : index
    %112 = vector.load %arg5[%c0_123, %c0_124] : memref<1x256xf32, #tpu.memory_space<vmem>>, vector<1x256xf32>
    %113 = vector.broadcast %112 : vector<1x256xf32> to vector<32x256xf32>
    %114 = arith.addf %111, %113 : vector<32x256xf32>
    %cst_125 = arith.constant 0.000000e+00 : f32
    %115 = vector.broadcast %cst_125 : f32 to vector<32x256xf32>
    %116 = arith.cmpf oge, %114, %115 : vector<32x256xf32>
    %cst_126 = arith.constant 0.00999999977 : f32
    %117 = vector.broadcast %cst_126 : f32 to vector<32x256xf32>
    %118 = arith.mulf %117, %114 : vector<32x256xf32>
    %119 = arith.select %116, %114, %118 : vector<32x256xi1>, vector<32x256xf32>
    %120 = arith.extf %10 : vector<32x256xbf16> to vector<32x256xf32>
    %121 = arith.extf %11 : vector<32x256xbf16> to vector<32x256xf32>
    %122 = arith.addf %120, %121 : vector<32x256xf32>
    %cst_127 = arith.constant 5.000000e-01 : f32
    %123 = vector.broadcast %cst_127 : f32 to vector<32x256xf32>
    %124 = arith.mulf %122, %123 : vector<32x256xf32>
    %125 = arith.truncf %124 : vector<32x256xf32> to vector<32x256xbf16>
    %c0_128 = arith.constant 0 : index
    %c0_129 = arith.constant 0 : index
    %126 = vector.load %arg6[%c0_128, %c0_129] : memref<256x256xbf16, #tpu.memory_space<vmem>>, vector<256x256xbf16>
    %cst_130 = arith.constant dense<0.000000e+00> : vector<32x256xf32>
    %127 = tpu.matmul %125, %126, %cst_130 {dimension_numbers = #tpu.dot_dimension_numbers<[1], [0], [0], [1], [0, 0, 1, 1], [], []>} : vector<32x256xbf16>, vector<256x256xbf16>, vector<32x256xf32> -> vector<32x256xf32>
    %128 = arith.addf %119, %127 : vector<32x256xf32>
    %c0_131 = arith.constant 0 : index
    %c0_132 = arith.constant 0 : index
    %c0_133 = arith.constant 0 : index
    %129 = vector.load %arg7[%c0_131, %c0_132, %c0_133] : memref<1x32x256xf32, #tpu.memory_space<vmem>>, vector<1x32x256xf32>
    %130 = vector.shape_cast %129 : vector<1x32x256xf32> to vector<32x256xf32>
    %131 = vector.shape_cast %128 : vector<32x256xf32> to vector<1x32x256xf32>
    tpu.vector_store %arg7[%c0_131, %c0_132, %c0_133], %131 {strides = array<i32>} : memref<1x32x256xf32, #tpu.memory_space<vmem>>, vector<1x32x256xf32>,
    return
  }
  func.func @transform_0(%arg0: i32) -> (i32, i32, i32) {
    %c0_i32 = arith.constant 0 : i32
    %c0_i32_0 = arith.constant 0 : i32
    %c0_i32_1 = arith.constant 0 : i32
    return %arg0, %c0_i32, %c0_i32_0 : i32, i32, i32
  }
  func.func @transform_1(%arg0: i32) -> (i32, i32, i32) {
    %c0_i32 = arith.constant 0 : i32
    %c0_i32_0 = arith.constant 0 : i32
    %c0_i32_1 = arith.constant 0 : i32
    %c0_i32_2 = arith.constant 0 : i32
    return %c0_i32, %c0_i32_0, %c0_i32_1 : i32, i32, i32
  }
  func.func @transform_2(%arg0: i32) -> (i32, i32) {
    %c0_i32 = arith.constant 0 : i32
    %c0_i32_0 = arith.constant 0 : i32
    %c0_i32_1 = arith.constant 0 : i32
    return %c0_i32, %c0_i32_0 : i32, i32
  }
  func.func @transform_3(%arg0: i32) -> (i32, i32, i32) {
    %c0_i32 = arith.constant 0 : i32
    %c0_i32_0 = arith.constant 0 : i32
    %c0_i32_1 = arith.constant 0 : i32
    %c0_i32_2 = arith.constant 0 : i32
    return %c0_i32, %c0_i32_0, %c0_i32_1 : i32, i32, i32
  }
  func.func @transform_4(%arg0: i32) -> (i32, i32) {
    %c0_i32 = arith.constant 0 : i32
    %c0_i32_0 = arith.constant 0 : i32
    %c0_i32_1 = arith.constant 0 : i32
    return %c0_i32, %c0_i32_0 : i32, i32
  }
  func.func @transform_5(%arg0: i32) -> (i32, i32) {
    %c0_i32 = arith.constant 0 : i32
    %c0_i32_0 = arith.constant 0 : i32
    %c0_i32_1 = arith.constant 0 : i32
    return %c0_i32, %c0_i32_0 : i32, i32
  }
  func.func @transform_6(%arg0: i32) -> (i32, i32, i32) {
    %c0_i32 = arith.constant 0 : i32
    %c0_i32_0 = arith.constant 0 : i32
    %c0_i32_1 = arith.constant 0 : i32
    return %arg0, %c0_i32, %c0_i32_0 : i32, i32, i32
  }
}

</mosaic_0001>

<llo_original>
// kernel: tpu_custom_call.1
$region0: #{tpu_custom_call.1}
  #allocation0 [shape = 'u32[]', space=smem, size = 0x4, offset = 0x4, fixed_abs, tag = 'smem constant byte address 0x4 - core index']
  #allocation1 [shape = 'u32[144,128]{1,0:T(1,128)}', space=vmem, size = 0x12000, scoped, tag = 'internal scratch']
  #allocation2 [shape = 'bf16[36,256]{1,0:T(8,128)(2,1)}', space=vmem, size = 0x5000, scoped, tag = 'scratch operand']
  #allocation3 [shape = 'bf16[36,256]{1,0:T(8,128)(2,1)}', space=vmem, size = 0x5000, scoped, tag = 'scratch operand']
  #allocation4 [shape = 'bf16[40,256]{1,0:T(8,128)(2,1)}', space=vmem, size = 0x5000, scoped, tag = 'scratch operand']
  %s0 = inlined_call_operand.hbm [shape: bf16[2,32,512], index: 0, kind: input, shape index: {}]
  %s1 = inlined_call_operand.hbm [shape: bf16[9,256,256], index: 1, kind: input, shape index: {}]
  %s2 = inlined_call_operand.hbm [shape: f32[1,256], index: 2, kind: input, shape index: {}]
  %s3 = inlined_call_operand.hbm [shape: bf16[9,256,256], index: 3, kind: input, shape index: {}]
  %s4 = inlined_call_operand.hbm [shape: f32[1,256], index: 4, kind: input, shape index: {}]
  %s5 = inlined_call_operand.hbm [shape: bf16[256,256], index: 5, kind: input, shape index: {}]
  %s6 = inlined_call_operand.hbm [shape: f32[2,32,256], index: 6, kind: output, shape index: {}]
  %s7 = sld [smem:[#allocation0]]
  $region81: #{tpu_custom_call.1} parent=0
    _
  %s9 = ssub.s32 1, %s7
  %s10 = scalar_select 0, %s9, %s7
  $region1: #{tpu_custom_call.1} parent=0
    #allocation5 [shape = 'u8[65536]{0}', space=vmem, size = 0x10000, scoped, tag = 'input window, operand 0']
    #allocation6 [shape = 's32[2]{0}', space=sflag, size = 0x8, scoped, tag = 'scoped memory for tpu_custom_call.1']
    #allocation7 [shape = 's32[2]{0}', space=sflag, size = 0x8, scoped, tag = 'scoped memory for tpu_custom_call.1']
    #allocation8 [shape = 'u8[1179648]{0}', space=vmem, size = 0x120000, scoped, tag = 'input window, operand 1, single buffered']
    #allocation9 [shape = 's32[1]{0}', space=sflag, size = 0x4, scoped, tag = 'scoped memory for tpu_custom_call.1']
    #allocation10 [shape = 'u8[1024]{0}', space=vmem, size = 0x400, scoped, tag = 'input window, operand 2, single buffered']
    #allocation11 [shape = 'u8[1179648]{0}', space=vmem, size = 0x120000, scoped, tag = 'input window, operand 3, single buffered']
    #allocation12 [shape = 's32[1]{0}', space=sflag, size = 0x4, scoped, tag = 'scoped memory for tpu_custom_call.1']
    #allocation13 [shape = 'u8[1024]{0}', space=vmem, size = 0x400, scoped, tag = 'input window, operand 4, single buffered']
    #allocation14 [shape = 'u8[131072]{0}', space=vmem, size = 0x20000, scoped, tag = 'input window, operand 5, single buffered']
    #allocation15 [shape = 's32[1]{0}', space=sflag, size = 0x4, scoped, tag = 'scoped memory for tpu_custom_call.1']
    #allocation16 [shape = 'u8[65536]{0}', space=vmem, size = 0x10000, scoped, tag = 'output window, operand 0']
    %11 = vsyncpa [#allocation6], 0
    %s12 = scalar_lea.sflag [#allocation6], 1
    %13 = vsyncpa %s12, 0
    %14 = vsyncpa [#allocation9], 0
    %15 = vsyncpa [#allocation12], 0
    %16 = vsyncpa [#allocation15], 0
    %17 = vsyncpa [#allocation7], 0
    %s18 = scalar_lea.sflag [#allocation7], 1
    %19 = vsyncpa %s18, 0
    loop: start=0, step=1, limit=4
    $region2: #{tpu_custom_call.1} parent=1 // loop_pre_header
      _
    $region3: #{tpu_custom_call.1} parent=1 // loop_header
      %s21 = sphi 0, %s25
      %p22 = scmp.ge.s32.totalorder %s21, 4
      %s31 = sphi 0, %s33
      %s34 = sphi 0, %s31
      %s35 = sphi 0, %s34
      %s51 = sphi 0, %s35
      %s55 = sphi 0, %s55
      %s57 = sphi 0, %s55
      %s58 = sphi 0, %s57
      %s72 = sphi 0, %s58
      %s76 = sphi 0, %s76
      %s78 = sphi 0, %s76
      %s79 = sphi 0, %s78
      %s93 = sphi 0, %s79
      %s97 = sphi 0, %s97
      %s99 = sphi 0, %s97
      %s100 = sphi 0, %s99
      %s114 = sphi 0, %s100
      %s118 = sphi 0, %s118
      %s120 = sphi 0, %s118
      %s121 = sphi 0, %s120
      %s135 = sphi 0, %s121
      %s139 = sphi 0, %s139
      %s141 = sphi 0, %s139
      %s142 = sphi 0, %s141
      %s156 = sphi 0, %s142
      %s162 = sphi 0, %s164
      %s165 = sphi 0, %s162
      %s166 = sphi 0, %s165
      %s182 = sphi 0, %s166
    $region4: #{tpu_custom_call.1} parent=1 // loop_header_branch
      %24 = sbr.rel (%p22) target = $region8
    $region5: #{tpu_custom_call.1} parent=1 // loop_body
      %s26 = ssub.s32 %s21, 1
      %s27 = ssub.s32 %s21, 2
      %s28 = sadd.s32 %s21, 1
      %s29 = ssub.s32 %s21, %s28
      %p30 = scmp.eq.s32.totalorder %s29, 0
      %s32 = sadd.s32 %s31, 1
      %s33 = scalar_select %p30, %s31, %s32
      %p36 = pneg %p30
      %p37 = scmp.eq.s32.totalorder %s21, 1
      %p38 = por %p36, %p37
      %p39 = scmp.ne.s32.totalorder %s31, %s34
      %p40 = scmp.eq.s32.totalorder %s21, 0
      %p41 = por %p39, %p40
      %p42 = scmp.ne.s32.totalorder %s31, %s34
      %p43 = scmp.eq.s32.totalorder %s26, 1
      %p44 = por %p42, %p43
      %p45 = scmp.ne.s32.totalorder %s34, %s35
      %p46 = scmp.eq.s32.totalorder %s26, 0
      %p47 = por %p45, %p46
      %p48 = scmp.ne.s32.totalorder %s34, %s35
      %p49 = scmp.eq.s32.totalorder %s27, 1
      %p50 = por %p48, %p49
      %p52 = scmp.ne.s32.totalorder %s35, %s51
      %p53 = scmp.eq.s32.totalorder %s27, 0
      %p54 = por %p52, %p53
      %s56 = sadd.s32 %s55, 1
      %p59 = scmp.eq.s32.totalorder %s21, 1
      %p60 = scmp.ne.s32.totalorder %s55, %s57
      %p61 = scmp.eq.s32.totalorder %s21, 0
      %p62 = por %p60, %p61
      %p63 = scmp.ne.s32.totalorder %s55, %s57
      %p64 = scmp.eq.s32.totalorder %s26, 1
      %p65 = por %p63, %p64
      %p66 = scmp.ne.s32.totalorder %s57, %s58
      %p67 = scmp.eq.s32.totalorder %s26, 0
      %p68 = por %p66, %p67
      %p69 = scmp.ne.s32.totalorder %s57, %s58
      %p70 = scmp.eq.s32.totalorder %s27, 1
      %p71 = por %p69, %p70
      %p73 = scmp.ne.s32.totalorder %s58, %s72
      %p74 = scmp.eq.s32.totalorder %s27, 0
      %p75 = por %p73, %p74
      %s77 = sadd.s32 %s76, 1
      %p80 = scmp.eq.s32.totalorder %s21, 1
      %p81 = scmp.ne.s32.totalorder %s76, %s78
      %p82 = scmp.eq.s32.totalorder %s21, 0
      %p83 = por %p81, %p82
      %p84 = scmp.ne.s32.totalorder %s76, %s78
      %p85 = scmp.eq.s32.totalorder %s26, 1
      %p86 = por %p84, %p85
      %p87 = scmp.ne.s32.totalorder %s78, %s79
      %p88 = scmp.eq.s32.totalorder %s26, 0
      %p89 = por %p87, %p88
      %p90 = scmp.ne.s32.totalorder %s78, %s79
      %p91 = scmp.eq.s32.totalorder %s27, 1
      %p92 = por %p90, %p91
      %p94 = scmp.ne.s32.totalorder %s79, %s93
      %p95 = scmp.eq.s32.totalorder %s27, 0
      %p96 = por %p94, %p95
      %s98 = sadd.s32 %s97, 1
      %p101 = scmp.eq.s32.totalorder %s21, 1
      %p102 = scmp.ne.s32.totalorder %s97, %s99
      %p103 = scmp.eq.s32.totalorder %s21, 0
      %p104 = por %p102, %p103
      %p105 = scmp.ne.s32.totalorder %s97, %s99
      %p106 = scmp.eq.s32.totalorder %s26, 1
      %p107 = por %p105, %p106
      %p108 = scmp.ne.s32.totalorder %s99, %s100
      %p109 = scmp.eq.s32.totalorder %s26, 0
      %p110 = por %p108, %p109
      %p111 = scmp.ne.s32.totalorder %s99, %s100
      %p112 = scmp.eq.s32.totalorder %s27, 1
      %p113 = por %p111, %p112
      %p115 = scmp.ne.s32.totalorder %s100, %s114
      %p116 = scmp.eq.s32.totalorder %s27, 0
      %p117 = por %p115, %p116
      %s119 = sadd.s32 %s118, 1
      %p122 = scmp.eq.s32.totalorder %s21, 1
      %p123 = scmp.ne.s32.totalorder %s118, %s120
      %p124 = scmp.eq.s32.totalorder %s21, 0
      %p125 = por %p123, %p124
      %p126 = scmp.ne.s32.totalorder %s118, %s120
      %p127 = scmp.eq.s32.totalorder %s26, 1
      %p128 = por %p126, %p127
      %p129 = scmp.ne.s32.totalorder %s120, %s121
      %p130 = scmp.eq.s32.totalorder %s26, 0
      %p131 = por %p129, %p130
      %p132 = scmp.ne.s32.totalorder %s120, %s121
      %p133 = scmp.eq.s32.totalorder %s27, 1
      %p134 = por %p132, %p133
      %p136 = scmp.ne.s32.totalorder %s121, %s135
      %p137 = scmp.eq.s32.totalorder %s27, 0
      %p138 = por %p136, %p137
      %s140 = sadd.s32 %s139, 1
      %p143 = scmp.eq.s32.totalorder %s21, 1
      %p144 = scmp.ne.s32.totalorder %s139, %s141
      %p145 = scmp.eq.s32.totalorder %s21, 0
      %p146 = por %p144, %p145
      %p147 = scmp.ne.s32.totalorder %s139, %s141
      %p148 = scmp.eq.s32.totalorder %s26, 1
      %p149 = por %p147, %p148
      %p150 = scmp.ne.s32.totalorder %s141, %s142
      %p151 = scmp.eq.s32.totalorder %s26, 0
      %p152 = por %p150, %p151
      %p153 = scmp.ne.s32.totalorder %s141, %s142
      %p154 = scmp.eq.s32.totalorder %s27, 1
      %p155 = por %p153, %p154
      %p157 = scmp.ne.s32.totalorder %s142, %s156
      %p158 = scmp.eq.s32.totalorder %s27, 0
      %p159 = por %p157, %p158
      %s160 = ssub.s32 %s21, %s28
      %p161 = scmp.eq.s32.totalorder %s160, 0
      %s163 = sadd.s32 %s162, 1
      %s164 = scalar_select %p161, %s162, %s163
      %p167 = pneg %p161
      %p168 = scmp.eq.s32.totalorder %s21, 1
      %p169 = por %p167, %p168
      %p170 = scmp.ne.s32.totalorder %s162, %s165
      %p171 = scmp.eq.s32.totalorder %s21, 0
      %p172 = por %p170, %p171
      %p173 = scmp.ne.s32.totalorder %s162, %s165
      %p174 = scmp.eq.s32.totalorder %s26, 1
      %p175 = por %p173, %p174
      %p176 = scmp.ne.s32.totalorder %s165, %s166
      %p177 = scmp.eq.s32.totalorder %s26, 0
      %p178 = por %p176, %p177
      %p179 = scmp.ne.s32.totalorder %s165, %s166
      %p180 = scmp.eq.s32.totalorder %s27, 1
      %p181 = por %p179, %p180
      %p183 = scmp.ne.s32.totalorder %s166, %s182
      %p184 = scmp.eq.s32.totalorder %s27, 0
      %p185 = por %p183, %p184
      %p186 = scmp.le.s32.totalorder 1, %s21
      %p187 = scmp.lt.s32.totalorder %s21, 3
      %p188 = pnand %p186, %p187
      %p189 = pneg %p188
      // Predicated region
      $region9: #{tpu_custom_call.1} parent=5 // pred_check
        _
      $region10: #{tpu_custom_call.1} parent=5 // pred_check_branch
        %191 = sbr.rel (%p188) target = $region12
      $region11: #{tpu_custom_call.1} parent=5 // pred_region
        %s192 = ssub.s32 %s21, 1
        // Predicated region
        $region13: #{tpu_custom_call.1} parent=11 // pred_check
          %p193 = pneg %p68
        $region14: #{tpu_custom_call.1} parent=11 // pred_check_branch
          %195 = sbr.rel (%p193) target = $region16
        $region15: #{tpu_custom_call.1} parent=11 // pred_region
          %s197 = ssub.s32 36864, 36864
          %198 = vsyncadd [#allocation9], %s197
          %s199 = sshll.u32 [#allocation8], 4
          %s200 = int_to_ptr.vmem [resolvable:$true] %s199
          %205 = dma.hbm_to_vmem [thread:$0]  %s1, 36864, %s200, [#allocation9], 128, 128, 8
        $region16: #{tpu_custom_call.1} parent=11 // pred_fallthru
          _
        // Predicated region
        $region17: #{tpu_custom_call.1} parent=11 // pred_check
          %p206 = pneg %p89
        $region18: #{tpu_custom_call.1} parent=11 // pred_check_branch
          %208 = sbr.rel (%p206) target = $region20
        $region19: #{tpu_custom_call.1} parent=11 // pred_region
          %s210 = ssub.s32 32, 32
          %211 = vsyncadd [#allocation9], %s210
          %s213 = sshll.u32 [#allocation10], 4
          %s214 = int_to_ptr.vmem [resolvable:$true] %s213
          %216 = dma.hbm_to_vmem [thread:$0]  %s2, 32, %s214, [#allocation9]
        $region20: #{tpu_custom_call.1} parent=11 // pred_fallthru
          _
        // Predicated region
        $region21: #{tpu_custom_call.1} parent=11 // pred_check
          %p217 = pneg %p110
        $region22: #{tpu_custom_call.1} parent=11 // pred_check_branch
          %219 = sbr.rel (%p217) target = $region24
        $region23: #{tpu_custom_call.1} parent=11 // pred_region
          %s221 = ssub.s32 36864, 36864
          %222 = vsyncadd [#allocation12], %s221
          %s223 = sshll.u32 [#allocation11], 4
          %s224 = int_to_ptr.vmem [resolvable:$true] %s223
          %229 = dma.hbm_to_vmem [thread:$0]  %s3, 36864, %s224, [#allocation12], 128, 128, 8
        $region24: #{tpu_custom_call.1} parent=11 // pred_fallthru
          _
        // Predicated region
        $region25: #{tpu_custom_call.1} parent=11 // pred_check
          %p230 = pneg %p131
        $region26: #{tpu_custom_call.1} parent=11 // pred_check_branch
          %232 = sbr.rel (%p230) target = $region28
        $region27: #{tpu_custom_call.1} parent=11 // pred_region
          %s234 = ssub.s32 32, 32
          %235 = vsyncadd [#allocation12], %s234
          %s237 = sshll.u32 [#allocation13], 4
          %s238 = int_to_ptr.vmem [resolvable:$true] %s237
          %240 = dma.hbm_to_vmem [thread:$0]  %s4, 32, %s238, [#allocation12]
        $region28: #{tpu_custom_call.1} parent=11 // pred_fallthru
          _
        // Predicated region
        $region29: #{tpu_custom_call.1} parent=11 // pred_check
          %p241 = pneg %p152
        $region30: #{tpu_custom_call.1} parent=11 // pred_check_branch
          %243 = sbr.rel (%p241) target = $region32
        $region31: #{tpu_custom_call.1} parent=11 // pred_region
          %s245 = ssub.s32 4096, 4096
          %246 = vsyncadd [#allocation15], %s245
          %s247 = sshll.u32 [#allocation14], 4
          %s248 = int_to_ptr.vmem [resolvable:$true] %s247
          %253 = dma.hbm_to_vmem [thread:$0]  %s5, 4096, %s248, [#allocation15], 128, 128, 8
        $region32: #{tpu_custom_call.1} parent=11 // pred_fallthru
          _
      $region12: #{tpu_custom_call.1} parent=5 // pred_fallthru
        _
      %p254 = scmp.lt.s32.totalorder %s21, 2
      // Predicated region
      $region33: #{tpu_custom_call.1} parent=5 // pred_check
        %p255 = pneg %p254
      $region34: #{tpu_custom_call.1} parent=5 // pred_check_branch
        %257 = sbr.rel (%p255) target = $region36
      $region35: #{tpu_custom_call.1} parent=5 // pred_region
        // Predicated region
        $region37: #{tpu_custom_call.1} parent=35 // pred_check
          %p258 = pneg %p41
        $region38: #{tpu_custom_call.1} parent=35 // pred_check_branch
          %260 = sbr.rel (%p258) target = $region40
        $region39: #{tpu_custom_call.1} parent=35 // pred_region
          %s261 = sand.u32 %s31, 1
          %s262 = scalar_lea.sflag [#allocation6], %s261
          %s263 = sand.u32 %s31, 1
          %s264 = smul.addr %s263, 64
          %s265 = scalar_lea.vmem [#allocation5], %s264
          %s267 = ssub.s32 1024, 1024
          %268 = vsyncadd %s262, %s267
          %s269 = smul.addr %s21, 16
          %s270 = smul.addr %s269, 64
          %s271 = scalar_lea.hbm %s0, %s270
          %s272 = sshll.u32 %s265, 4
          %s273 = int_to_ptr.vmem [resolvable:$true] %s272
          %278 = dma.hbm_to_vmem [thread:$0]  %s271, 1024, %s273, %s262, 256, 256, 16
        $region40: #{tpu_custom_call.1} parent=35 // pred_fallthru
          _
      $region36: #{tpu_custom_call.1} parent=5 // pred_fallthru
        _
      %p279 = scmp.le.s32.totalorder 1, %s21
      %p280 = scmp.lt.s32.totalorder %s21, 3
      %p281 = pnand %p279, %p280
      %p282 = pneg %p281
      // Predicated region
      $region41: #{tpu_custom_call.1} parent=5 // pred_check
        _
      $region42: #{tpu_custom_call.1} parent=5 // pred_check_branch
        %284 = sbr.rel (%p281) target = $region44
      $region43: #{tpu_custom_call.1} parent=5 // pred_region
        %s285 = ssub.s32 %s21, 1
        %s286 = sand.u32 %s34, 1
        %s287 = scalar_lea.sflag [#allocation6], %s286
        %s288 = sand.u32 %s34, 1
        %s289 = smul.addr %s288, 64
        %s290 = scalar_lea.vmem [#allocation5], %s289
        // Predicated region
        $region45: #{tpu_custom_call.1} parent=43 // pred_check
          %p291 = pneg %p47
        $region46: #{tpu_custom_call.1} parent=43 // pred_check_branch
          %293 = sbr.rel (%p291) target = $region48
        $region47: #{tpu_custom_call.1} parent=43 // pred_region
          %294 = dma.done %s287, 1024
        $region48: #{tpu_custom_call.1} parent=43 // pred_fallthru
          _
        // Predicated region
        $region49: #{tpu_custom_call.1} parent=43 // pred_check
          %p295 = pneg %p68
        $region50: #{tpu_custom_call.1} parent=43 // pred_check_branch
          %297 = sbr.rel (%p295) target = $region52
        $region51: #{tpu_custom_call.1} parent=43 // pred_region
          %298 = dma.done [#allocation9], 36864
        $region52: #{tpu_custom_call.1} parent=43 // pred_fallthru
          _
        // Predicated region
        $region53: #{tpu_custom_call.1} parent=43 // pred_check
          %p299 = pneg %p89
        $region54: #{tpu_custom_call.1} parent=43 // pred_check_branch
          %301 = sbr.rel (%p299) target = $region56
        $region55: #{tpu_custom_call.1} parent=43 // pred_region
          %302 = dma.done [#allocation9], 32
        $region56: #{tpu_custom_call.1} parent=43 // pred_fallthru
          _
        // Predicated region
        $region57: #{tpu_custom_call.1} parent=43 // pred_check
          %p303 = pneg %p110
        $region58: #{tpu_custom_call.1} parent=43 // pred_check_branch
          %305 = sbr.rel (%p303) target = $region60
        $region59: #{tpu_custom_call.1} parent=43 // pred_region
          %306 = dma.done [#allocation12], 36864
        $region60: #{tpu_custom_call.1} parent=43 // pred_fallthru
          _
        // Predicated region
        $region61: #{tpu_custom_call.1} parent=43 // pred_check
          %p307 = pneg %p131
        $region62: #{tpu_custom_call.1} parent=43 // pred_check_branch
          %309 = sbr.rel (%p307) target = $region64
        $region63: #{tpu_custom_call.1} parent=43 // pred_region
          %310 = dma.done [#allocation12], 32
        $region64: #{tpu_custom_call.1} parent=43 // pred_fallthru
          _
        // Predicated region
        $region65: #{tpu_custom_call.1} parent=43 // pred_check
          %p311 = pneg %p152
        $region66: #{tpu_custom_call.1} parent=43 // pred_check_branch
          %313 = sbr.rel (%p311) target = $region68
        $region67: #{tpu_custom_call.1} parent=43 // pred_region
          %314 = dma.done [#allocation15], 4096
        $region68: #{tpu_custom_call.1} parent=43 // pred_fallthru
          _
        %s315 = sand.u32 %s34, 1
        %s316 = scalar_lea.sflag [#allocation6], %s315
        %s317 = sand.u32 %s34, 1
        %s318 = smul.addr %s317, 64
        %s319 = scalar_lea.vmem [#allocation5], %s318
        %p320 = pneg %p47
        %p321 = pneg %p44
        %p322 = pneg %p68
        %p323 = pneg %p65
        %p324 = pneg %p89
        %p325 = pneg %p86
        %p326 = pneg %p110
        %p327 = pneg %p107
        %p328 = pneg %p131
        %p329 = pneg %p128
        %p330 = pneg %p152
        %p331 = pneg %p149
        %p332 = pneg %p178
        %p333 = pneg %p175
        %s334 = sand.u32 %s165, 1
        %s335 = scalar_lea.sflag [#allocation7], %s334
        %s336 = sand.u32 %s165, 1
        %s337 = smul.addr %s336, 64
        %s338 = scalar_lea.vmem [#allocation16], %s337
        %340 = vst [vmem:[#allocation2] sm:$0x11] 0
        %341 = vst [vmem:[#allocation2 + $0x20] sm:$0x22] 0
        %342 = vst [vmem:[#allocation3] sm:$0x11] 0
        %343 = vst [vmem:[#allocation3 + $0x20] sm:$0x22] 0
        %344 = vst [vmem:[#allocation4] sm:$0x33] 0
        %345 = vst [vmem:[#allocation4 + $0x20] sm:$0xcc] 0
        %v346 = vld [vmem:[%s290] sm:$0xff]
        %v347 = vld [vmem:[%s290 + $0x8] sm:$0xff]
        %v348 = vld [vmem:[%s290 + $0x10] sm:$0xff]
        %v349 = vld [vmem:[%s290 + $0x18] sm:$0xff]
        %v350 = vld [vmem:[%s290 + $0x20] sm:$0xff]
        %v351 = vld [vmem:[%s290 + $0x28] sm:$0xff]
        %v352 = vld [vmem:[%s290 + $0x30] sm:$0xff]
        %v353 = vld [vmem:[%s290 + $0x38] sm:$0xff]
        %vm358 = vcmask 1040384
        %vm359 = vcmask 1044484
        %vm360 = vmor %vm358, %vm359
        %v361 = vrot.slane %v346, 7
        %v362 = vrot.slane %v361, 4
        %v363 = vrot.slane %v348, 7
        %v364 = vsel %vm360, %v362, %v363
        %v365 = vrot.slane %v363, 4
        %v366 = vrot.slane %v350, 7
        %v367 = vsel %vm360, %v365, %v366
        %v368 = vrot.slane %v366, 4
        %v369 = vrot.slane %v352, 7
        %v370 = vsel %vm360, %v368, %v369
        %v371 = vrot.slane %v369, 4
        %377 = vst [vmem:[#allocation2] sm:$0xee] %v361
        %378 = vst [vmem:[#allocation2 + $0x8] sm:$0xff] %v364
        %379 = vst [vmem:[#allocation2 + $0x10] sm:$0xff] %v367
        %380 = vst [vmem:[#allocation2 + $0x18] sm:$0xff] %v370
        %381 = vst [vmem:[#allocation2 + $0x20] sm:$0x11] %v371
        %v386 = vrot.slane %v347, 7
        %v387 = vrot.slane %v386, 4
        %v388 = vrot.slane %v349, 7
        %v389 = vsel %vm360, %v387, %v388
        %v390 = vrot.slane %v388, 4
        %v391 = vrot.slane %v351, 7
        %v392 = vsel %vm360, %v390, %v391
        %v393 = vrot.slane %v391, 4
        %v394 = vrot.slane %v353, 7
        %v395 = vsel %vm360, %v393, %v394
        %v396 = vrot.slane %v394, 4
        %402 = vst [vmem:[#allocation3] sm:$0xee] %v386
        %403 = vst [vmem:[#allocation3 + $0x8] sm:$0xff] %v389
        %404 = vst [vmem:[#allocation3 + $0x10] sm:$0xff] %v392
        %405 = vst [vmem:[#allocation3 + $0x18] sm:$0xff] %v395
        %406 = vst [vmem:[#allocation3 + $0x20] sm:$0x11] %v396
        %v407 = vld [vmem:[#allocation2] sm:$0xff]
        %v408 = vld [vmem:[#allocation2 + $0x8] sm:$0xff]
        %v409 = vld [vmem:[#allocation2 + $0x10] sm:$0xff]
        %v410 = vld [vmem:[#allocation2 + $0x18] sm:$0xff]
        %v411 = vld [vmem:[#allocation8] sm:$0xff]
        %v412 = vld [vmem:[#allocation8 + $0x8] sm:$0xff]
        %v413 = vld [vmem:[#allocation8 + $0x10] sm:$0xff]
        %v414 = vld [vmem:[#allocation8 + $0x18] sm:$0xff]
        %v415 = vld [vmem:[#allocation8 + $0x20] sm:$0xff]
        %v416 = vld [vmem:[#allocation8 + $0x28] sm:$0xff]
        %v417 = vld [vmem:[#allocation8 + $0x30] sm:$0xff]
        %v418 = vld [vmem:[#allocation8 + $0x38] sm:$0xff]
        %v419 = vld [vmem:[#allocation8 + $0x40] sm:$0xff]
        %v420 = vld [vmem:[#allocation8 + $0x48] sm:$0xff]
        %v421 = vld [vmem:[#allocation8 + $0x50] sm:$0xff]
        %v422 = vld [vmem:[#allocation8 + $0x58] sm:$0xff]
        %v423 = vld [vmem:[#allocation8 + $0x60] sm:$0xff]
        %v424 = vld [vmem:[#allocation8 + $0x68] sm:$0xff]
        %v425 = vld [vmem:[#allocation8 + $0x70] sm:$0xff]
        %v426 = vld [vmem:[#allocation8 + $0x78] sm:$0xff]
        %v427 = vld [vmem:[#allocation8 + $0x80] sm:$0xff]
        %v428 = vld [vmem:[#allocation8 + $0x88] sm:$0xff]
        %v429 = vld [vmem:[#allocation8 + $0x90] sm:$0xff]
        %v430 = vld [vmem:[#allocation8 + $0x98] sm:$0xff]
        %v431 = vld [vmem:[#allocation8 + $0xa0] sm:$0xff]
        %v432 = vld [vmem:[#allocation8 + $0xa8] sm:$0xff]
        %v433 = vld [vmem:[#allocation8 + $0xb0] sm:$0xff]
        %v434 = vld [vmem:[#allocation8 + $0xb8] sm:$0xff]
        %v435 = vld [vmem:[#allocation8 + $0xc0] sm:$0xff]
        %v436 = vld [vmem:[#allocation8 + $0xc8] sm:$0xff]
        %v437 = vld [vmem:[#allocation8 + $0xd0] sm:$0xff]
        %v438 = vld [vmem:[#allocation8 + $0xd8] sm:$0xff]
        %v439 = vld [vmem:[#allocation8 + $0xe0] sm:$0xff]
        %v440 = vld [vmem:[#allocation8 + $0xe8] sm:$0xff]
        %v441 = vld [vmem:[#allocation8 + $0xf0] sm:$0xff]
        %v442 = vld [vmem:[#allocation8 + $0xf8] sm:$0xff]
        %v443 = vld [vmem:[#allocation3] sm:$0xff]
        %v444 = vld [vmem:[#allocation3 + $0x8] sm:$0xff]
        %v445 = vld [vmem:[#allocation3 + $0x10] sm:$0xff]
        %v446 = vld [vmem:[#allocation3 + $0x18] sm:$0xff]
        %s447 = scalar_lea.vmem [#allocation8], 256
        %v448 = vld [vmem:[%s447] sm:$0xff]
        %v449 = vld [vmem:[%s447 + $0x8] sm:$0xff]
        %v450 = vld [vmem:[%s447 + $0x10] sm:$0xff]
        %v451 = vld [vmem:[%s447 + $0x18] sm:$0xff]
        %v452 = vld [vmem:[%s447 + $0x20] sm:$0xff]
        %v453 = vld [vmem:[%s447 + $0x28] sm:$0xff]
        %v454 = vld [vmem:[%s447 + $0x30] sm:$0xff]
        %v455 = vld [vmem:[%s447 + $0x38] sm:$0xff]
        %v456 = vld [vmem:[%s447 + $0x40] sm:$0xff]
        %v457 = vld [vmem:[%s447 + $0x48] sm:$0xff]
        %v458 = vld [vmem:[%s447 + $0x50] sm:$0xff]
        %v459 = vld [vmem:[%s447 + $0x58] sm:$0xff]
        %v460 = vld [vmem:[%s447 + $0x60] sm:$0xff]
        %v461 = vld [vmem:[%s447 + $0x68] sm:$0xff]
        %v462 = vld [vmem:[%s447 + $0x70] sm:$0xff]
        %v463 = vld [vmem:[%s447 + $0x78] sm:$0xff]
        %v464 = vld [vmem:[%s447 + $0x80] sm:$0xff]
        %v465 = vld [vmem:[%s447 + $0x88] sm:$0xff]
        %v466 = vld [vmem:[%s447 + $0x90] sm:$0xff]
        %v467 = vld [vmem:[%s447 + $0x98] sm:$0xff]
        %v468 = vld [vmem:[%s447 + $0xa0] sm:$0xff]
        %v469 = vld [vmem:[%s447 + $0xa8] sm:$0xff]
        %v470 = vld [vmem:[%s447 + $0xb0] sm:$0xff]
        %v471 = vld [vmem:[%s447 + $0xb8] sm:$0xff]
        %v472 = vld [vmem:[%s447 + $0xc0] sm:$0xff]
        %v473 = vld [vmem:[%s447 + $0xc8] sm:$0xff]
        %v474 = vld [vmem:[%s447 + $0xd0] sm:$0xff]
        %v475 = vld [vmem:[%s447 + $0xd8] sm:$0xff]
        %v476 = vld [vmem:[%s447 + $0xe0] sm:$0xff]
        %v477 = vld [vmem:[%s447 + $0xe8] sm:$0xff]
        %v478 = vld [vmem:[%s447 + $0xf0] sm:$0xff]
        %v479 = vld [vmem:[%s447 + $0xf8] sm:$0xff]
        %v484 = vunpack.c.l.b16 %v443
        %v485 = vunpack.c.h.b16 %v443
        %v486 = vunpack.c.l.b16 %v444
        %v487 = vunpack.c.h.b16 %v444
        %v488 = vunpack.c.l.b16 %v445
        %v489 = vunpack.c.h.b16 %v445
        %v490 = vunpack.c.l.b16 %v446
        %v491 = vunpack.c.h.b16 %v446
        %v492 = vpack.c.b16 %v486, %v484
        %v493 = vpack.c.b16 %v487, %v485
        %v494 = vpack.c.b16 %v490, %v488
        %v495 = vpack.c.b16 %v491, %v489
        %v532 = vunpack.c.l.b16 %v448
        %v533 = vunpack.c.h.b16 %v448
        %v534 = vunpack.c.l.b16 %v449
        %v535 = vunpack.c.h.b16 %v449
        %v536 = vunpack.c.l.b16 %v450
        %v537 = vunpack.c.h.b16 %v450
        %v538 = vunpack.c.l.b16 %v451
        %v539 = vunpack.c.h.b16 %v451
        %v540 = vunpack.c.l.b16 %v452
        %v541 = vunpack.c.h.b16 %v452
        %v542 = vunpack.c.l.b16 %v453
        %v543 = vunpack.c.h.b16 %v453
        %v544 = vunpack.c.l.b16 %v454
        %v545 = vunpack.c.h.b16 %v454
        %v546 = vunpack.c.l.b16 %v455
        %v547 = vunpack.c.h.b16 %v455
        %v548 = vunpack.c.l.b16 %v456
        %v549 = vunpack.c.h.b16 %v456
        %v550 = vunpack.c.l.b16 %v457
        %v551 = vunpack.c.h.b16 %v457
        %v552 = vunpack.c.l.b16 %v458
        %v553 = vunpack.c.h.b16 %v458
        %v554 = vunpack.c.l.b16 %v459
        %v555 = vunpack.c.h.b16 %v459
        %v556 = vunpack.c.l.b16 %v460
        %v557 = vunpack.c.h.b16 %v460
        %v558 = vunpack.c.l.b16 %v461
        %v559 = vunpack.c.h.b16 %v461
        %v560 = vunpack.c.l.b16 %v462
        %v561 = vunpack.c.h.b16 %v462
        %v562 = vunpack.c.l.b16 %v463
        %v563 = vunpack.c.h.b16 %v463
        %v564 = vunpack.c.l.b16 %v464
        %v565 = vunpack.c.h.b16 %v464
        %v566 = vunpack.c.l.b16 %v465
        %v567 = vunpack.c.h.b16 %v465
        %v568 = vunpack.c.l.b16 %v466
        %v569 = vunpack.c.h.b16 %v466
        %v570 = vunpack.c.l.b16 %v467
        %v571 = vunpack.c.h.b16 %v467
        %v572 = vunpack.c.l.b16 %v468
        %v573 = vunpack.c.h.b16 %v468
        %v574 = vunpack.c.l.b16 %v469
        %v575 = vunpack.c.h.b16 %v469
        %v576 = vunpack.c.l.b16 %v470
        %v577 = vunpack.c.h.b16 %v470
        %v578 = vunpack.c.l.b16 %v471
        %v579 = vunpack.c.h.b16 %v471
        %v580 = vunpack.c.l.b16 %v472
        %v581 = vunpack.c.h.b16 %v472
        %v582 = vunpack.c.l.b16 %v473
        %v583 = vunpack.c.h.b16 %v473
        %v584 = vunpack.c.l.b16 %v474
        %v585 = vunpack.c.h.b16 %v474
        %v586 = vunpack.c.l.b16 %v475
        %v587 = vunpack.c.h.b16 %v475
        %v588 = vunpack.c.l.b16 %v476
        %v589 = vunpack.c.h.b16 %v476
        %v590 = vunpack.c.l.b16 %v477
        %v591 = vunpack.c.h.b16 %v477
        %v592 = vunpack.c.l.b16 %v478
        %v593 = vunpack.c.h.b16 %v478
        %v594 = vunpack.c.l.b16 %v479
        %v595 = vunpack.c.h.b16 %v479
        %v596 = vpack.c.b16 %v534, %v532
        %v597 = vpack.c.b16 %v535, %v533
        %v598 = vpack.c.b16 %v538, %v536
        %v599 = vpack.c.b16 %v539, %v537
        %v600 = vpack.c.b16 %v542, %v540
        %v601 = vpack.c.b16 %v543, %v541
        %v602 = vpack.c.b16 %v546, %v544
        %v603 = vpack.c.b16 %v547, %v545
        %v604 = vpack.c.b16 %v550, %v548
        %v605 = vpack.c.b16 %v551, %v549
        %v606 = vpack.c.b16 %v554, %v552
        %v607 = vpack.c.b16 %v555, %v553
        %v608 = vpack.c.b16 %v558, %v556
        %v609 = vpack.c.b16 %v559, %v557
        %v610 = vpack.c.b16 %v562, %v560
        %v611 = vpack.c.b16 %v563, %v561
        %v612 = vpack.c.b16 %v566, %v564
        %v613 = vpack.c.b16 %v567, %v565
        %v614 = vpack.c.b16 %v570, %v568
        %v615 = vpack.c.b16 %v571, %v569
        %v616 = vpack.c.b16 %v574, %v572
        %v617 = vpack.c.b16 %v575, %v573
        %v618 = vpack.c.b16 %v578, %v576
        %v619 = vpack.c.b16 %v579, %v577
        %v620 = vpack.c.b16 %v582, %v580
        %v621 = vpack.c.b16 %v583, %v581
        %v622 = vpack.c.b16 %v586, %v584
        %v623 = vpack.c.b16 %v587, %v585
        %v624 = vpack.c.b16 %v590, %v588
        %v625 = vpack.c.b16 %v591, %v589
        %v626 = vpack.c.b16 %v594, %v592
        %v627 = vpack.c.b16 %v595, %v593
        %660 = vmatprep.subr.bf16.mxu0 %v611
        %661 = vmatpush1.bf16.msra.mxu0 %v610
        %662 = vmatprep.subr.bf16.mxu0 %v609
        %663 = vmatpush1.bf16.msra.mxu0 %v608
        %664 = vmatprep.subr.bf16.mxu0 %v607
        %665 = vmatpush1.bf16.msra.mxu0 %v606
        %666 = vmatprep.subr.bf16.mxu0 %v605
        %667 = vmatpush1.bf16.msra.mxu0 %v604
        %668 = vmatprep.subr.bf16.mxu0 %v603
        %669 = vmatpush1.bf16.msra.mxu0 %v602
        %670 = vmatprep.subr.bf16.mxu0 %v601
        %671 = vmatpush1.bf16.msra.mxu0 %v600
        %672 = vmatprep.subr.bf16.mxu0 %v599
        %673 = vmatpush1.bf16.msra.mxu0 %v598
        %674 = vmatprep.subr.bf16.mxu0 %v597
        %675 = vmatpush1.bf16.msra.mxu0 %v596
        %676 = vmatprep.subr.bf16.mxu0 %v627
        %677 = vmatpush2.bf16.msra.mxu0 %v626
        %678 = vmatprep.subr.bf16.mxu0 %v625
        %679 = vmatpush2.bf16.msra.mxu0 %v624
        %680 = vmatprep.subr.bf16.mxu0 %v623
        %681 = vmatpush2.bf16.msra.mxu0 %v622
        %682 = vmatprep.subr.bf16.mxu0 %v621
        %683 = vmatpush2.bf16.msra.mxu0 %v620
        %684 = vmatprep.subr.bf16.mxu0 %v619
        %685 = vmatpush2.bf16.msra.mxu0 %v618
        %686 = vmatprep.subr.bf16.mxu0 %v617
        %687 = vmatpush2.bf16.msra.mxu0 %v616
        %688 = vmatprep.subr.bf16.mxu0 %v615
        %689 = vmatpush2.bf16.msra.mxu0 %v614
        %690 = vmatprep.subr.bf16.mxu0 %v613
        %691 = vmatpush2.bf16.msra.mxu0 %v612
        %692 = vmatprep.mubr.bf16.mxu0 %v493
        %693 = vmatmul.mubr.bf16.gmra.mxu0 %v492
        %v694 = vpop.f32.mrf.mxu0
        %v695 = vadd.f32 0.0, %v694
        %v696 = vpop.f32.mrf.mxu0
        %v697 = vadd.f32 0.0, %v696
        %v698 = vpop.f32.mrf.mxu0
        %v699 = vadd.f32 0.0, %v698
        %v700 = vpop.f32.mrf.mxu0
        %v701 = vadd.f32 0.0, %v700
        %702 = vmatprep.mubr.bf16.mxu0 %v495
        %703 = vmatmul.mubr.bf16.gmra.mxu0 %v494
        %v704 = vpop.f32.mrf.mxu0
        %v705 = vadd.f32 0.0, %v704
        %v706 = vpop.f32.mrf.mxu0
        %v707 = vadd.f32 0.0, %v706
        %v708 = vpop.f32.mrf.mxu0
        %v709 = vadd.f32 0.0, %v708
        %v710 = vpop.f32.mrf.mxu0
        %v711 = vadd.f32 0.0, %v710
        %712 = vdwg.mxu0
        %v717 = vunpack.c.l.b16 %v407
        %v718 = vunpack.c.h.b16 %v407
        %v719 = vunpack.c.l.b16 %v408
        %v720 = vunpack.c.h.b16 %v408
        %v721 = vunpack.c.l.b16 %v409
        %v722 = vunpack.c.h.b16 %v409
        %v723 = vunpack.c.l.b16 %v410
        %v724 = vunpack.c.h.b16 %v410
        %v725 = vpack.c.b16 %v719, %v717
        %v726 = vpack.c.b16 %v720, %v718
        %v727 = vpack.c.b16 %v723, %v721
        %v728 = vpack.c.b16 %v724, %v722
        %v765 = vunpack.c.l.b16 %v411
        %v766 = vunpack.c.h.b16 %v411
        %v767 = vunpack.c.l.b16 %v412
        %v768 = vunpack.c.h.b16 %v412
        %v769 = vunpack.c.l.b16 %v413
        %v770 = vunpack.c.h.b16 %v413
        %v771 = vunpack.c.l.b16 %v414
        %v772 = vunpack.c.h.b16 %v414
        %v773 = vunpack.c.l.b16 %v415
        %v774 = vunpack.c.h.b16 %v415
        %v775 = vunpack.c.l.b16 %v416
        %v776 = vunpack.c.h.b16 %v416
        %v777 = vunpack.c.l.b16 %v417
        %v778 = vunpack.c.h.b16 %v417
        %v779 = vunpack.c.l.b16 %v418
        %v780 = vunpack.c.h.b16 %v418
        %v781 = vunpack.c.l.b16 %v419
        %v782 = vunpack.c.h.b16 %v419
        %v783 = vunpack.c.l.b16 %v420
        %v784 = vunpack.c.h.b16 %v420
        %v785 = vunpack.c.l.b16 %v421
        %v786 = vunpack.c.h.b16 %v421
        %v787 = vunpack.c.l.b16 %v422
        %v788 = vunpack.c.h.b16 %v422
        %v789 = vunpack.c.l.b16 %v423
        %v790 = vunpack.c.h.b16 %v423
        %v791 = vunpack.c.l.b16 %v424
        %v792 = vunpack.c.h.b16 %v424
        %v793 = vunpack.c.l.b16 %v425
        %v794 = vunpack.c.h.b16 %v425
        %v795 = vunpack.c.l.b16 %v426
        %v796 = vunpack.c.h.b16 %v426
        %v797 = vunpack.c.l.b16 %v427
        %v798 = vunpack.c.h.b16 %v427
        %v799 = vunpack.c.l.b16 %v428
        %v800 = vunpack.c.h.b16 %v428
        %v801 = vunpack.c.l.b16 %v429
        %v802 = vunpack.c.h.b16 %v429
        %v803 = vunpack.c.l.b16 %v430
        %v804 = vunpack.c.h.b16 %v430
        %v805 = vunpack.c.l.b16 %v431
        %v806 = vunpack.c.h.b16 %v431
        %v807 = vunpack.c.l.b16 %v432
        %v808 = vunpack.c.h.b16 %v432
        %v809 = vunpack.c.l.b16 %v433
        %v810 = vunpack.c.h.b16 %v433
        %v811 = vunpack.c.l.b16 %v434
        %v812 = vunpack.c.h.b16 %v434
        %v813 = vunpack.c.l.b16 %v435
        %v814 = vunpack.c.h.b16 %v435
        %v815 = vunpack.c.l.b16 %v436
        %v816 = vunpack.c.h.b16 %v436
        %v817 = vunpack.c.l.b16 %v437
        %v818 = vunpack.c.h.b16 %v437
        %v819 = vunpack.c.l.b16 %v438
        %v820 = vunpack.c.h.b16 %v438
        %v821 = vunpack.c.l.b16 %v439
        %v822 = vunpack.c.h.b16 %v439
        %v823 = vunpack.c.l.b16 %v440
        %v824 = vunpack.c.h.b16 %v440
        %v825 = vunpack.c.l.b16 %v441
        %v826 = vunpack.c.h.b16 %v441
        %v827 = vunpack.c.l.b16 %v442
        %v828 = vunpack.c.h.b16 %v442
        %v829 = vpack.c.b16 %v767, %v765
        %v830 = vpack.c.b16 %v768, %v766
        %v831 = vpack.c.b16 %v771, %v769
        %v832 = vpack.c.b16 %v772, %v770
        %v833 = vpack.c.b16 %v775, %v773
        %v834 = vpack.c.b16 %v776, %v774
        %v835 = vpack.c.b16 %v779, %v777
        %v836 = vpack.c.b16 %v780, %v778
        %v837 = vpack.c.b16 %v783, %v781
        %v838 = vpack.c.b16 %v784, %v782
        %v839 = vpack.c.b16 %v787, %v785
        %v840 = vpack.c.b16 %v788, %v786
        %v841 = vpack.c.b16 %v791, %v789
        %v842 = vpack.c.b16 %v792, %v790
        %v843 = vpack.c.b16 %v795, %v793
        %v844 = vpack.c.b16 %v796, %v794
        %v845 = vpack.c.b16 %v799, %v797
        %v846 = vpack.c.b16 %v800, %v798
        %v847 = vpack.c.b16 %v803, %v801
        %v848 = vpack.c.b16 %v804, %v802
        %v849 = vpack.c.b16 %v807, %v805
        %v850 = vpack.c.b16 %v808, %v806
        %v851 = vpack.c.b16 %v811, %v809
        %v852 = vpack.c.b16 %v812, %v810
        %v853 = vpack.c.b16 %v815, %v813
        %v854 = vpack.c.b16 %v816, %v814
        %v855 = vpack.c.b16 %v819, %v817
        %v856 = vpack.c.b16 %v820, %v818
        %v857 = vpack.c.b16 %v823, %v821
        %v858 = vpack.c.b16 %v824, %v822
        %v859 = vpack.c.b16 %v827, %v825
        %v860 = vpack.c.b16 %v828, %v826
        %893 = vmatprep.subr.bf16.mxu0 %v844
        %894 = vmatpush1.bf16.msra.mxu0 %v843
        %895 = vmatprep.subr.bf16.mxu0 %v842
        %896 = vmatpush1.bf16.msra.mxu0 %v841
        %897 = vmatprep.subr.bf16.mxu0 %v840
        %898 = vmatpush1.bf16.msra.mxu0 %v839
        %899 = vmatprep.subr.bf16.mxu0 %v838
        %900 = vmatpush1.bf16.msra.mxu0 %v837
        %901 = vmatprep.subr.bf16.mxu0 %v836
        %902 = vmatpush1.bf16.msra.mxu0 %v835
        %903 = vmatprep.subr.bf16.mxu0 %v834
        %904 = vmatpush1.bf16.msra.mxu0 %v833
        %905 = vmatprep.subr.bf16.mxu0 %v832
        %906 = vmatpush1.bf16.msra.mxu0 %v831
        %907 = vmatprep.subr.bf16.mxu0 %v830
        %908 = vmatpush1.bf16.msra.mxu0 %v829
        %909 = vmatprep.subr.bf16.mxu0 %v860
        %910 = vmatpush2.bf16.msra.mxu0 %v859
        %911 = vmatprep.subr.bf16.mxu0 %v858
        %912 = vmatpush2.bf16.msra.mxu0 %v857
        %913 = vmatprep.subr.bf16.mxu0 %v856
        %914 = vmatpush2.bf16.msra.mxu0 %v855
        %915 = vmatprep.subr.bf16.mxu0 %v854
        %916 = vmatpush2.bf16.msra.mxu0 %v853
        %917 = vmatprep.subr.bf16.mxu0 %v852
        %918 = vmatpush2.bf16.msra.mxu0 %v851
        %919 = vmatprep.subr.bf16.mxu0 %v850
        %920 = vmatpush2.bf16.msra.mxu0 %v849
        %921 = vmatprep.subr.bf16.mxu0 %v848
        %922 = vmatpush2.bf16.msra.mxu0 %v847
        %923 = vmatprep.subr.bf16.mxu0 %v846
        %924 = vmatpush2.bf16.msra.mxu0 %v845
        %925 = vmatprep.mubr.bf16.mxu0 %v726
        %926 = vmatmul.mubr.bf16.gmra.mxu0 %v725
        %v927 = vpop.f32.mrf.mxu0
        %v928 = vadd.f32 %v695, %v927
        %v929 = vpop.f32.mrf.mxu0
        %v930 = vadd.f32 %v697, %v929
        %v931 = vpop.f32.mrf.mxu0
        %v932 = vadd.f32 %v699, %v931
        %v933 = vpop.f32.mrf.mxu0
        %v934 = vadd.f32 %v701, %v933
        %935 = vmatprep.mubr.bf16.mxu0 %v728
        %936 = vmatmul.mubr.bf16.gmra.mxu0 %v727
        %v937 = vpop.f32.mrf.mxu0
        %v938 = vadd.f32 %v705, %v937
        %v939 = vpop.f32.mrf.mxu0
        %v940 = vadd.f32 %v707, %v939
        %v941 = vpop.f32.mrf.mxu0
        %v942 = vadd.f32 %v709, %v941
        %v943 = vpop.f32.mrf.mxu0
        %v944 = vadd.f32 %v711, %v943
        %945 = vdwg.mxu0
        %v946 = vld [vmem:[#allocation2] sm:$0xff]
        %v947 = vld [vmem:[#allocation2 + $0x8] sm:$0xff]
        %v948 = vld [vmem:[#allocation2 + $0x10] sm:$0xff]
        %v949 = vld [vmem:[#allocation2 + $0x18] sm:$0xff]
        %v950 = vld [vmem:[#allocation2 + $0x20] sm:$0x11]
        %s951 = scalar_lea.vmem [#allocation8], 512
        %v952 = vld [vmem:[%s951] sm:$0xff]
        %v953 = vld [vmem:[%s951 + $0x8] sm:$0xff]
        %v954 = vld [vmem:[%s951 + $0x10] sm:$0xff]
        %v955 = vld [vmem:[%s951 + $0x18] sm:$0xff]
        %v956 = vld [vmem:[%s951 + $0x20] sm:$0xff]
        %v957 = vld [vmem:[%s951 + $0x28] sm:$0xff]
        %v958 = vld [vmem:[%s951 + $0x30] sm:$0xff]
        %v959 = vld [vmem:[%s951 + $0x38] sm:$0xff]
        %v960 = vld [vmem:[%s951 + $0x40] sm:$0xff]
        %v961 = vld [vmem:[%s951 + $0x48] sm:$0xff]
        %v962 = vld [vmem:[%s951 + $0x50] sm:$0xff]
        %v963 = vld [vmem:[%s951 + $0x58] sm:$0xff]
        %v964 = vld [vmem:[%s951 + $0x60] sm:$0xff]
        %v965 = vld [vmem:[%s951 + $0x68] sm:$0xff]
        %v966 = vld [vmem:[%s951 + $0x70] sm:$0xff]
        %v967 = vld [vmem:[%s951 + $0x78] sm:$0xff]
        %v968 = vld [vmem:[%s951 + $0x80] sm:$0xff]
        %v969 = vld [vmem:[%s951 + $0x88] sm:$0xff]
        %v970 = vld [vmem:[%s951 + $0x90] sm:$0xff]
        %v971 = vld [vmem:[%s951 + $0x98] sm:$0xff]
        %v972 = vld [vmem:[%s951 + $0xa0] sm:$0xff]
        %v973 = vld [vmem:[%s951 + $0xa8] sm:$0xff]
        %v974 = vld [vmem:[%s951 + $0xb0] sm:$0xff]
        %v975 = vld [vmem:[%s951 + $0xb8] sm:$0xff]
        %v976 = vld [vmem:[%s951 + $0xc0] sm:$0xff]
        %v977 = vld [vmem:[%s951 + $0xc8] sm:$0xff]
        %v978 = vld [vmem:[%s951 + $0xd0] sm:$0xff]
        %v979 = vld [vmem:[%s951 + $0xd8] sm:$0xff]
        %v980 = vld [vmem:[%s951 + $0xe0] sm:$0xff]
        %v981 = vld [vmem:[%s951 + $0xe8] sm:$0xff]
        %v982 = vld [vmem:[%s951 + $0xf0] sm:$0xff]
        %v983 = vld [vmem:[%s951 + $0xf8] sm:$0xff]
        %v989 = vunpack.c.l.b16 %v946
        %v990 = vunpack.c.h.b16 %v946
        %v991 = vunpack.c.l.b16 %v947
        %v992 = vunpack.c.h.b16 %v947
        %v993 = vunpack.c.l.b16 %v948
        %v994 = vunpack.c.h.b16 %v948
        %v995 = vunpack.c.l.b16 %v949
        %v996 = vunpack.c.h.b16 %v949
        %v997 = vunpack.c.l.b16 %v950
        %v998 = vunpack.c.h.b16 %v950
        %v999 = vpack.c.b16 %v991, %v989
        %v1000 = vpack.c.b16 %v992, %v990
        %v1001 = vpack.c.b16 %v995, %v993
        %v1002 = vpack.c.b16 %v996, %v994
        %v1003 = vpack.c.b16 %v997, %v997
        %v1004 = vpack.c.b16 %v998, %v998
        %vm1005 = vsmask.f32 7424
        %v1007 = vshrl.u32 %v999, 16
        %v1009 = vshll.u32 %v999, 16
        %v1011 = vrot.slane %v1009, 1
        %v1012 = vor.u32 %v1007, %v1011
        %v1014 = vshll.u32 %v1001, 16
        %v1016 = vrot.slane %v1014, 1
        %v1017 = vsel %vm1005, %v1012, %v1016
        %v1019 = vshrl.u32 %v1000, 16
        %v1021 = vshll.u32 %v1000, 16
        %v1023 = vrot.slane %v1021, 1
        %v1024 = vor.u32 %v1019, %v1023
        %v1026 = vshll.u32 %v1002, 16
        %v1028 = vrot.slane %v1026, 1
        %v1029 = vsel %vm1005, %v1024, %v1028
        %v1030 = vshrl.u32 %v1001, 16
        %v1032 = vor.u32 %v1030, %v1016
        %v1034 = vshll.u32 %v1003, 16
        %v1036 = vrot.slane %v1034, 1
        %v1037 = vsel %vm1005, %v1032, %v1036
        %v1038 = vshrl.u32 %v1002, 16
        %v1040 = vor.u32 %v1038, %v1028
        %v1042 = vshll.u32 %v1004, 16
        %v1044 = vrot.slane %v1042, 1
        %v1045 = vsel %vm1005, %v1040, %v1044
        %v1082 = vunpack.c.l.b16 %v952
        %v1083 = vunpack.c.h.b16 %v952
        %v1084 = vunpack.c.l.b16 %v953
        %v1085 = vunpack.c.h.b16 %v953
        %v1086 = vunpack.c.l.b16 %v954
        %v1087 = vunpack.c.h.b16 %v954
        %v1088 = vunpack.c.l.b16 %v955
        %v1089 = vunpack.c.h.b16 %v955
        %v1090 = vunpack.c.l.b16 %v956
        %v1091 = vunpack.c.h.b16 %v956
        %v1092 = vunpack.c.l.b16 %v957
        %v1093 = vunpack.c.h.b16 %v957
        %v1094 = vunpack.c.l.b16 %v958
        %v1095 = vunpack.c.h.b16 %v958
        %v1096 = vunpack.c.l.b16 %v959
        %v1097 = vunpack.c.h.b16 %v959
        %v1098 = vunpack.c.l.b16 %v960
        %v1099 = vunpack.c.h.b16 %v960
        %v1100 = vunpack.c.l.b16 %v961
        %v1101 = vunpack.c.h.b16 %v961
        %v1102 = vunpack.c.l.b16 %v962
        %v1103 = vunpack.c.h.b16 %v962
        %v1104 = vunpack.c.l.b16 %v963
        %v1105 = vunpack.c.h.b16 %v963
        %v1106 = vunpack.c.l.b16 %v964
        %v1107 = vunpack.c.h.b16 %v964
        %v1108 = vunpack.c.l.b16 %v965
        %v1109 = vunpack.c.h.b16 %v965
        %v1110 = vunpack.c.l.b16 %v966
        %v1111 = vunpack.c.h.b16 %v966
        %v1112 = vunpack.c.l.b16 %v967
        %v1113 = vunpack.c.h.b16 %v967
        %v1114 = vunpack.c.l.b16 %v968
        %v1115 = vunpack.c.h.b16 %v968
        %v1116 = vunpack.c.l.b16 %v969
        %v1117 = vunpack.c.h.b16 %v969
        %v1118 = vunpack.c.l.b16 %v970
        %v1119 = vunpack.c.h.b16 %v970
        %v1120 = vunpack.c.l.b16 %v971
        %v1121 = vunpack.c.h.b16 %v971
        %v1122 = vunpack.c.l.b16 %v972
        %v1123 = vunpack.c.h.b16 %v972
        %v1124 = vunpack.c.l.b16 %v973
        %v1125 = vunpack.c.h.b16 %v973
        %v1126 = vunpack.c.l.b16 %v974
        %v1127 = vunpack.c.h.b16 %v974
        %v1128 = vunpack.c.l.b16 %v975
        %v1129 = vunpack.c.h.b16 %v975
        %v1130 = vunpack.c.l.b16 %v976
        %v1131 = vunpack.c.h.b16 %v976
        %v1132 = vunpack.c.l.b16 %v977
        %v1133 = vunpack.c.h.b16 %v977
        %v1134 = vunpack.c.l.b16 %v978
        %v1135 = vunpack.c.h.b16 %v978
        %v1136 = vunpack.c.l.b16 %v979
        %v1137 = vunpack.c.h.b16 %v979
        %v1138 = vunpack.c.l.b16 %v980
        %v1139 = vunpack.c.h.b16 %v980
        %v1140 = vunpack.c.l.b16 %v981
        %v1141 = vunpack.c.h.b16 %v981
        %v1142 = vunpack.c.l.b16 %v982
        %v1143 = vunpack.c.h.b16 %v982
        %v1144 = vunpack.c.l.b16 %v983
        %v1145 = vunpack.c.h.b16 %v983
        %v1146 = vpack.c.b16 %v1084, %v1082
        %v1147 = vpack.c.b16 %v1085, %v1083
        %v1148 = vpack.c.b16 %v1088, %v1086
        %v1149 = vpack.c.b16 %v1089, %v1087
        %v1150 = vpack.c.b16 %v1092, %v1090
        %v1151 = vpack.c.b16 %v1093, %v1091
        %v1152 = vpack.c.b16 %v1096, %v1094
        %v1153 = vpack.c.b16 %v1097, %v1095
        %v1154 = vpack.c.b16 %v1100, %v1098
        %v1155 = vpack.c.b16 %v1101, %v1099
        %v1156 = vpack.c.b16 %v1104, %v1102
        %v1157 = vpack.c.b16 %v1105, %v1103
        %v1158 = vpack.c.b16 %v1108, %v1106
        %v1159 = vpack.c.b16 %v1109, %v1107
        %v1160 = vpack.c.b16 %v1112, %v1110
        %v1161 = vpack.c.b16 %v1113, %v1111
        %v1162 = vpack.c.b16 %v1116, %v1114
        %v1163 = vpack.c.b16 %v1117, %v1115
        %v1164 = vpack.c.b16 %v1120, %v1118
        %v1165 = vpack.c.b16 %v1121, %v1119
        %v1166 = vpack.c.b16 %v1124, %v1122
        %v1167 = vpack.c.b16 %v1125, %v1123
        %v1168 = vpack.c.b16 %v1128, %v1126
        %v1169 = vpack.c.b16 %v1129, %v1127
        %v1170 = vpack.c.b16 %v1132, %v1130
        %v1171 = vpack.c.b16 %v1133, %v1131
        %v1172 = vpack.c.b16 %v1136, %v1134
        %v1173 = vpack.c.b16 %v1137, %v1135
        %v1174 = vpack.c.b16 %v1140, %v1138
        %v1175 = vpack.c.b16 %v1141, %v1139
        %v1176 = vpack.c.b16 %v1144, %v1142
        %v1177 = vpack.c.b16 %v1145, %v1143
        %1210 = vmatprep.subr.bf16.mxu0 %v1161
        %1211 = vmatpush1.bf16.msra.mxu0 %v1160
        %1212 = vmatprep.subr.bf16.mxu0 %v1159
        %1213 = vmatpush1.bf16.msra.mxu0 %v1158
        %1214 = vmatprep.subr.bf16.mxu0 %v1157
        %1215 = vmatpush1.bf16.msra.mxu0 %v1156
        %1216 = vmatprep.subr.bf16.mxu0 %v1155
        %1217 = vmatpush1.bf16.msra.mxu0 %v1154
        %1218 = vmatprep.subr.bf16.mxu0 %v1153
        %1219 = vmatpush1.bf16.msra.mxu0 %v1152
        %1220 = vmatprep.subr.bf16.mxu0 %v1151
        %1221 = vmatpush1.bf16.msra.mxu0 %v1150
        %1222 = vmatprep.subr.bf16.mxu0 %v1149
        %1223 = vmatpush1.bf16.msra.mxu0 %v1148
        %1224 = vmatprep.subr.bf16.mxu0 %v1147
        %1225 = vmatpush1.bf16.msra.mxu0 %v1146
        %1226 = vmatprep.subr.bf16.mxu0 %v1177
        %1227 = vmatpush2.bf16.msra.mxu0 %v1176
        %1228 = vmatprep.subr.bf16.mxu0 %v1175
        %1229 = vmatpush2.bf16.msra.mxu0 %v1174
        %1230 = vmatprep.subr.bf16.mxu0 %v1173
        %1231 = vmatpush2.bf16.msra.mxu0 %v1172
        %1232 = vmatprep.subr.bf16.mxu0 %v1171
        %1233 = vmatpush2.bf16.msra.mxu0 %v1170
        %1234 = vmatprep.subr.bf16.mxu0 %v1169
        %1235 = vmatpush2.bf16.msra.mxu0 %v1168
        %1236 = vmatprep.subr.bf16.mxu0 %v1167
        %1237 = vmatpush2.bf16.msra.mxu0 %v1166
        %1238 = vmatprep.subr.bf16.mxu0 %v1165
        %1239 = vmatpush2.bf16.msra.mxu0 %v1164
        %1240 = vmatprep.subr.bf16.mxu0 %v1163
        %1241 = vmatpush2.bf16.msra.mxu0 %v1162
        %1242 = vmatprep.mubr.bf16.mxu0 %v1029
        %1243 = vmatmul.mubr.bf16.gmra.mxu0 %v1017
        %v1244 = vpop.f32.mrf.mxu0
        %v1245 = vadd.f32 0.0, %v1244
        %v1246 = vpop.f32.mrf.mxu0
        %v1247 = vadd.f32 0.0, %v1246
        %v1248 = vpop.f32.mrf.mxu0
        %v1249 = vadd.f32 0.0, %v1248
        %v1250 = vpop.f32.mrf.mxu0
        %v1251 = vadd.f32 0.0, %v1250
        %1252 = vmatprep.mubr.bf16.mxu0 %v1045
        %1253 = vmatmul.mubr.bf16.gmra.mxu0 %v1037
        %v1254 = vpop.f32.mrf.mxu0
        %v1255 = vadd.f32 0.0, %v1254
        %v1256 = vpop.f32.mrf.mxu0
        %v1257 = vadd.f32 0.0, %v1256
        %v1258 = vpop.f32.mrf.mxu0
        %v1259 = vadd.f32 0.0, %v1258
        %v1260 = vpop.f32.mrf.mxu0
        %v1261 = vadd.f32 0.0, %v1260
        %1262 = vdwg.mxu0
        %v1263 = vadd.f32 %v928, %v1245
        %v1264 = vadd.f32 %v930, %v1247
        %v1265 = vadd.f32 %v932, %v1249
        %v1266 = vadd.f32 %v934, %v1251
        %v1267 = vadd.f32 %v938, %v1255
        %v1268 = vadd.f32 %v940, %v1257
        %v1269 = vadd.f32 %v942, %v1259
        %v1270 = vadd.f32 %v944, %v1261
        %v1271 = vld [vmem:[#allocation3] sm:$0xff]
        %v1272 = vld [vmem:[#allocation3 + $0x8] sm:$0xff]
        %v1273 = vld [vmem:[#allocation3 + $0x10] sm:$0xff]
        %v1274 = vld [vmem:[#allocation3 + $0x18] sm:$0xff]
        %v1275 = vld [vmem:[#allocation3 + $0x20] sm:$0x11]
        %s1276 = scalar_lea.vmem [#allocation8], 768
        %v1277 = vld [vmem:[%s1276] sm:$0xff]
        %v1278 = vld [vmem:[%s1276 + $0x8] sm:$0xff]
        %v1279 = vld [vmem:[%s1276 + $0x10] sm:$0xff]
        %v1280 = vld [vmem:[%s1276 + $0x18] sm:$0xff]
        %v1281 = vld [vmem:[%s1276 + $0x20] sm:$0xff]
        %v1282 = vld [vmem:[%s1276 + $0x28] sm:$0xff]
        %v1283 = vld [vmem:[%s1276 + $0x30] sm:$0xff]
        %v1284 = vld [vmem:[%s1276 + $0x38] sm:$0xff]
        %v1285 = vld [vmem:[%s1276 + $0x40] sm:$0xff]
        %v1286 = vld [vmem:[%s1276 + $0x48] sm:$0xff]
        %v1287 = vld [vmem:[%s1276 + $0x50] sm:$0xff]
        %v1288 = vld [vmem:[%s1276 + $0x58] sm:$0xff]
        %v1289 = vld [vmem:[%s1276 + $0x60] sm:$0xff]
        %v1290 = vld [vmem:[%s1276 + $0x68] sm:$0xff]
        %v1291 = vld [vmem:[%s1276 + $0x70] sm:$0xff]
        %v1292 = vld [vmem:[%s1276 + $0x78] sm:$0xff]
        %v1293 = vld [vmem:[%s1276 + $0x80] sm:$0xff]
        %v1294 = vld [vmem:[%s1276 + $0x88] sm:$0xff]
        %v1295 = vld [vmem:[%s1276 + $0x90] sm:$0xff]
        %v1296 = vld [vmem:[%s1276 + $0x98] sm:$0xff]
        %v1297 = vld [vmem:[%s1276 + $0xa0] sm:$0xff]
        %v1298 = vld [vmem:[%s1276 + $0xa8] sm:$0xff]
        %v1299 = vld [vmem:[%s1276 + $0xb0] sm:$0xff]
        %v1300 = vld [vmem:[%s1276 + $0xb8] sm:$0xff]
        %v1301 = vld [vmem:[%s1276 + $0xc0] sm:$0xff]
        %v1302 = vld [vmem:[%s1276 + $0xc8] sm:$0xff]
        %v1303 = vld [vmem:[%s1276 + $0xd0] sm:$0xff]
        %v1304 = vld [vmem:[%s1276 + $0xd8] sm:$0xff]
        %v1305 = vld [vmem:[%s1276 + $0xe0] sm:$0xff]
        %v1306 = vld [vmem:[%s1276 + $0xe8] sm:$0xff]
        %v1307 = vld [vmem:[%s1276 + $0xf0] sm:$0xff]
        %v1308 = vld [vmem:[%s1276 + $0xf8] sm:$0xff]
        %v1314 = vunpack.c.l.b16 %v1271
        %v1315 = vunpack.c.h.b16 %v1271
        %v1316 = vunpack.c.l.b16 %v1272
        %v1317 = vunpack.c.h.b16 %v1272
        %v1318 = vunpack.c.l.b16 %v1273
        %v1319 = vunpack.c.h.b16 %v1273
        %v1320 = vunpack.c.l.b16 %v1274
        %v1321 = vunpack.c.h.b16 %v1274
        %v1322 = vunpack.c.l.b16 %v1275
        %v1323 = vunpack.c.h.b16 %v1275
        %v1324 = vpack.c.b16 %v1316, %v1314
        %v1325 = vpack.c.b16 %v1317, %v1315
        %v1326 = vpack.c.b16 %v1320, %v1318
        %v1327 = vpack.c.b16 %v1321, %v1319
        %v1328 = vpack.c.b16 %v1322, %v1322
        %v1329 = vpack.c.b16 %v1323, %v1323
        %v1331 = vshrl.u32 %v1324, 16
        %v1333 = vshll.u32 %v1324, 16
        %v1335 = vrot.slane %v1333, 1
        %v1336 = vor.u32 %v1331, %v1335
        %v1338 = vshll.u32 %v1326, 16
        %v1340 = vrot.slane %v1338, 1
        %v1341 = vsel %vm1005, %v1336, %v1340
        %v1343 = vshrl.u32 %v1325, 16
        %v1345 = vshll.u32 %v1325, 16
        %v1347 = vrot.slane %v1345, 1
        %v1348 = vor.u32 %v1343, %v1347
        %v1350 = vshll.u32 %v1327, 16
        %v1352 = vrot.slane %v1350, 1
        %v1353 = vsel %vm1005, %v1348, %v1352
        %v1354 = vshrl.u32 %v1326, 16
        %v1356 = vor.u32 %v1354, %v1340
        %v1358 = vshll.u32 %v1328, 16
        %v1360 = vrot.slane %v1358, 1
        %v1361 = vsel %vm1005, %v1356, %v1360
        %v1362 = vshrl.u32 %v1327, 16
        %v1364 = vor.u32 %v1362, %v1352
        %v1366 = vshll.u32 %v1329, 16
        %v1368 = vrot.slane %v1366, 1
        %v1369 = vsel %vm1005, %v1364, %v1368
        %v1406 = vunpack.c.l.b16 %v1277
        %v1407 = vunpack.c.h.b16 %v1277
        %v1408 = vunpack.c.l.b16 %v1278
        %v1409 = vunpack.c.h.b16 %v1278
        %v1410 = vunpack.c.l.b16 %v1279
        %v1411 = vunpack.c.h.b16 %v1279
        %v1412 = vunpack.c.l.b16 %v1280
        %v1413 = vunpack.c.h.b16 %v1280
        %v1414 = vunpack.c.l.b16 %v1281
        %v1415 = vunpack.c.h.b16 %v1281
        %v1416 = vunpack.c.l.b16 %v1282
        %v1417 = vunpack.c.h.b16 %v1282
        %v1418 = vunpack.c.l.b16 %v1283
        %v1419 = vunpack.c.h.b16 %v1283
        %v1420 = vunpack.c.l.b16 %v1284
        %v1421 = vunpack.c.h.b16 %v1284
        %v1422 = vunpack.c.l.b16 %v1285
        %v1423 = vunpack.c.h.b16 %v1285
        %v1424 = vunpack.c.l.b16 %v1286
        %v1425 = vunpack.c.h.b16 %v1286
        %v1426 = vunpack.c.l.b16 %v1287
        %v1427 = vunpack.c.h.b16 %v1287
        %v1428 = vunpack.c.l.b16 %v1288
        %v1429 = vunpack.c.h.b16 %v1288
        %v1430 = vunpack.c.l.b16 %v1289
        %v1431 = vunpack.c.h.b16 %v1289
        %v1432 = vunpack.c.l.b16 %v1290
        %v1433 = vunpack.c.h.b16 %v1290
        %v1434 = vunpack.c.l.b16 %v1291
        %v1435 = vunpack.c.h.b16 %v1291
        %v1436 = vunpack.c.l.b16 %v1292
        %v1437 = vunpack.c.h.b16 %v1292
        %v1438 = vunpack.c.l.b16 %v1293
        %v1439 = vunpack.c.h.b16 %v1293
        %v1440 = vunpack.c.l.b16 %v1294
        %v1441 = vunpack.c.h.b16 %v1294
        %v1442 = vunpack.c.l.b16 %v1295
        %v1443 = vunpack.c.h.b16 %v1295
        %v1444 = vunpack.c.l.b16 %v1296
        %v1445 = vunpack.c.h.b16 %v1296
        %v1446 = vunpack.c.l.b16 %v1297
        %v1447 = vunpack.c.h.b16 %v1297
        %v1448 = vunpack.c.l.b16 %v1298
        %v1449 = vunpack.c.h.b16 %v1298
        %v1450 = vunpack.c.l.b16 %v1299
        %v1451 = vunpack.c.h.b16 %v1299
        %v1452 = vunpack.c.l.b16 %v1300
        %v1453 = vunpack.c.h.b16 %v1300
        %v1454 = vunpack.c.l.b16 %v1301
        %v1455 = vunpack.c.h.b16 %v1301
        %v1456 = vunpack.c.l.b16 %v1302
        %v1457 = vunpack.c.h.b16 %v1302
        %v1458 = vunpack.c.l.b16 %v1303
        %v1459 = vunpack.c.h.b16 %v1303
        %v1460 = vunpack.c.l.b16 %v1304
        %v1461 = vunpack.c.h.b16 %v1304
        %v1462 = vunpack.c.l.b16 %v1305
        %v1463 = vunpack.c.h.b16 %v1305
        %v1464 = vunpack.c.l.b16 %v1306
        %v1465 = vunpack.c.h.b16 %v1306
        %v1466 = vunpack.c.l.b16 %v1307
        %v1467 = vunpack.c.h.b16 %v1307
        %v1468 = vunpack.c.l.b16 %v1308
        %v1469 = vunpack.c.h.b16 %v1308
        %v1470 = vpack.c.b16 %v1408, %v1406
        %v1471 = vpack.c.b16 %v1409, %v1407
        %v1472 = vpack.c.b16 %v1412, %v1410
        %v1473 = vpack.c.b16 %v1413, %v1411
        %v1474 = vpack.c.b16 %v1416, %v1414
        %v1475 = vpack.c.b16 %v1417, %v1415
        %v1476 = vpack.c.b16 %v1420, %v1418
        %v1477 = vpack.c.b16 %v1421, %v1419
        %v1478 = vpack.c.b16 %v1424, %v1422
        %v1479 = vpack.c.b16 %v1425, %v1423
        %v1480 = vpack.c.b16 %v1428, %v1426
        %v1481 = vpack.c.b16 %v1429, %v1427
        %v1482 = vpack.c.b16 %v1432, %v1430
        %v1483 = vpack.c.b16 %v1433, %v1431
        %v1484 = vpack.c.b16 %v1436, %v1434
        %v1485 = vpack.c.b16 %v1437, %v1435
        %v1486 = vpack.c.b16 %v1440, %v1438
        %v1487 = vpack.c.b16 %v1441, %v1439
        %v1488 = vpack.c.b16 %v1444, %v1442
        %v1489 = vpack.c.b16 %v1445, %v1443
        %v1490 = vpack.c.b16 %v1448, %v1446
        %v1491 = vpack.c.b16 %v1449, %v1447
        %v1492 = vpack.c.b16 %v1452, %v1450
        %v1493 = vpack.c.b16 %v1453, %v1451
        %v1494 = vpack.c.b16 %v1456, %v1454
        %v1495 = vpack.c.b16 %v1457, %v1455
        %v1496 = vpack.c.b16 %v1460, %v1458
        %v1497 = vpack.c.b16 %v1461, %v1459
        %v1498 = vpack.c.b16 %v1464, %v1462
        %v1499 = vpack.c.b16 %v1465, %v1463
        %v1500 = vpack.c.b16 %v1468, %v1466
        %v1501 = vpack.c.b16 %v1469, %v1467
        %1534 = vmatprep.subr.bf16.mxu0 %v1485
        %1535 = vmatpush1.bf16.msra.mxu0 %v1484
        %1536 = vmatprep.subr.bf16.mxu0 %v1483
        %1537 = vmatpush1.bf16.msra.mxu0 %v1482
        %1538 = vmatprep.subr.bf16.mxu0 %v1481
        %1539 = vmatpush1.bf16.msra.mxu0 %v1480
        %1540 = vmatprep.subr.bf16.mxu0 %v1479
        %1541 = vmatpush1.bf16.msra.mxu0 %v1478
        %1542 = vmatprep.subr.bf16.mxu0 %v1477
        %1543 = vmatpush1.bf16.msra.mxu0 %v1476
        %1544 = vmatprep.subr.bf16.mxu0 %v1475
        %1545 = vmatpush1.bf16.msra.mxu0 %v1474
        %1546 = vmatprep.subr.bf16.mxu0 %v1473
        %1547 = vmatpush1.bf16.msra.mxu0 %v1472
        %1548 = vmatprep.subr.bf16.mxu0 %v1471
        %1549 = vmatpush1.bf16.msra.mxu0 %v1470
        %1550 = vmatprep.subr.bf16.mxu0 %v1501
        %1551 = vmatpush2.bf16.msra.mxu0 %v1500
        %1552 = vmatprep.subr.bf16.mxu0 %v1499
        %1553 = vmatpush2.bf16.msra.mxu0 %v1498
        %1554 = vmatprep.subr.bf16.mxu0 %v1497
        %1555 = vmatpush2.bf16.msra.mxu0 %v1496
        %1556 = vmatprep.subr.bf16.mxu0 %v1495
        %1557 = vmatpush2.bf16.msra.mxu0 %v1494
        %1558 = vmatprep.subr.bf16.mxu0 %v1493
        %1559 = vmatpush2.bf16.msra.mxu0 %v1492
        %1560 = vmatprep.subr.bf16.mxu0 %v1491
        %1561 = vmatpush2.bf16.msra.mxu0 %v1490
        %1562 = vmatprep.subr.bf16.mxu0 %v1489
        %1563 = vmatpush2.bf16.msra.mxu0 %v1488
        %1564 = vmatprep.subr.bf16.mxu0 %v1487
        %1565 = vmatpush2.bf16.msra.mxu0 %v1486
        %1566 = vmatprep.mubr.bf16.mxu0 %v1353
        %1567 = vmatmul.mubr.bf16.gmra.mxu0 %v1341
        %v1568 = vpop.f32.mrf.mxu0
        %v1569 = vadd.f32 0.0, %v1568
        %v1570 = vpop.f32.mrf.mxu0
        %v1571 = vadd.f32 0.0, %v1570
        %v1572 = vpop.f32.mrf.mxu0
        %v1573 = vadd.f32 0.0, %v1572
        %v1574 = vpop.f32.mrf.mxu0
        %v1575 = vadd.f32 0.0, %v1574
        %1576 = vmatprep.mubr.bf16.mxu0 %v1369
        %1577 = vmatmul.mubr.bf16.gmra.mxu0 %v1361
        %v1578 = vpop.f32.mrf.mxu0
        %v1579 = vadd.f32 0.0, %v1578
        %v1580 = vpop.f32.mrf.mxu0
        %v1581 = vadd.f32 0.0, %v1580
        %v1582 = vpop.f32.mrf.mxu0
        %v1583 = vadd.f32 0.0, %v1582
        %v1584 = vpop.f32.mrf.mxu0
        %v1585 = vadd.f32 0.0, %v1584
        %1586 = vdwg.mxu0
        %v1587 = vadd.f32 %v1263, %v1569
        %v1588 = vadd.f32 %v1264, %v1571
        %v1589 = vadd.f32 %v1265, %v1573
        %v1590 = vadd.f32 %v1266, %v1575
        %v1591 = vadd.f32 %v1267, %v1579
        %v1592 = vadd.f32 %v1268, %v1581
        %v1593 = vadd.f32 %v1269, %v1583
        %v1594 = vadd.f32 %v1270, %v1585
        %v1595 = vld [vmem:[#allocation2] sm:$0xee]
        %s1596 = scalar_lea.vmem [#allocation8], 1024
        %v1597 = vld [vmem:[%s1596] sm:$0xff]
        %v1598 = vld [vmem:[%s1596 + $0x8] sm:$0xff]
        %v1599 = vld [vmem:[%s1596 + $0x10] sm:$0xff]
        %v1600 = vld [vmem:[%s1596 + $0x18] sm:$0xff]
        %v1601 = vld [vmem:[%s1596 + $0x20] sm:$0xff]
        %v1602 = vld [vmem:[%s1596 + $0x28] sm:$0xff]
        %v1603 = vld [vmem:[%s1596 + $0x30] sm:$0xff]
        %v1604 = vld [vmem:[%s1596 + $0x38] sm:$0xff]
        %v1605 = vld [vmem:[%s1596 + $0x40] sm:$0xff]
        %v1606 = vld [vmem:[%s1596 + $0x48] sm:$0xff]
        %v1607 = vld [vmem:[%s1596 + $0x50] sm:$0xff]
        %v1608 = vld [vmem:[%s1596 + $0x58] sm:$0xff]
        %v1609 = vld [vmem:[%s1596 + $0x60] sm:$0xff]
        %v1610 = vld [vmem:[%s1596 + $0x68] sm:$0xff]
        %v1611 = vld [vmem:[%s1596 + $0x70] sm:$0xff]
        %v1612 = vld [vmem:[%s1596 + $0x78] sm:$0xff]
        %v1613 = vld [vmem:[%s1596 + $0x80] sm:$0xff]
        %v1614 = vld [vmem:[%s1596 + $0x88] sm:$0xff]
        %v1615 = vld [vmem:[%s1596 + $0x90] sm:$0xff]
        %v1616 = vld [vmem:[%s1596 + $0x98] sm:$0xff]
        %v1617 = vld [vmem:[%s1596 + $0xa0] sm:$0xff]
        %v1618 = vld [vmem:[%s1596 + $0xa8] sm:$0xff]
        %v1619 = vld [vmem:[%s1596 + $0xb0] sm:$0xff]
        %v1620 = vld [vmem:[%s1596 + $0xb8] sm:$0xff]
        %v1621 = vld [vmem:[%s1596 + $0xc0] sm:$0xff]
        %v1622 = vld [vmem:[%s1596 + $0xc8] sm:$0xff]
        %v1623 = vld [vmem:[%s1596 + $0xd0] sm:$0xff]
        %v1624 = vld [vmem:[%s1596 + $0xd8] sm:$0xff]
        %v1625 = vld [vmem:[%s1596 + $0xe0] sm:$0xff]
        %v1626 = vld [vmem:[%s1596 + $0xe8] sm:$0xff]
        %v1627 = vld [vmem:[%s1596 + $0xf0] sm:$0xff]
        %v1628 = vld [vmem:[%s1596 + $0xf8] sm:$0xff]
        %v1630 = vunpack.c.l.b16 %v1595
        %v1631 = vunpack.c.h.b16 %v1595
        %v1632 = vpack.c.b16 %v991, %v1630
        %v1633 = vpack.c.b16 %v992, %v1631
        %vm1634 = vcmask 1046528
        %v1635 = vrot.slane %v1632, 1
        %v1636 = vrot.slane %v1001, 1
        %v1637 = vsel %vm1634, %v1635, %v1636
        %v1638 = vrot.slane %v1633, 1
        %v1639 = vrot.slane %v1002, 1
        %v1640 = vsel %vm1634, %v1638, %v1639
        %v1641 = vrot.slane %v1003, 1
        %v1642 = vsel %vm1634, %v1636, %v1641
        %v1643 = vrot.slane %v1004, 1
        %v1644 = vsel %vm1634, %v1639, %v1643
        %v1681 = vunpack.c.l.b16 %v1597
        %v1682 = vunpack.c.h.b16 %v1597
        %v1683 = vunpack.c.l.b16 %v1598
        %v1684 = vunpack.c.h.b16 %v1598
        %v1685 = vunpack.c.l.b16 %v1599
        %v1686 = vunpack.c.h.b16 %v1599
        %v1687 = vunpack.c.l.b16 %v1600
        %v1688 = vunpack.c.h.b16 %v1600
        %v1689 = vunpack.c.l.b16 %v1601
        %v1690 = vunpack.c.h.b16 %v1601
        %v1691 = vunpack.c.l.b16 %v1602
        %v1692 = vunpack.c.h.b16 %v1602
        %v1693 = vunpack.c.l.b16 %v1603
        %v1694 = vunpack.c.h.b16 %v1603
        %v1695 = vunpack.c.l.b16 %v1604
        %v1696 = vunpack.c.h.b16 %v1604
        %v1697 = vunpack.c.l.b16 %v1605
        %v1698 = vunpack.c.h.b16 %v1605
        %v1699 = vunpack.c.l.b16 %v1606
        %v1700 = vunpack.c.h.b16 %v1606
        %v1701 = vunpack.c.l.b16 %v1607
        %v1702 = vunpack.c.h.b16 %v1607
        %v1703 = vunpack.c.l.b16 %v1608
        %v1704 = vunpack.c.h.b16 %v1608
        %v1705 = vunpack.c.l.b16 %v1609
        %v1706 = vunpack.c.h.b16 %v1609
        %v1707 = vunpack.c.l.b16 %v1610
        %v1708 = vunpack.c.h.b16 %v1610
        %v1709 = vunpack.c.l.b16 %v1611
        %v1710 = vunpack.c.h.b16 %v1611
        %v1711 = vunpack.c.l.b16 %v1612
        %v1712 = vunpack.c.h.b16 %v1612
        %v1713 = vunpack.c.l.b16 %v1613
        %v1714 = vunpack.c.h.b16 %v1613
        %v1715 = vunpack.c.l.b16 %v1614
        %v1716 = vunpack.c.h.b16 %v1614
        %v1717 = vunpack.c.l.b16 %v1615
        %v1718 = vunpack.c.h.b16 %v1615
        %v1719 = vunpack.c.l.b16 %v1616
        %v1720 = vunpack.c.h.b16 %v1616
        %v1721 = vunpack.c.l.b16 %v1617
        %v1722 = vunpack.c.h.b16 %v1617
        %v1723 = vunpack.c.l.b16 %v1618
        %v1724 = vunpack.c.h.b16 %v1618
        %v1725 = vunpack.c.l.b16 %v1619
        %v1726 = vunpack.c.h.b16 %v1619
        %v1727 = vunpack.c.l.b16 %v1620
        %v1728 = vunpack.c.h.b16 %v1620
        %v1729 = vunpack.c.l.b16 %v1621
        %v1730 = vunpack.c.h.b16 %v1621
        %v1731 = vunpack.c.l.b16 %v1622
        %v1732 = vunpack.c.h.b16 %v1622
        %v1733 = vunpack.c.l.b16 %v1623
        %v1734 = vunpack.c.h.b16 %v1623
        %v1735 = vunpack.c.l.b16 %v1624
        %v1736 = vunpack.c.h.b16 %v1624
        %v1737 = vunpack.c.l.b16 %v1625
        %v1738 = vunpack.c.h.b16 %v1625
        %v1739 = vunpack.c.l.b16 %v1626
        %v1740 = vunpack.c.h.b16 %v1626
        %v1741 = vunpack.c.l.b16 %v1627
        %v1742 = vunpack.c.h.b16 %v1627
        %v1743 = vunpack.c.l.b16 %v1628
        %v1744 = vunpack.c.h.b16 %v1628
        %v1745 = vpack.c.b16 %v1683, %v1681
        %v1746 = vpack.c.b16 %v1684, %v1682
        %v1747 = vpack.c.b16 %v1687, %v1685
        %v1748 = vpack.c.b16 %v1688, %v1686
        %v1749 = vpack.c.b16 %v1691, %v1689
        %v1750 = vpack.c.b16 %v1692, %v1690
        %v1751 = vpack.c.b16 %v1695, %v1693
        %v1752 = vpack.c.b16 %v1696, %v1694
        %v1753 = vpack.c.b16 %v1699, %v1697
        %v1754 = vpack.c.b16 %v1700, %v1698
        %v1755 = vpack.c.b16 %v1703, %v1701
        %v1756 = vpack.c.b16 %v1704, %v1702
        %v1757 = vpack.c.b16 %v1707, %v1705
        %v1758 = vpack.c.b16 %v1708, %v1706
        %v1759 = vpack.c.b16 %v1711, %v1709
        %v1760 = vpack.c.b16 %v1712, %v1710
        %v1761 = vpack.c.b16 %v1715, %v1713
        %v1762 = vpack.c.b16 %v1716, %v1714
        %v1763 = vpack.c.b16 %v1719, %v1717
        %v1764 = vpack.c.b16 %v1720, %v1718
        %v1765 = vpack.c.b16 %v1723, %v1721
        %v1766 = vpack.c.b16 %v1724, %v1722
        %v1767 = vpack.c.b16 %v1727, %v1725
        %v1768 = vpack.c.b16 %v1728, %v1726
        %v1769 = vpack.c.b16 %v1731, %v1729
        %v1770 = vpack.c.b16 %v1732, %v1730
        %v1771 = vpack.c.b16 %v1735, %v1733
        %v1772 = vpack.c.b16 %v1736, %v1734
        %v1773 = vpack.c.b16 %v1739, %v1737
        %v1774 = vpack.c.b16 %v1740, %v1738
        %v1775 = vpack.c.b16 %v1743, %v1741
        %v1776 = vpack.c.b16 %v1744, %v1742
        %1809 = vmatprep.subr.bf16.mxu0 %v1760
        %1810 = vmatpush1.bf16.msra.mxu0 %v1759
        %1811 = vmatprep.subr.bf16.mxu0 %v1758
        %1812 = vmatpush1.bf16.msra.mxu0 %v1757
        %1813 = vmatprep.subr.bf16.mxu0 %v1756
        %1814 = vmatpush1.bf16.msra.mxu0 %v1755
        %1815 = vmatprep.subr.bf16.mxu0 %v1754
        %1816 = vmatpush1.bf16.msra.mxu0 %v1753
        %1817 = vmatprep.subr.bf16.mxu0 %v1752
        %1818 = vmatpush1.bf16.msra.mxu0 %v1751
        %1819 = vmatprep.subr.bf16.mxu0 %v1750
        %1820 = vmatpush1.bf16.msra.mxu0 %v1749
        %1821 = vmatprep.subr.bf16.mxu0 %v1748
        %1822 = vmatpush1.bf16.msra.mxu0 %v1747
        %1823 = vmatprep.subr.bf16.mxu0 %v1746
        %1824 = vmatpush1.bf16.msra.mxu0 %v1745
        %1825 = vmatprep.subr.bf16.mxu0 %v1776
        %1826 = vmatpush2.bf16.msra.mxu0 %v1775
        %1827 = vmatprep.subr.bf16.mxu0 %v1774
        %1828 = vmatpush2.bf16.msra.mxu0 %v1773
        %1829 = vmatprep.subr.bf16.mxu0 %v1772
        %1830 = vmatpush2.bf16.msra.mxu0 %v1771
        %1831 = vmatprep.subr.bf16.mxu0 %v1770
        %1832 = vmatpush2.bf16.msra.mxu0 %v1769
        %1833 = vmatprep.subr.bf16.mxu0 %v1768
        %1834 = vmatpush2.bf16.msra.mxu0 %v1767
        %1835 = vmatprep.subr.bf16.mxu0 %v1766
        %1836 = vmatpush2.bf16.msra.mxu0 %v1765
        %1837 = vmatprep.subr.bf16.mxu0 %v1764
        %1838 = vmatpush2.bf16.msra.mxu0 %v1763
        %1839 = vmatprep.subr.bf16.mxu0 %v1762
        %1840 = vmatpush2.bf16.msra.mxu0 %v1761
        %1841 = vmatprep.mubr.bf16.mxu0 %v1640
        %1842 = vmatmul.mubr.bf16.gmra.mxu0 %v1637
        %v1843 = vpop.f32.mrf.mxu0
        %v1844 = vadd.f32 0.0, %v1843
        %v1845 = vpop.f32.mrf.mxu0
        %v1846 = vadd.f32 0.0, %v1845
        %v1847 = vpop.f32.mrf.mxu0
        %v1848 = vadd.f32 0.0, %v1847
        %v1849 = vpop.f32.mrf.mxu0
        %v1850 = vadd.f32 0.0, %v1849
        %1851 = vmatprep.mubr.bf16.mxu0 %v1644
        %1852 = vmatmul.mubr.bf16.gmra.mxu0 %v1642
        %v1853 = vpop.f32.mrf.mxu0
        %v1854 = vadd.f32 0.0, %v1853
        %v1855 = vpop.f32.mrf.mxu0
        %v1856 = vadd.f32 0.0, %v1855
        %v1857 = vpop.f32.mrf.mxu0
        %v1858 = vadd.f32 0.0, %v1857
        %v1859 = vpop.f32.mrf.mxu0
        %v1860 = vadd.f32 0.0, %v1859
        %1861 = vdwg.mxu0
        %v1862 = vadd.f32 %v1587, %v1844
        %v1863 = vadd.f32 %v1588, %v1846
        %v1864 = vadd.f32 %v1589, %v1848
        %v1865 = vadd.f32 %v1590, %v1850
        %v1866 = vadd.f32 %v1591, %v1854
        %v1867 = vadd.f32 %v1592, %v1856
        %v1868 = vadd.f32 %v1593, %v1858
        %v1869 = vadd.f32 %v1594, %v1860
        %v1870 = vld [vmem:[#allocation3] sm:$0xee]
        %s1871 = scalar_lea.vmem [#allocation8], 1280
        %v1872 = vld [vmem:[%s1871] sm:$0xff]
        %v1873 = vld [vmem:[%s1871 + $0x8] sm:$0xff]
        %v1874 = vld [vmem:[%s1871 + $0x10] sm:$0xff]
        %v1875 = vld [vmem:[%s1871 + $0x18] sm:$0xff]
        %v1876 = vld [vmem:[%s1871 + $0x20] sm:$0xff]
        %v1877 = vld [vmem:[%s1871 + $0x28] sm:$0xff]
        %v1878 = vld [vmem:[%s1871 + $0x30] sm:$0xff]
        %v1879 = vld [vmem:[%s1871 + $0x38] sm:$0xff]
        %v1880 = vld [vmem:[%s1871 + $0x40] sm:$0xff]
        %v1881 = vld [vmem:[%s1871 + $0x48] sm:$0xff]
        %v1882 = vld [vmem:[%s1871 + $0x50] sm:$0xff]
        %v1883 = vld [vmem:[%s1871 + $0x58] sm:$0xff]
        %v1884 = vld [vmem:[%s1871 + $0x60] sm:$0xff]
        %v1885 = vld [vmem:[%s1871 + $0x68] sm:$0xff]
        %v1886 = vld [vmem:[%s1871 + $0x70] sm:$0xff]
        %v1887 = vld [vmem:[%s1871 + $0x78] sm:$0xff]
        %v1888 = vld [vmem:[%s1871 + $0x80] sm:$0xff]
        %v1889 = vld [vmem:[%s1871 + $0x88] sm:$0xff]
        %v1890 = vld [vmem:[%s1871 + $0x90] sm:$0xff]
        %v1891 = vld [vmem:[%s1871 + $0x98] sm:$0xff]
        %v1892 = vld [vmem:[%s1871 + $0xa0] sm:$0xff]
        %v1893 = vld [vmem:[%s1871 + $0xa8] sm:$0xff]
        %v1894 = vld [vmem:[%s1871 + $0xb0] sm:$0xff]
        %v1895 = vld [vmem:[%s1871 + $0xb8] sm:$0xff]
        %v1896 = vld [vmem:[%s1871 + $0xc0] sm:$0xff]
        %v1897 = vld [vmem:[%s1871 + $0xc8] sm:$0xff]
        %v1898 = vld [vmem:[%s1871 + $0xd0] sm:$0xff]
        %v1899 = vld [vmem:[%s1871 + $0xd8] sm:$0xff]
        %v1900 = vld [vmem:[%s1871 + $0xe0] sm:$0xff]
        %v1901 = vld [vmem:[%s1871 + $0xe8] sm:$0xff]
        %v1902 = vld [vmem:[%s1871 + $0xf0] sm:$0xff]
        %v1903 = vld [vmem:[%s1871 + $0xf8] sm:$0xff]
        %v1905 = vunpack.c.l.b16 %v1870
        %v1906 = vunpack.c.h.b16 %v1870
        %v1907 = vpack.c.b16 %v1316, %v1905
        %v1908 = vpack.c.b16 %v1317, %v1906
        %v1909 = vrot.slane %v1907, 1
        %v1910 = vrot.slane %v1326, 1
        %v1911 = vsel %vm1634, %v1909, %v1910
        %v1912 = vrot.slane %v1908, 1
        %v1913 = vrot.slane %v1327, 1
        %v1914 = vsel %vm1634, %v1912, %v1913
        %v1915 = vrot.slane %v1328, 1
        %v1916 = vsel %vm1634, %v1910, %v1915
        %v1917 = vrot.slane %v1329, 1
        %v1918 = vsel %vm1634, %v1913, %v1917
        %v1955 = vunpack.c.l.b16 %v1872
        %v1956 = vunpack.c.h.b16 %v1872
        %v1957 = vunpack.c.l.b16 %v1873
        %v1958 = vunpack.c.h.b16 %v1873
        %v1959 = vunpack.c.l.b16 %v1874
        %v1960 = vunpack.c.h.b16 %v1874
        %v1961 = vunpack.c.l.b16 %v1875
        %v1962 = vunpack.c.h.b16 %v1875
        %v1963 = vunpack.c.l.b16 %v1876
        %v1964 = vunpack.c.h.b16 %v1876
        %v1965 = vunpack.c.l.b16 %v1877
        %v1966 = vunpack.c.h.b16 %v1877
        %v1967 = vunpack.c.l.b16 %v1878
        %v1968 = vunpack.c.h.b16 %v1878
        %v1969 = vunpack.c.l.b16 %v1879
        %v1970 = vunpack.c.h.b16 %v1879
        %v1971 = vunpack.c.l.b16 %v1880
        %v1972 = vunpack.c.h.b16 %v1880
        %v1973 = vunpack.c.l.b16 %v1881
        %v1974 = vunpack.c.h.b16 %v1881
        %v1975 = vunpack.c.l.b16 %v1882
        %v1976 = vunpack.c.h.b16 %v1882
        %v1977 = vunpack.c.l.b16 %v1883
        %v1978 = vunpack.c.h.b16 %v1883
        %v1979 = vunpack.c.l.b16 %v1884
        %v1980 = vunpack.c.h.b16 %v1884
        %v1981 = vunpack.c.l.b16 %v1885
        %v1982 = vunpack.c.h.b16 %v1885
        %v1983 = vunpack.c.l.b16 %v1886
        %v1984 = vunpack.c.h.b16 %v1886
        %v1985 = vunpack.c.l.b16 %v1887
        %v1986 = vunpack.c.h.b16 %v1887
        %v1987 = vunpack.c.l.b16 %v1888
        %v1988 = vunpack.c.h.b16 %v1888
        %v1989 = vunpack.c.l.b16 %v1889
        %v1990 = vunpack.c.h.b16 %v1889
        %v1991 = vunpack.c.l.b16 %v1890
        %v1992 = vunpack.c.h.b16 %v1890
        %v1993 = vunpack.c.l.b16 %v1891
        %v1994 = vunpack.c.h.b16 %v1891
        %v1995 = vunpack.c.l.b16 %v1892
        %v1996 = vunpack.c.h.b16 %v1892
        %v1997 = vunpack.c.l.b16 %v1893
        %v1998 = vunpack.c.h.b16 %v1893
        %v1999 = vunpack.c.l.b16 %v1894
        %v2000 = vunpack.c.h.b16 %v1894
        %v2001 = vunpack.c.l.b16 %v1895
        %v2002 = vunpack.c.h.b16 %v1895
        %v2003 = vunpack.c.l.b16 %v1896
        %v2004 = vunpack.c.h.b16 %v1896
        %v2005 = vunpack.c.l.b16 %v1897
        %v2006 = vunpack.c.h.b16 %v1897
        %v2007 = vunpack.c.l.b16 %v1898
        %v2008 = vunpack.c.h.b16 %v1898
        %v2009 = vunpack.c.l.b16 %v1899
        %v2010 = vunpack.c.h.b16 %v1899
        %v2011 = vunpack.c.l.b16 %v1900
        %v2012 = vunpack.c.h.b16 %v1900
        %v2013 = vunpack.c.l.b16 %v1901
        %v2014 = vunpack.c.h.b16 %v1901
        %v2015 = vunpack.c.l.b16 %v1902
        %v2016 = vunpack.c.h.b16 %v1902
        %v2017 = vunpack.c.l.b16 %v1903
        %v2018 = vunpack.c.h.b16 %v1903
        %v2019 = vpack.c.b16 %v1957, %v1955
        %v2020 = vpack.c.b16 %v1958, %v1956
        %v2021 = vpack.c.b16 %v1961, %v1959
        %v2022 = vpack.c.b16 %v1962, %v1960
        %v2023 = vpack.c.b16 %v1965, %v1963
        %v2024 = vpack.c.b16 %v1966, %v1964
        %v2025 = vpack.c.b16 %v1969, %v1967
        %v2026 = vpack.c.b16 %v1970, %v1968
        %v2027 = vpack.c.b16 %v1973, %v1971
        %v2028 = vpack.c.b16 %v1974, %v1972
        %v2029 = vpack.c.b16 %v1977, %v1975
        %v2030 = vpack.c.b16 %v1978, %v1976
        %v2031 = vpack.c.b16 %v1981, %v1979
        %v2032 = vpack.c.b16 %v1982, %v1980
        %v2033 = vpack.c.b16 %v1985, %v1983
        %v2034 = vpack.c.b16 %v1986, %v1984
        %v2035 = vpack.c.b16 %v1989, %v1987
        %v2036 = vpack.c.b16 %v1990, %v1988
        %v2037 = vpack.c.b16 %v1993, %v1991
        %v2038 = vpack.c.b16 %v1994, %v1992
        %v2039 = vpack.c.b16 %v1997, %v1995
        %v2040 = vpack.c.b16 %v1998, %v1996
        %v2041 = vpack.c.b16 %v2001, %v1999
        %v2042 = vpack.c.b16 %v2002, %v2000
        %v2043 = vpack.c.b16 %v2005, %v2003
        %v2044 = vpack.c.b16 %v2006, %v2004
        %v2045 = vpack.c.b16 %v2009, %v2007
        %v2046 = vpack.c.b16 %v2010, %v2008
        %v2047 = vpack.c.b16 %v2013, %v2011
        %v2048 = vpack.c.b16 %v2014, %v2012
        %v2049 = vpack.c.b16 %v2017, %v2015
        %v2050 = vpack.c.b16 %v2018, %v2016
        %2083 = vmatprep.subr.bf16.mxu0 %v2034
        %2084 = vmatpush1.bf16.msra.mxu0 %v2033
        %2085 = vmatprep.subr.bf16.mxu0 %v2032
        %2086 = vmatpush1.bf16.msra.mxu0 %v2031
        %2087 = vmatprep.subr.bf16.mxu0 %v2030
        %2088 = vmatpush1.bf16.msra.mxu0 %v2029
        %2089 = vmatprep.subr.bf16.mxu0 %v2028
        %2090 = vmatpush1.bf16.msra.mxu0 %v2027
        %2091 = vmatprep.subr.bf16.mxu0 %v2026
        %2092 = vmatpush1.bf16.msra.mxu0 %v2025
        %2093 = vmatprep.subr.bf16.mxu0 %v2024
        %2094 = vmatpush1.bf16.msra.mxu0 %v2023
        %2095 = vmatprep.subr.bf16.mxu0 %v2022
        %2096 = vmatpush1.bf16.msra.mxu0 %v2021
        %2097 = vmatprep.subr.bf16.mxu0 %v2020
        %2098 = vmatpush1.bf16.msra.mxu0 %v2019
        %2099 = vmatprep.subr.bf16.mxu0 %v2050
        %2100 = vmatpush2.bf16.msra.mxu0 %v2049
        %2101 = vmatprep.subr.bf16.mxu0 %v2048
        %2102 = vmatpush2.bf16.msra.mxu0 %v2047
        %2103 = vmatprep.subr.bf16.mxu0 %v2046
        %2104 = vmatpush2.bf16.msra.mxu0 %v2045
        %2105 = vmatprep.subr.bf16.mxu0 %v2044
        %2106 = vmatpush2.bf16.msra.mxu0 %v2043
        %2107 = vmatprep.subr.bf16.mxu0 %v2042
        %2108 = vmatpush2.bf16.msra.mxu0 %v2041
        %2109 = vmatprep.subr.bf16.mxu0 %v2040
        %2110 = vmatpush2.bf16.msra.mxu0 %v2039
        %2111 = vmatprep.subr.bf16.mxu0 %v2038
        %2112 = vmatpush2.bf16.msra.mxu0 %v2037
        %2113 = vmatprep.subr.bf16.mxu0 %v2036
        %2114 = vmatpush2.bf16.msra.mxu0 %v2035
        %2115 = vmatprep.mubr.bf16.mxu0 %v1914
        %2116 = vmatmul.mubr.bf16.gmra.mxu0 %v1911
        %v2117 = vpop.f32.mrf.mxu0
        %v2118 = vadd.f32 0.0, %v2117
        %v2119 = vpop.f32.mrf.mxu0
        %v2120 = vadd.f32 0.0, %v2119
        %v2121 = vpop.f32.mrf.mxu0
        %v2122 = vadd.f32 0.0, %v2121
        %v2123 = vpop.f32.mrf.mxu0
        %v2124 = vadd.f32 0.0, %v2123
        %2125 = vmatprep.mubr.bf16.mxu0 %v1918
        %2126 = vmatmul.mubr.bf16.gmra.mxu0 %v1916
        %v2127 = vpop.f32.mrf.mxu0
        %v2128 = vadd.f32 0.0, %v2127
        %v2129 = vpop.f32.mrf.mxu0
        %v2130 = vadd.f32 0.0, %v2129
        %v2131 = vpop.f32.mrf.mxu0
        %v2132 = vadd.f32 0.0, %v2131
        %v2133 = vpop.f32.mrf.mxu0
        %v2134 = vadd.f32 0.0, %v2133
        %2135 = vdwg.mxu0
        %v2136 = vadd.f32 %v1862, %v2118
        %v2137 = vadd.f32 %v1863, %v2120
        %v2138 = vadd.f32 %v1864, %v2122
        %v2139 = vadd.f32 %v1865, %v2124
        %v2140 = vadd.f32 %v1866, %v2128
        %v2141 = vadd.f32 %v1867, %v2130
        %v2142 = vadd.f32 %v1868, %v2132
        %v2143 = vadd.f32 %v1869, %v2134
        %v2144 = vld [vmem:[#allocation2 + $0x20] sm:$0x33]
        %s2145 = scalar_lea.vmem [#allocation8], 1536
        %v2146 = vld [vmem:[%s2145] sm:$0xff]
        %v2147 = vld [vmem:[%s2145 + $0x8] sm:$0xff]
        %v2148 = vld [vmem:[%s2145 + $0x10] sm:$0xff]
        %v2149 = vld [vmem:[%s2145 + $0x18] sm:$0xff]
        %v2150 = vld [vmem:[%s2145 + $0x20] sm:$0xff]
        %v2151 = vld [vmem:[%s2145 + $0x28] sm:$0xff]
        %v2152 = vld [vmem:[%s2145 + $0x30] sm:$0xff]
        %v2153 = vld [vmem:[%s2145 + $0x38] sm:$0xff]
        %v2154 = vld [vmem:[%s2145 + $0x40] sm:$0xff]
        %v2155 = vld [vmem:[%s2145 + $0x48] sm:$0xff]
        %v2156 = vld [vmem:[%s2145 + $0x50] sm:$0xff]
        %v2157 = vld [vmem:[%s2145 + $0x58] sm:$0xff]
        %v2158 = vld [vmem:[%s2145 + $0x60] sm:$0xff]
        %v2159 = vld [vmem:[%s2145 + $0x68] sm:$0xff]
        %v2160 = vld [vmem:[%s2145 + $0x70] sm:$0xff]
        %v2161 = vld [vmem:[%s2145 + $0x78] sm:$0xff]
        %v2162 = vld [vmem:[%s2145 + $0x80] sm:$0xff]
        %v2163 = vld [vmem:[%s2145 + $0x88] sm:$0xff]
        %v2164 = vld [vmem:[%s2145 + $0x90] sm:$0xff]
        %v2165 = vld [vmem:[%s2145 + $0x98] sm:$0xff]
        %v2166 = vld [vmem:[%s2145 + $0xa0] sm:$0xff]
        %v2167 = vld [vmem:[%s2145 + $0xa8] sm:$0xff]
        %v2168 = vld [vmem:[%s2145 + $0xb0] sm:$0xff]
        %v2169 = vld [vmem:[%s2145 + $0xb8] sm:$0xff]
        %v2170 = vld [vmem:[%s2145 + $0xc0] sm:$0xff]
        %v2171 = vld [vmem:[%s2145 + $0xc8] sm:$0xff]
        %v2172 = vld [vmem:[%s2145 + $0xd0] sm:$0xff]
        %v2173 = vld [vmem:[%s2145 + $0xd8] sm:$0xff]
        %v2174 = vld [vmem:[%s2145 + $0xe0] sm:$0xff]
        %v2175 = vld [vmem:[%s2145 + $0xe8] sm:$0xff]
        %v2176 = vld [vmem:[%s2145 + $0xf0] sm:$0xff]
        %v2177 = vld [vmem:[%s2145 + $0xf8] sm:$0xff]
        %v2179 = vunpack.c.l.b16 %v2144
        %v2180 = vunpack.c.h.b16 %v2144
        %v2181 = vpack.c.b16 %v2179, %v2179
        %v2182 = vpack.c.b16 %v2180, %v2180
        %vm2183 = vsmask.f32 6400
        %v2185 = vshrl.u32 %v1632, 16
        %v2187 = vrot.slane %v2185, 1
        %v2188 = vshll.u32 %v1632, 16
        %v2190 = vrot.slane %v2188, 2
        %v2191 = vor.u32 %v2187, %v2190
        %v2192 = vrot.slane %v1030, 1
        %v2193 = vrot.slane %v1014, 2
        %v2194 = vor.u32 %v2192, %v2193
        %v2195 = vsel %vm2183, %v2191, %v2194
        %v2197 = vshrl.u32 %v1633, 16
        %v2199 = vrot.slane %v2197, 1
        %v2200 = vshll.u32 %v1633, 16
        %v2202 = vrot.slane %v2200, 2
        %v2203 = vor.u32 %v2199, %v2202
        %v2204 = vrot.slane %v1038, 1
        %v2205 = vrot.slane %v1026, 2
        %v2206 = vor.u32 %v2204, %v2205
        %v2207 = vsel %vm2183, %v2203, %v2206
        %v2209 = vshrl.u32 %v2181, 16
        %v2211 = vrot.slane %v2209, 1
        %v2212 = vshll.u32 %v2181, 16
        %v2214 = vrot.slane %v2212, 2
        %v2215 = vor.u32 %v2211, %v2214
        %v2216 = vsel %vm2183, %v2194, %v2215
        %v2218 = vshrl.u32 %v2182, 16
        %v2220 = vrot.slane %v2218, 1
        %v2221 = vshll.u32 %v2182, 16
        %v2223 = vrot.slane %v2221, 2
        %v2224 = vor.u32 %v2220, %v2223
        %v2225 = vsel %vm2183, %v2206, %v2224
        %v2262 = vunpack.c.l.b16 %v2146
        %v2263 = vunpack.c.h.b16 %v2146
        %v2264 = vunpack.c.l.b16 %v2147
        %v2265 = vunpack.c.h.b16 %v2147
        %v2266 = vunpack.c.l.b16 %v2148
        %v2267 = vunpack.c.h.b16 %v2148
        %v2268 = vunpack.c.l.b16 %v2149
        %v2269 = vunpack.c.h.b16 %v2149
        %v2270 = vunpack.c.l.b16 %v2150
        %v2271 = vunpack.c.h.b16 %v2150
        %v2272 = vunpack.c.l.b16 %v2151
        %v2273 = vunpack.c.h.b16 %v2151
        %v2274 = vunpack.c.l.b16 %v2152
        %v2275 = vunpack.c.h.b16 %v2152
        %v2276 = vunpack.c.l.b16 %v2153
        %v2277 = vunpack.c.h.b16 %v2153
        %v2278 = vunpack.c.l.b16 %v2154
        %v2279 = vunpack.c.h.b16 %v2154
        %v2280 = vunpack.c.l.b16 %v2155
        %v2281 = vunpack.c.h.b16 %v2155
        %v2282 = vunpack.c.l.b16 %v2156
        %v2283 = vunpack.c.h.b16 %v2156
        %v2284 = vunpack.c.l.b16 %v2157
        %v2285 = vunpack.c.h.b16 %v2157
        %v2286 = vunpack.c.l.b16 %v2158
        %v2287 = vunpack.c.h.b16 %v2158
        %v2288 = vunpack.c.l.b16 %v2159
        %v2289 = vunpack.c.h.b16 %v2159
        %v2290 = vunpack.c.l.b16 %v2160
        %v2291 = vunpack.c.h.b16 %v2160
        %v2292 = vunpack.c.l.b16 %v2161
        %v2293 = vunpack.c.h.b16 %v2161
        %v2294 = vunpack.c.l.b16 %v2162
        %v2295 = vunpack.c.h.b16 %v2162
        %v2296 = vunpack.c.l.b16 %v2163
        %v2297 = vunpack.c.h.b16 %v2163
        %v2298 = vunpack.c.l.b16 %v2164
        %v2299 = vunpack.c.h.b16 %v2164
        %v2300 = vunpack.c.l.b16 %v2165
        %v2301 = vunpack.c.h.b16 %v2165
        %v2302 = vunpack.c.l.b16 %v2166
        %v2303 = vunpack.c.h.b16 %v2166
        %v2304 = vunpack.c.l.b16 %v2167
        %v2305 = vunpack.c.h.b16 %v2167
        %v2306 = vunpack.c.l.b16 %v2168
        %v2307 = vunpack.c.h.b16 %v2168
        %v2308 = vunpack.c.l.b16 %v2169
        %v2309 = vunpack.c.h.b16 %v2169
        %v2310 = vunpack.c.l.b16 %v2170
        %v2311 = vunpack.c.h.b16 %v2170
        %v2312 = vunpack.c.l.b16 %v2171
        %v2313 = vunpack.c.h.b16 %v2171
        %v2314 = vunpack.c.l.b16 %v2172
        %v2315 = vunpack.c.h.b16 %v2172
        %v2316 = vunpack.c.l.b16 %v2173
        %v2317 = vunpack.c.h.b16 %v2173
        %v2318 = vunpack.c.l.b16 %v2174
        %v2319 = vunpack.c.h.b16 %v2174
        %v2320 = vunpack.c.l.b16 %v2175
        %v2321 = vunpack.c.h.b16 %v2175
        %v2322 = vunpack.c.l.b16 %v2176
        %v2323 = vunpack.c.h.b16 %v2176
        %v2324 = vunpack.c.l.b16 %v2177
        %v2325 = vunpack.c.h.b16 %v2177
        %v2326 = vpack.c.b16 %v2264, %v2262
        %v2327 = vpack.c.b16 %v2265, %v2263
        %v2328 = vpack.c.b16 %v2268, %v2266
        %v2329 = vpack.c.b16 %v2269, %v2267
        %v2330 = vpack.c.b16 %v2272, %v2270
        %v2331 = vpack.c.b16 %v2273, %v2271
        %v2332 = vpack.c.b16 %v2276, %v2274
        %v2333 = vpack.c.b16 %v2277, %v2275
        %v2334 = vpack.c.b16 %v2280, %v2278
        %v2335 = vpack.c.b16 %v2281, %v2279
        %v2336 = vpack.c.b16 %v2284, %v2282
        %v2337 = vpack.c.b16 %v2285, %v2283
        %v2338 = vpack.c.b16 %v2288, %v2286
        %v2339 = vpack.c.b16 %v2289, %v2287
        %v2340 = vpack.c.b16 %v2292, %v2290
        %v2341 = vpack.c.b16 %v2293, %v2291
        %v2342 = vpack.c.b16 %v2296, %v2294
        %v2343 = vpack.c.b16 %v2297, %v2295
        %v2344 = vpack.c.b16 %v2300, %v2298
        %v2345 = vpack.c.b16 %v2301, %v2299
        %v2346 = vpack.c.b16 %v2304, %v2302
        %v2347 = vpack.c.b16 %v2305, %v2303
        %v2348 = vpack.c.b16 %v2308, %v2306
        %v2349 = vpack.c.b16 %v2309, %v2307
        %v2350 = vpack.c.b16 %v2312, %v2310
        %v2351 = vpack.c.b16 %v2313, %v2311
        %v2352 = vpack.c.b16 %v2316, %v2314
        %v2353 = vpack.c.b16 %v2317, %v2315
        %v2354 = vpack.c.b16 %v2320, %v2318
        %v2355 = vpack.c.b16 %v2321, %v2319
        %v2356 = vpack.c.b16 %v2324, %v2322
        %v2357 = vpack.c.b16 %v2325, %v2323
        %2390 = vmatprep.subr.bf16.mxu0 %v2341
        %2391 = vmatpush1.bf16.msra.mxu0 %v2340
        %2392 = vmatprep.subr.bf16.mxu0 %v2339
        %2393 = vmatpush1.bf16.msra.mxu0 %v2338
        %2394 = vmatprep.subr.bf16.mxu0 %v2337
        %2395 = vmatpush1.bf16.msra.mxu0 %v2336
        %2396 = vmatprep.subr.bf16.mxu0 %v2335
        %2397 = vmatpush1.bf16.msra.mxu0 %v2334
        %2398 = vmatprep.subr.bf16.mxu0 %v2333
        %2399 = vmatpush1.bf16.msra.mxu0 %v2332
        %2400 = vmatprep.subr.bf16.mxu0 %v2331
        %2401 = vmatpush1.bf16.msra.mxu0 %v2330
        %2402 = vmatprep.subr.bf16.mxu0 %v2329
        %2403 = vmatpush1.bf16.msra.mxu0 %v2328
        %2404 = vmatprep.subr.bf16.mxu0 %v2327
        %2405 = vmatpush1.bf16.msra.mxu0 %v2326
        %2406 = vmatprep.subr.bf16.mxu0 %v2357
        %2407 = vmatpush2.bf16.msra.mxu0 %v2356
        %2408 = vmatprep.subr.bf16.mxu0 %v2355
        %2409 = vmatpush2.bf16.msra.mxu0 %v2354
        %2410 = vmatprep.subr.bf16.mxu0 %v2353
        %2411 = vmatpush2.bf16.msra.mxu0 %v2352
        %2412 = vmatprep.subr.bf16.mxu0 %v2351
        %2413 = vmatpush2.bf16.msra.mxu0 %v2350
        %2414 = vmatprep.subr.bf16.mxu0 %v2349
        %2415 = vmatpush2.bf16.msra.mxu0 %v2348
        %2416 = vmatprep.subr.bf16.mxu0 %v2347
        %2417 = vmatpush2.bf16.msra.mxu0 %v2346
        %2418 = vmatprep.subr.bf16.mxu0 %v2345
        %2419 = vmatpush2.bf16.msra.mxu0 %v2344
        %2420 = vmatprep.subr.bf16.mxu0 %v2343
        %2421 = vmatpush2.bf16.msra.mxu0 %v2342
        %2422 = vmatprep.mubr.bf16.mxu0 %v2207
        %2423 = vmatmul.mubr.bf16.gmra.mxu0 %v2195
        %v2424 = vpop.f32.mrf.mxu0
        %v2425 = vadd.f32 0.0, %v2424
        %v2426 = vpop.f32.mrf.mxu0
        %v2427 = vadd.f32 0.0, %v2426
        %v2428 = vpop.f32.mrf.mxu0
        %v2429 = vadd.f32 0.0, %v2428
        %v2430 = vpop.f32.mrf.mxu0
        %v2431 = vadd.f32 0.0, %v2430
        %2432 = vmatprep.mubr.bf16.mxu0 %v2225
        %2433 = vmatmul.mubr.bf16.gmra.mxu0 %v2216
        %v2434 = vpop.f32.mrf.mxu0
        %v2435 = vadd.f32 0.0, %v2434
        %v2436 = vpop.f32.mrf.mxu0
        %v2437 = vadd.f32 0.0, %v2436
        %v2438 = vpop.f32.mrf.mxu0
        %v2439 = vadd.f32 0.0, %v2438
        %v2440 = vpop.f32.mrf.mxu0
        %v2441 = vadd.f32 0.0, %v2440
        %2442 = vdwg.mxu0
        %v2443 = vadd.f32 %v2136, %v2425
        %v2444 = vadd.f32 %v2137, %v2427
        %v2445 = vadd.f32 %v2138, %v2429
        %v2446 = vadd.f32 %v2139, %v2431
        %v2447 = vadd.f32 %v2140, %v2435
        %v2448 = vadd.f32 %v2141, %v2437
        %v2449 = vadd.f32 %v2142, %v2439
        %v2450 = vadd.f32 %v2143, %v2441
        %v2451 = vld [vmem:[#allocation3 + $0x20] sm:$0x33]
        %s2452 = scalar_lea.vmem [#allocation8], 1792
        %v2453 = vld [vmem:[%s2452] sm:$0xff]
        %v2454 = vld [vmem:[%s2452 + $0x8] sm:$0xff]
        %v2455 = vld [vmem:[%s2452 + $0x10] sm:$0xff]
        %v2456 = vld [vmem:[%s2452 + $0x18] sm:$0xff]
        %v2457 = vld [vmem:[%s2452 + $0x20] sm:$0xff]
        %v2458 = vld [vmem:[%s2452 + $0x28] sm:$0xff]
        %v2459 = vld [vmem:[%s2452 + $0x30] sm:$0xff]
        %v2460 = vld [vmem:[%s2452 + $0x38] sm:$0xff]
        %v2461 = vld [vmem:[%s2452 + $0x40] sm:$0xff]
        %v2462 = vld [vmem:[%s2452 + $0x48] sm:$0xff]
        %v2463 = vld [vmem:[%s2452 + $0x50] sm:$0xff]
        %v2464 = vld [vmem:[%s2452 + $0x58] sm:$0xff]
        %v2465 = vld [vmem:[%s2452 + $0x60] sm:$0xff]
        %v2466 = vld [vmem:[%s2452 + $0x68] sm:$0xff]
        %v2467 = vld [vmem:[%s2452 + $0x70] sm:$0xff]
        %v2468 = vld [vmem:[%s2452 + $0x78] sm:$0xff]
        %v2469 = vld [vmem:[%s2452 + $0x80] sm:$0xff]
        %v2470 = vld [vmem:[%s2452 + $0x88] sm:$0xff]
        %v2471 = vld [vmem:[%s2452 + $0x90] sm:$0xff]
        %v2472 = vld [vmem:[%s2452 + $0x98] sm:$0xff]
        %v2473 = vld [vmem:[%s2452 + $0xa0] sm:$0xff]
        %v2474 = vld [vmem:[%s2452 + $0xa8] sm:$0xff]
        %v2475 = vld [vmem:[%s2452 + $0xb0] sm:$0xff]
        %v2476 = vld [vmem:[%s2452 + $0xb8] sm:$0xff]
        %v2477 = vld [vmem:[%s2452 + $0xc0] sm:$0xff]
        %v2478 = vld [vmem:[%s2452 + $0xc8] sm:$0xff]
        %v2479 = vld [vmem:[%s2452 + $0xd0] sm:$0xff]
        %v2480 = vld [vmem:[%s2452 + $0xd8] sm:$0xff]
        %v2481 = vld [vmem:[%s2452 + $0xe0] sm:$0xff]
        %v2482 = vld [vmem:[%s2452 + $0xe8] sm:$0xff]
        %v2483 = vld [vmem:[%s2452 + $0xf0] sm:$0xff]
        %v2484 = vld [vmem:[%s2452 + $0xf8] sm:$0xff]
        %v2486 = vunpack.c.l.b16 %v2451
        %v2487 = vunpack.c.h.b16 %v2451
        %v2488 = vpack.c.b16 %v2486, %v2486
        %v2489 = vpack.c.b16 %v2487, %v2487
        %v2491 = vshrl.u32 %v1907, 16
        %v2493 = vrot.slane %v2491, 1
        %v2494 = vshll.u32 %v1907, 16
        %v2496 = vrot.slane %v2494, 2
        %v2497 = vor.u32 %v2493, %v2496
        %v2498 = vrot.slane %v1354, 1
        %v2499 = vrot.slane %v1338, 2
        %v2500 = vor.u32 %v2498, %v2499
        %v2501 = vsel %vm2183, %v2497, %v2500
        %v2503 = vshrl.u32 %v1908, 16
        %v2505 = vrot.slane %v2503, 1
        %v2506 = vshll.u32 %v1908, 16
        %v2508 = vrot.slane %v2506, 2
        %v2509 = vor.u32 %v2505, %v2508
        %v2510 = vrot.slane %v1362, 1
        %v2511 = vrot.slane %v1350, 2
        %v2512 = vor.u32 %v2510, %v2511
        %v2513 = vsel %vm2183, %v2509, %v2512
        %v2515 = vshrl.u32 %v2488, 16
        %v2517 = vrot.slane %v2515, 1
        %v2518 = vshll.u32 %v2488, 16
        %v2520 = vrot.slane %v2518, 2
        %v2521 = vor.u32 %v2517, %v2520
        %v2522 = vsel %vm2183, %v2500, %v2521
        %v2524 = vshrl.u32 %v2489, 16
        %v2526 = vrot.slane %v2524, 1
        %v2527 = vshll.u32 %v2489, 16
        %v2529 = vrot.slane %v2527, 2
        %v2530 = vor.u32 %v2526, %v2529
        %v2531 = vsel %vm2183, %v2512, %v2530
        %v2568 = vunpack.c.l.b16 %v2453
        %v2569 = vunpack.c.h.b16 %v2453
        %v2570 = vunpack.c.l.b16 %v2454
        %v2571 = vunpack.c.h.b16 %v2454
        %v2572 = vunpack.c.l.b16 %v2455
        %v2573 = vunpack.c.h.b16 %v2455
        %v2574 = vunpack.c.l.b16 %v2456
        %v2575 = vunpack.c.h.b16 %v2456
        %v2576 = vunpack.c.l.b16 %v2457
        %v2577 = vunpack.c.h.b16 %v2457
        %v2578 = vunpack.c.l.b16 %v2458
        %v2579 = vunpack.c.h.b16 %v2458
        %v2580 = vunpack.c.l.b16 %v2459
        %v2581 = vunpack.c.h.b16 %v2459
        %v2582 = vunpack.c.l.b16 %v2460
        %v2583 = vunpack.c.h.b16 %v2460
        %v2584 = vunpack.c.l.b16 %v2461
        %v2585 = vunpack.c.h.b16 %v2461
        %v2586 = vunpack.c.l.b16 %v2462
        %v2587 = vunpack.c.h.b16 %v2462
        %v2588 = vunpack.c.l.b16 %v2463
        %v2589 = vunpack.c.h.b16 %v2463
        %v2590 = vunpack.c.l.b16 %v2464
        %v2591 = vunpack.c.h.b16 %v2464
        %v2592 = vunpack.c.l.b16 %v2465
        %v2593 = vunpack.c.h.b16 %v2465
        %v2594 = vunpack.c.l.b16 %v2466
        %v2595 = vunpack.c.h.b16 %v2466
        %v2596 = vunpack.c.l.b16 %v2467
        %v2597 = vunpack.c.h.b16 %v2467
        %v2598 = vunpack.c.l.b16 %v2468
        %v2599 = vunpack.c.h.b16 %v2468
        %v2600 = vunpack.c.l.b16 %v2469
        %v2601 = vunpack.c.h.b16 %v2469
        %v2602 = vunpack.c.l.b16 %v2470
        %v2603 = vunpack.c.h.b16 %v2470
        %v2604 = vunpack.c.l.b16 %v2471
        %v2605 = vunpack.c.h.b16 %v2471
        %v2606 = vunpack.c.l.b16 %v2472
        %v2607 = vunpack.c.h.b16 %v2472
        %v2608 = vunpack.c.l.b16 %v2473
        %v2609 = vunpack.c.h.b16 %v2473
        %v2610 = vunpack.c.l.b16 %v2474
        %v2611 = vunpack.c.h.b16 %v2474
        %v2612 = vunpack.c.l.b16 %v2475
        %v2613 = vunpack.c.h.b16 %v2475
        %v2614 = vunpack.c.l.b16 %v2476
        %v2615 = vunpack.c.h.b16 %v2476
        %v2616 = vunpack.c.l.b16 %v2477
        %v2617 = vunpack.c.h.b16 %v2477
        %v2618 = vunpack.c.l.b16 %v2478
        %v2619 = vunpack.c.h.b16 %v2478
        %v2620 = vunpack.c.l.b16 %v2479
        %v2621 = vunpack.c.h.b16 %v2479
        %v2622 = vunpack.c.l.b16 %v2480
        %v2623 = vunpack.c.h.b16 %v2480
        %v2624 = vunpack.c.l.b16 %v2481
        %v2625 = vunpack.c.h.b16 %v2481
        %v2626 = vunpack.c.l.b16 %v2482
        %v2627 = vunpack.c.h.b16 %v2482
        %v2628 = vunpack.c.l.b16 %v2483
        %v2629 = vunpack.c.h.b16 %v2483
        %v2630 = vunpack.c.l.b16 %v2484
        %v2631 = vunpack.c.h.b16 %v2484
        %v2632 = vpack.c.b16 %v2570, %v2568
        %v2633 = vpack.c.b16 %v2571, %v2569
        %v2634 = vpack.c.b16 %v2574, %v2572
        %v2635 = vpack.c.b16 %v2575, %v2573
        %v2636 = vpack.c.b16 %v2578, %v2576
        %v2637 = vpack.c.b16 %v2579, %v2577
        %v2638 = vpack.c.b16 %v2582, %v2580
        %v2639 = vpack.c.b16 %v2583, %v2581
        %v2640 = vpack.c.b16 %v2586, %v2584
        %v2641 = vpack.c.b16 %v2587, %v2585
        %v2642 = vpack.c.b16 %v2590, %v2588
        %v2643 = vpack.c.b16 %v2591, %v2589
        %v2644 = vpack.c.b16 %v2594, %v2592
        %v2645 = vpack.c.b16 %v2595, %v2593
        %v2646 = vpack.c.b16 %v2598, %v2596
        %v2647 = vpack.c.b16 %v2599, %v2597
        %v2648 = vpack.c.b16 %v2602, %v2600
        %v2649 = vpack.c.b16 %v2603, %v2601
        %v2650 = vpack.c.b16 %v2606, %v2604
        %v2651 = vpack.c.b16 %v2607, %v2605
        %v2652 = vpack.c.b16 %v2610, %v2608
        %v2653 = vpack.c.b16 %v2611, %v2609
        %v2654 = vpack.c.b16 %v2614, %v2612
        %v2655 = vpack.c.b16 %v2615, %v2613
        %v2656 = vpack.c.b16 %v2618, %v2616
        %v2657 = vpack.c.b16 %v2619, %v2617
        %v2658 = vpack.c.b16 %v2622, %v2620
        %v2659 = vpack.c.b16 %v2623, %v2621
        %v2660 = vpack.c.b16 %v2626, %v2624
        %v2661 = vpack.c.b16 %v2627, %v2625
        %v2662 = vpack.c.b16 %v2630, %v2628
        %v2663 = vpack.c.b16 %v2631, %v2629
        %2696 = vmatprep.subr.bf16.mxu0 %v2647
        %2697 = vmatpush1.bf16.msra.mxu0 %v2646
        %2698 = vmatprep.subr.bf16.mxu0 %v2645
        %2699 = vmatpush1.bf16.msra.mxu0 %v2644
        %2700 = vmatprep.subr.bf16.mxu0 %v2643
        %2701 = vmatpush1.bf16.msra.mxu0 %v2642
        %2702 = vmatprep.subr.bf16.mxu0 %v2641
        %2703 = vmatpush1.bf16.msra.mxu0 %v2640
        %2704 = vmatprep.subr.bf16.mxu0 %v2639
        %2705 = vmatpush1.bf16.msra.mxu0 %v2638
        %2706 = vmatprep.subr.bf16.mxu0 %v2637
        %2707 = vmatpush1.bf16.msra.mxu0 %v2636
        %2708 = vmatprep.subr.bf16.mxu0 %v2635
        %2709 = vmatpush1.bf16.msra.mxu0 %v2634
        %2710 = vmatprep.subr.bf16.mxu0 %v2633
        %2711 = vmatpush1.bf16.msra.mxu0 %v2632
        %2712 = vmatprep.subr.bf16.mxu0 %v2663
        %2713 = vmatpush2.bf16.msra.mxu0 %v2662
        %2714 = vmatprep.subr.bf16.mxu0 %v2661
        %2715 = vmatpush2.bf16.msra.mxu0 %v2660
        %2716 = vmatprep.subr.bf16.mxu0 %v2659
        %2717 = vmatpush2.bf16.msra.mxu0 %v2658
        %2718 = vmatprep.subr.bf16.mxu0 %v2657
        %2719 = vmatpush2.bf16.msra.mxu0 %v2656
        %2720 = vmatprep.subr.bf16.mxu0 %v2655
        %2721 = vmatpush2.bf16.msra.mxu0 %v2654
        %2722 = vmatprep.subr.bf16.mxu0 %v2653
        %2723 = vmatpush2.bf16.msra.mxu0 %v2652
        %2724 = vmatprep.subr.bf16.mxu0 %v2651
        %2725 = vmatpush2.bf16.msra.mxu0 %v2650
        %2726 = vmatprep.subr.bf16.mxu0 %v2649
        %2727 = vmatpush2.bf16.msra.mxu0 %v2648
        %2728 = vmatprep.mubr.bf16.mxu0 %v2513
        %2729 = vmatmul.mubr.bf16.gmra.mxu0 %v2501
        %v2730 = vpop.f32.mrf.mxu0
        %v2731 = vadd.f32 0.0, %v2730
        %v2732 = vpop.f32.mrf.mxu0
        %v2733 = vadd.f32 0.0, %v2732
        %v2734 = vpop.f32.mrf.mxu0
        %v2735 = vadd.f32 0.0, %v2734
        %v2736 = vpop.f32.mrf.mxu0
        %v2737 = vadd.f32 0.0, %v2736
        %2738 = vmatprep.mubr.bf16.mxu0 %v2531
        %2739 = vmatmul.mubr.bf16.gmra.mxu0 %v2522
        %v2740 = vpop.f32.mrf.mxu0
        %v2741 = vadd.f32 0.0, %v2740
        %v2742 = vpop.f32.mrf.mxu0
        %v2743 = vadd.f32 0.0, %v2742
        %v2744 = vpop.f32.mrf.mxu0
        %v2745 = vadd.f32 0.0, %v2744
        %v2746 = vpop.f32.mrf.mxu0
        %v2747 = vadd.f32 0.0, %v2746
        %2748 = vdwg.mxu0
        %v2749 = vadd.f32 %v2443, %v2731
        %v2750 = vadd.f32 %v2444, %v2733
        %v2751 = vadd.f32 %v2445, %v2735
        %v2752 = vadd.f32 %v2446, %v2737
        %v2753 = vadd.f32 %v2447, %v2741
        %v2754 = vadd.f32 %v2448, %v2743
        %v2755 = vadd.f32 %v2449, %v2745
        %v2756 = vadd.f32 %v2450, %v2747
        %v2757 = vld [vmem:[#allocation2] sm:$0xcc]
        %s2758 = scalar_lea.vmem [#allocation8], 2048
        %v2759 = vld [vmem:[%s2758] sm:$0xff]
        %v2760 = vld [vmem:[%s2758 + $0x8] sm:$0xff]
        %v2761 = vld [vmem:[%s2758 + $0x10] sm:$0xff]
        %v2762 = vld [vmem:[%s2758 + $0x18] sm:$0xff]
        %v2763 = vld [vmem:[%s2758 + $0x20] sm:$0xff]
        %v2764 = vld [vmem:[%s2758 + $0x28] sm:$0xff]
        %v2765 = vld [vmem:[%s2758 + $0x30] sm:$0xff]
        %v2766 = vld [vmem:[%s2758 + $0x38] sm:$0xff]
        %v2767 = vld [vmem:[%s2758 + $0x40] sm:$0xff]
        %v2768 = vld [vmem:[%s2758 + $0x48] sm:$0xff]
        %v2769 = vld [vmem:[%s2758 + $0x50] sm:$0xff]
        %v2770 = vld [vmem:[%s2758 + $0x58] sm:$0xff]
        %v2771 = vld [vmem:[%s2758 + $0x60] sm:$0xff]
        %v2772 = vld [vmem:[%s2758 + $0x68] sm:$0xff]
        %v2773 = vld [vmem:[%s2758 + $0x70] sm:$0xff]
        %v2774 = vld [vmem:[%s2758 + $0x78] sm:$0xff]
        %v2775 = vld [vmem:[%s2758 + $0x80] sm:$0xff]
        %v2776 = vld [vmem:[%s2758 + $0x88] sm:$0xff]
        %v2777 = vld [vmem:[%s2758 + $0x90] sm:$0xff]
        %v2778 = vld [vmem:[%s2758 + $0x98] sm:$0xff]
        %v2779 = vld [vmem:[%s2758 + $0xa0] sm:$0xff]
        %v2780 = vld [vmem:[%s2758 + $0xa8] sm:$0xff]
        %v2781 = vld [vmem:[%s2758 + $0xb0] sm:$0xff]
        %v2782 = vld [vmem:[%s2758 + $0xb8] sm:$0xff]
        %v2783 = vld [vmem:[%s2758 + $0xc0] sm:$0xff]
        %v2784 = vld [vmem:[%s2758 + $0xc8] sm:$0xff]
        %v2785 = vld [vmem:[%s2758 + $0xd0] sm:$0xff]
        %v2786 = vld [vmem:[%s2758 + $0xd8] sm:$0xff]
        %v2787 = vld [vmem:[%s2758 + $0xe0] sm:$0xff]
        %v2788 = vld [vmem:[%s2758 + $0xe8] sm:$0xff]
        %v2789 = vld [vmem:[%s2758 + $0xf0] sm:$0xff]
        %v2790 = vld [vmem:[%s2758 + $0xf8] sm:$0xff]
        %v2792 = vunpack.c.l.b16 %v2757
        %v2793 = vunpack.c.h.b16 %v2757
        %v2794 = vpack.c.b16 %v991, %v2792
        %v2795 = vpack.c.b16 %v992, %v2793
        %vm2796 = vcmask 1045504
        %v2797 = vrot.slane %v2794, 2
        %v2798 = vrot.slane %v1001, 2
        %v2799 = vsel %vm2796, %v2797, %v2798
        %v2800 = vrot.slane %v2795, 2
        %v2801 = vrot.slane %v1002, 2
        %v2802 = vsel %vm2796, %v2800, %v2801
        %v2803 = vrot.slane %v2181, 2
        %v2804 = vsel %vm2796, %v2798, %v2803
        %v2805 = vrot.slane %v2182, 2
        %v2806 = vsel %vm2796, %v2801, %v2805
        %v2843 = vunpack.c.l.b16 %v2759
        %v2844 = vunpack.c.h.b16 %v2759
        %v2845 = vunpack.c.l.b16 %v2760
        %v2846 = vunpack.c.h.b16 %v2760
        %v2847 = vunpack.c.l.b16 %v2761
        %v2848 = vunpack.c.h.b16 %v2761
        %v2849 = vunpack.c.l.b16 %v2762
        %v2850 = vunpack.c.h.b16 %v2762
        %v2851 = vunpack.c.l.b16 %v2763
        %v2852 = vunpack.c.h.b16 %v2763
        %v2853 = vunpack.c.l.b16 %v2764
        %v2854 = vunpack.c.h.b16 %v2764
        %v2855 = vunpack.c.l.b16 %v2765
        %v2856 = vunpack.c.h.b16 %v2765
        %v2857 = vunpack.c.l.b16 %v2766
        %v2858 = vunpack.c.h.b16 %v2766
        %v2859 = vunpack.c.l.b16 %v2767
        %v2860 = vunpack.c.h.b16 %v2767
        %v2861 = vunpack.c.l.b16 %v2768
        %v2862 = vunpack.c.h.b16 %v2768
        %v2863 = vunpack.c.l.b16 %v2769
        %v2864 = vunpack.c.h.b16 %v2769
        %v2865 = vunpack.c.l.b16 %v2770
        %v2866 = vunpack.c.h.b16 %v2770
        %v2867 = vunpack.c.l.b16 %v2771
        %v2868 = vunpack.c.h.b16 %v2771
        %v2869 = vunpack.c.l.b16 %v2772
        %v2870 = vunpack.c.h.b16 %v2772
        %v2871 = vunpack.c.l.b16 %v2773
        %v2872 = vunpack.c.h.b16 %v2773
        %v2873 = vunpack.c.l.b16 %v2774
        %v2874 = vunpack.c.h.b16 %v2774
        %v2875 = vunpack.c.l.b16 %v2775
        %v2876 = vunpack.c.h.b16 %v2775
        %v2877 = vunpack.c.l.b16 %v2776
        %v2878 = vunpack.c.h.b16 %v2776
        %v2879 = vunpack.c.l.b16 %v2777
        %v2880 = vunpack.c.h.b16 %v2777
        %v2881 = vunpack.c.l.b16 %v2778
        %v2882 = vunpack.c.h.b16 %v2778
        %v2883 = vunpack.c.l.b16 %v2779
        %v2884 = vunpack.c.h.b16 %v2779
        %v2885 = vunpack.c.l.b16 %v2780
        %v2886 = vunpack.c.h.b16 %v2780
        %v2887 = vunpack.c.l.b16 %v2781
        %v2888 = vunpack.c.h.b16 %v2781
        %v2889 = vunpack.c.l.b16 %v2782
        %v2890 = vunpack.c.h.b16 %v2782
        %v2891 = vunpack.c.l.b16 %v2783
        %v2892 = vunpack.c.h.b16 %v2783
        %v2893 = vunpack.c.l.b16 %v2784
        %v2894 = vunpack.c.h.b16 %v2784
        %v2895 = vunpack.c.l.b16 %v2785
        %v2896 = vunpack.c.h.b16 %v2785
        %v2897 = vunpack.c.l.b16 %v2786
        %v2898 = vunpack.c.h.b16 %v2786
        %v2899 = vunpack.c.l.b16 %v2787
        %v2900 = vunpack.c.h.b16 %v2787
        %v2901 = vunpack.c.l.b16 %v2788
        %v2902 = vunpack.c.h.b16 %v2788
        %v2903 = vunpack.c.l.b16 %v2789
        %v2904 = vunpack.c.h.b16 %v2789
        %v2905 = vunpack.c.l.b16 %v2790
        %v2906 = vunpack.c.h.b16 %v2790
        %v2907 = vpack.c.b16 %v2845, %v2843
        %v2908 = vpack.c.b16 %v2846, %v2844
        %v2909 = vpack.c.b16 %v2849, %v2847
        %v2910 = vpack.c.b16 %v2850, %v2848
        %v2911 = vpack.c.b16 %v2853, %v2851
        %v2912 = vpack.c.b16 %v2854, %v2852
        %v2913 = vpack.c.b16 %v2857, %v2855
        %v2914 = vpack.c.b16 %v2858, %v2856
        %v2915 = vpack.c.b16 %v2861, %v2859
        %v2916 = vpack.c.b16 %v2862, %v2860
        %v2917 = vpack.c.b16 %v2865, %v2863
        %v2918 = vpack.c.b16 %v2866, %v2864
        %v2919 = vpack.c.b16 %v2869, %v2867
        %v2920 = vpack.c.b16 %v2870, %v2868
        %v2921 = vpack.c.b16 %v2873, %v2871
        %v2922 = vpack.c.b16 %v2874, %v2872
        %v2923 = vpack.c.b16 %v2877, %v2875
        %v2924 = vpack.c.b16 %v2878, %v2876
        %v2925 = vpack.c.b16 %v2881, %v2879
        %v2926 = vpack.c.b16 %v2882, %v2880
        %v2927 = vpack.c.b16 %v2885, %v2883
        %v2928 = vpack.c.b16 %v2886, %v2884
        %v2929 = vpack.c.b16 %v2889, %v2887
        %v2930 = vpack.c.b16 %v2890, %v2888
        %v2931 = vpack.c.b16 %v2893, %v2891
        %v2932 = vpack.c.b16 %v2894, %v2892
        %v2933 = vpack.c.b16 %v2897, %v2895
        %v2934 = vpack.c.b16 %v2898, %v2896
        %v2935 = vpack.c.b16 %v2901, %v2899
        %v2936 = vpack.c.b16 %v2902, %v2900
        %v2937 = vpack.c.b16 %v2905, %v2903
        %v2938 = vpack.c.b16 %v2906, %v2904
        %2971 = vmatprep.subr.bf16.mxu0 %v2922
        %2972 = vmatpush1.bf16.msra.mxu0 %v2921
        %2973 = vmatprep.subr.bf16.mxu0 %v2920
        %2974 = vmatpush1.bf16.msra.mxu0 %v2919
        %2975 = vmatprep.subr.bf16.mxu0 %v2918
        %2976 = vmatpush1.bf16.msra.mxu0 %v2917
        %2977 = vmatprep.subr.bf16.mxu0 %v2916
        %2978 = vmatpush1.bf16.msra.mxu0 %v2915
        %2979 = vmatprep.subr.bf16.mxu0 %v2914
        %2980 = vmatpush1.bf16.msra.mxu0 %v2913
        %2981 = vmatprep.subr.bf16.mxu0 %v2912
        %2982 = vmatpush1.bf16.msra.mxu0 %v2911
        %2983 = vmatprep.subr.bf16.mxu0 %v2910
        %2984 = vmatpush1.bf16.msra.mxu0 %v2909
        %2985 = vmatprep.subr.bf16.mxu0 %v2908
        %2986 = vmatpush1.bf16.msra.mxu0 %v2907
        %2987 = vmatprep.subr.bf16.mxu0 %v2938
        %2988 = vmatpush2.bf16.msra.mxu0 %v2937
        %2989 = vmatprep.subr.bf16.mxu0 %v2936
        %2990 = vmatpush2.bf16.msra.mxu0 %v2935
        %2991 = vmatprep.subr.bf16.mxu0 %v2934
        %2992 = vmatpush2.bf16.msra.mxu0 %v2933
        %2993 = vmatprep.subr.bf16.mxu0 %v2932
        %2994 = vmatpush2.bf16.msra.mxu0 %v2931
        %2995 = vmatprep.subr.bf16.mxu0 %v2930
        %2996 = vmatpush2.bf16.msra.mxu0 %v2929
        %2997 = vmatprep.subr.bf16.mxu0 %v2928
        %2998 = vmatpush2.bf16.msra.mxu0 %v2927
        %2999 = vmatprep.subr.bf16.mxu0 %v2926
        %3000 = vmatpush2.bf16.msra.mxu0 %v2925
        %3001 = vmatprep.subr.bf16.mxu0 %v2924
        %3002 = vmatpush2.bf16.msra.mxu0 %v2923
        %3003 = vmatprep.mubr.bf16.mxu0 %v2802
        %3004 = vmatmul.mubr.bf16.gmra.mxu0 %v2799
        %v3005 = vpop.f32.mrf.mxu0
        %v3006 = vadd.f32 0.0, %v3005
        %v3007 = vpop.f32.mrf.mxu0
        %v3008 = vadd.f32 0.0, %v3007
        %v3009 = vpop.f32.mrf.mxu0
        %v3010 = vadd.f32 0.0, %v3009
        %v3011 = vpop.f32.mrf.mxu0
        %v3012 = vadd.f32 0.0, %v3011
        %3013 = vmatprep.mubr.bf16.mxu0 %v2806
        %3014 = vmatmul.mubr.bf16.gmra.mxu0 %v2804
        %v3015 = vpop.f32.mrf.mxu0
        %v3016 = vadd.f32 0.0, %v3015
        %v3017 = vpop.f32.mrf.mxu0
        %v3018 = vadd.f32 0.0, %v3017
        %v3019 = vpop.f32.mrf.mxu0
        %v3020 = vadd.f32 0.0, %v3019
        %v3021 = vpop.f32.mrf.mxu0
        %v3022 = vadd.f32 0.0, %v3021
        %3023 = vdwg.mxu0
        %v3024 = vadd.f32 %v2749, %v3006
        %v3025 = vadd.f32 %v2750, %v3008
        %v3026 = vadd.f32 %v2751, %v3010
        %v3027 = vadd.f32 %v2752, %v3012
        %v3028 = vadd.f32 %v2753, %v3016
        %v3029 = vadd.f32 %v2754, %v3018
        %v3030 = vadd.f32 %v2755, %v3020
        %v3031 = vadd.f32 %v2756, %v3022
        %v3032 = vld [vmem:[#allocation10] sm:$0x3]
        %v3034 = vlaneseq
        %v3035 = vshrl.u32 %v3034, 7
        %v3036 = vsub.s32 0, %v3035
        %v3037 = vrot.slane %v3032, %v3036
        %v3038 = vlaneseq
        %v3039 = vshrl.u32 %v3038, 7
        %v3040 = vsub.s32 1, %v3039
        %v3041 = vrot.slane %v3032, %v3040
        %v3044 = vadd.f32 %v3024, %v3037
        %v3045 = vadd.f32 %v3025, %v3041
        %v3046 = vadd.f32 %v3026, %v3037
        %v3047 = vadd.f32 %v3027, %v3041
        %v3048 = vadd.f32 %v3028, %v3037
        %v3049 = vadd.f32 %v3029, %v3041
        %v3050 = vadd.f32 %v3030, %v3037
        %v3051 = vadd.f32 %v3031, %v3041
        %vm3052 = vcmp.ge.f32.partialorder %v3044, 0.0
        %vm3053 = vcmp.ge.f32.partialorder %v3045, 0.0
        %vm3054 = vcmp.ge.f32.partialorder %v3046, 0.0
        %vm3055 = vcmp.ge.f32.partialorder %v3047, 0.0
        %vm3056 = vcmp.ge.f32.partialorder %v3048, 0.0
        %vm3057 = vcmp.ge.f32.partialorder %v3049, 0.0
        %vm3058 = vcmp.ge.f32.partialorder %v3050, 0.0
        %vm3059 = vcmp.ge.f32.partialorder %v3051, 0.0
        %v3060 = vmul.f32 %v3044, 0.01
        %v3061 = vmul.f32 %v3045, 0.01
        %v3062 = vmul.f32 %v3046, 0.01
        %v3063 = vmul.f32 %v3047, 0.01
        %v3064 = vmul.f32 %v3048, 0.01
        %v3065 = vmul.f32 %v3049, 0.01
        %v3066 = vmul.f32 %v3050, 0.01
        %v3067 = vmul.f32 %v3051, 0.01
        %v3068 = vsel %vm3052, %v3044, %v3060
        %v3069 = vsel %vm3053, %v3045, %v3061
        %v3070 = vsel %vm3054, %v3046, %v3062
        %v3071 = vsel %vm3055, %v3047, %v3063
        %v3072 = vsel %vm3056, %v3048, %v3064
        %v3073 = vsel %vm3057, %v3049, %v3065
        %v3074 = vsel %vm3058, %v3050, %v3066
        %v3075 = vsel %vm3059, %v3051, %v3067
        %v3076 = vpack.c.bf16 %v3070, %v3068
        %v3077 = vpack.c.bf16 %v3071, %v3069
        %v3078 = vpack.c.bf16 %v3074, %v3072
        %v3079 = vpack.c.bf16 %v3075, %v3073
        %v3084 = vunpack.c.l.b16 %v3076
        %v3085 = vunpack.c.l.b16 %v3077
        %v3086 = vunpack.c.h.b16 %v3076
        %v3087 = vunpack.c.h.b16 %v3077
        %v3088 = vunpack.c.l.b16 %v3078
        %v3089 = vunpack.c.l.b16 %v3079
        %v3090 = vunpack.c.h.b16 %v3078
        %v3091 = vunpack.c.h.b16 %v3079
        %v3092 = vpack.c.b16 %v3085, %v3084
        %v3093 = vpack.c.b16 %v3087, %v3086
        %v3094 = vpack.c.b16 %v3089, %v3088
        %v3095 = vpack.c.b16 %v3091, %v3090
        %vm3096 = vcmask 1041408
        %vm3097 = vcmask 1045508
        %vm3098 = vmor %vm3096, %vm3097
        %v3099 = vrot.slane %v3092, 6
        %v3100 = vrot.slane %v3099, 4
        %v3101 = vrot.slane %v3093, 6
        %v3102 = vsel %vm3098, %v3100, %v3101
        %v3103 = vrot.slane %v3101, 4
        %v3104 = vrot.slane %v3094, 6
        %v3105 = vsel %vm3098, %v3103, %v3104
        %v3106 = vrot.slane %v3104, 4
        %v3107 = vrot.slane %v3095, 6
        %v3108 = vsel %vm3098, %v3106, %v3107
        %v3109 = vrot.slane %v3107, 4
        %3115 = vst [vmem:[#allocation4] sm:$0xcc] %v3099
        %3116 = vst [vmem:[#allocation4 + $0x8] sm:$0xff] %v3102
        %3117 = vst [vmem:[#allocation4 + $0x10] sm:$0xff] %v3105
        %3118 = vst [vmem:[#allocation4 + $0x18] sm:$0xff] %v3108
        %3119 = vst [vmem:[#allocation4 + $0x20] sm:$0x33] %v3109
        %v3120 = vld [vmem:[#allocation4] sm:$0xff]
        %v3121 = vld [vmem:[#allocation4 + $0x8] sm:$0xff]
        %v3122 = vld [vmem:[#allocation4 + $0x10] sm:$0xff]
        %v3123 = vld [vmem:[#allocation4 + $0x18] sm:$0xff]
        %v3124 = vld [vmem:[#allocation11] sm:$0xff]
        %v3125 = vld [vmem:[#allocation11 + $0x8] sm:$0xff]
        %v3126 = vld [vmem:[#allocation11 + $0x10] sm:$0xff]
        %v3127 = vld [vmem:[#allocation11 + $0x18] sm:$0xff]
        %v3128 = vld [vmem:[#allocation11 + $0x20] sm:$0xff]
        %v3129 = vld [vmem:[#allocation11 + $0x28] sm:$0xff]
        %v3130 = vld [vmem:[#allocation11 + $0x30] sm:$0xff]
        %v3131 = vld [vmem:[#allocation11 + $0x38] sm:$0xff]
        %v3132 = vld [vmem:[#allocation11 + $0x40] sm:$0xff]
        %v3133 = vld [vmem:[#allocation11 + $0x48] sm:$0xff]
        %v3134 = vld [vmem:[#allocation11 + $0x50] sm:$0xff]
        %v3135 = vld [vmem:[#allocation11 + $0x58] sm:$0xff]
        %v3136 = vld [vmem:[#allocation11 + $0x60] sm:$0xff]
        %v3137 = vld [vmem:[#allocation11 + $0x68] sm:$0xff]
        %v3138 = vld [vmem:[#allocation11 + $0x70] sm:$0xff]
        %v3139 = vld [vmem:[#allocation11 + $0x78] sm:$0xff]
        %v3140 = vld [vmem:[#allocation11 + $0x80] sm:$0xff]
        %v3141 = vld [vmem:[#allocation11 + $0x88] sm:$0xff]
        %v3142 = vld [vmem:[#allocation11 + $0x90] sm:$0xff]
        %v3143 = vld [vmem:[#allocation11 + $0x98] sm:$0xff]
        %v3144 = vld [vmem:[#allocation11 + $0xa0] sm:$0xff]
        %v3145 = vld [vmem:[#allocation11 + $0xa8] sm:$0xff]
        %v3146 = vld [vmem:[#allocation11 + $0xb0] sm:$0xff]
        %v3147 = vld [vmem:[#allocation11 + $0xb8] sm:$0xff]
        %v3148 = vld [vmem:[#allocation11 + $0xc0] sm:$0xff]
        %v3149 = vld [vmem:[#allocation11 + $0xc8] sm:$0xff]
        %v3150 = vld [vmem:[#allocation11 + $0xd0] sm:$0xff]
        %v3151 = vld [vmem:[#allocation11 + $0xd8] sm:$0xff]
        %v3152 = vld [vmem:[#allocation11 + $0xe0] sm:$0xff]
        %v3153 = vld [vmem:[#allocation11 + $0xe8] sm:$0xff]
        %v3154 = vld [vmem:[#allocation11 + $0xf0] sm:$0xff]
        %v3155 = vld [vmem:[#allocation11 + $0xf8] sm:$0xff]
        %v3156 = vld [vmem:[#allocation4] sm:$0xff]
        %v3157 = vld [vmem:[#allocation4 + $0x8] sm:$0xff]
        %v3158 = vld [vmem:[#allocation4 + $0x10] sm:$0xff]
        %v3159 = vld [vmem:[#allocation4 + $0x18] sm:$0xff]
        %v3160 = vld [vmem:[#allocation4 + $0x20] sm:$0x11]
        %s3161 = scalar_lea.vmem [#allocation11], 256
        %v3162 = vld [vmem:[%s3161] sm:$0xff]
        %v3163 = vld [vmem:[%s3161 + $0x8] sm:$0xff]
        %v3164 = vld [vmem:[%s3161 + $0x10] sm:$0xff]
        %v3165 = vld [vmem:[%s3161 + $0x18] sm:$0xff]
        %v3166 = vld [vmem:[%s3161 + $0x20] sm:$0xff]
        %v3167 = vld [vmem:[%s3161 + $0x28] sm:$0xff]
        %v3168 = vld [vmem:[%s3161 + $0x30] sm:$0xff]
        %v3169 = vld [vmem:[%s3161 + $0x38] sm:$0xff]
        %v3170 = vld [vmem:[%s3161 + $0x40] sm:$0xff]
        %v3171 = vld [vmem:[%s3161 + $0x48] sm:$0xff]
        %v3172 = vld [vmem:[%s3161 + $0x50] sm:$0xff]
        %v3173 = vld [vmem:[%s3161 + $0x58] sm:$0xff]
        %v3174 = vld [vmem:[%s3161 + $0x60] sm:$0xff]
        %v3175 = vld [vmem:[%s3161 + $0x68] sm:$0xff]
        %v3176 = vld [vmem:[%s3161 + $0x70] sm:$0xff]
        %v3177 = vld [vmem:[%s3161 + $0x78] sm:$0xff]
        %v3178 = vld [vmem:[%s3161 + $0x80] sm:$0xff]
        %v3179 = vld [vmem:[%s3161 + $0x88] sm:$0xff]
        %v3180 = vld [vmem:[%s3161 + $0x90] sm:$0xff]
        %v3181 = vld [vmem:[%s3161 + $0x98] sm:$0xff]
        %v3182 = vld [vmem:[%s3161 + $0xa0] sm:$0xff]
        %v3183 = vld [vmem:[%s3161 + $0xa8] sm:$0xff]
        %v3184 = vld [vmem:[%s3161 + $0xb0] sm:$0xff]
        %v3185 = vld [vmem:[%s3161 + $0xb8] sm:$0xff]
        %v3186 = vld [vmem:[%s3161 + $0xc0] sm:$0xff]
        %v3187 = vld [vmem:[%s3161 + $0xc8] sm:$0xff]
        %v3188 = vld [vmem:[%s3161 + $0xd0] sm:$0xff]
        %v3189 = vld [vmem:[%s3161 + $0xd8] sm:$0xff]
        %v3190 = vld [vmem:[%s3161 + $0xe0] sm:$0xff]
        %v3191 = vld [vmem:[%s3161 + $0xe8] sm:$0xff]
        %v3192 = vld [vmem:[%s3161 + $0xf0] sm:$0xff]
        %v3193 = vld [vmem:[%s3161 + $0xf8] sm:$0xff]
        %v3199 = vunpack.c.l.b16 %v3156
        %v3200 = vunpack.c.h.b16 %v3156
        %v3201 = vunpack.c.l.b16 %v3157
        %v3202 = vunpack.c.h.b16 %v3157
        %v3203 = vunpack.c.l.b16 %v3158
        %v3204 = vunpack.c.h.b16 %v3158
        %v3205 = vunpack.c.l.b16 %v3159
        %v3206 = vunpack.c.h.b16 %v3159
        %v3207 = vunpack.c.l.b16 %v3160
        %v3208 = vunpack.c.h.b16 %v3160
        %v3209 = vpack.c.b16 %v3201, %v3199
        %v3210 = vpack.c.b16 %v3202, %v3200
        %v3211 = vpack.c.b16 %v3205, %v3203
        %v3212 = vpack.c.b16 %v3206, %v3204
        %v3213 = vpack.c.b16 %v3207, %v3207
        %v3214 = vpack.c.b16 %v3208, %v3208
        %v3216 = vshrl.u32 %v3209, 16
        %v3218 = vshll.u32 %v3209, 16
        %v3220 = vrot.slane %v3218, 1
        %v3221 = vor.u32 %v3216, %v3220
        %v3223 = vshll.u32 %v3211, 16
        %v3225 = vrot.slane %v3223, 1
        %v3226 = vsel %vm1005, %v3221, %v3225
        %v3228 = vshrl.u32 %v3210, 16
        %v3230 = vshll.u32 %v3210, 16
        %v3232 = vrot.slane %v3230, 1
        %v3233 = vor.u32 %v3228, %v3232
        %v3235 = vshll.u32 %v3212, 16
        %v3237 = vrot.slane %v3235, 1
        %v3238 = vsel %vm1005, %v3233, %v3237
        %v3239 = vshrl.u32 %v3211, 16
        %v3241 = vor.u32 %v3239, %v3225
        %v3243 = vshll.u32 %v3213, 16
        %v3245 = vrot.slane %v3243, 1
        %v3246 = vsel %vm1005, %v3241, %v3245
        %v3247 = vshrl.u32 %v3212, 16
        %v3249 = vor.u32 %v3247, %v3237
        %v3251 = vshll.u32 %v3214, 16
        %v3253 = vrot.slane %v3251, 1
        %v3254 = vsel %vm1005, %v3249, %v3253
        %v3291 = vunpack.c.l.b16 %v3162
        %v3292 = vunpack.c.h.b16 %v3162
        %v3293 = vunpack.c.l.b16 %v3163
        %v3294 = vunpack.c.h.b16 %v3163
        %v3295 = vunpack.c.l.b16 %v3164
        %v3296 = vunpack.c.h.b16 %v3164
        %v3297 = vunpack.c.l.b16 %v3165
        %v3298 = vunpack.c.h.b16 %v3165
        %v3299 = vunpack.c.l.b16 %v3166
        %v3300 = vunpack.c.h.b16 %v3166
        %v3301 = vunpack.c.l.b16 %v3167
        %v3302 = vunpack.c.h.b16 %v3167
        %v3303 = vunpack.c.l.b16 %v3168
        %v3304 = vunpack.c.h.b16 %v3168
        %v3305 = vunpack.c.l.b16 %v3169
        %v3306 = vunpack.c.h.b16 %v3169
        %v3307 = vunpack.c.l.b16 %v3170
        %v3308 = vunpack.c.h.b16 %v3170
        %v3309 = vunpack.c.l.b16 %v3171
        %v3310 = vunpack.c.h.b16 %v3171
        %v3311 = vunpack.c.l.b16 %v3172
        %v3312 = vunpack.c.h.b16 %v3172
        %v3313 = vunpack.c.l.b16 %v3173
        %v3314 = vunpack.c.h.b16 %v3173
        %v3315 = vunpack.c.l.b16 %v3174
        %v3316 = vunpack.c.h.b16 %v3174
        %v3317 = vunpack.c.l.b16 %v3175
        %v3318 = vunpack.c.h.b16 %v3175
        %v3319 = vunpack.c.l.b16 %v3176
        %v3320 = vunpack.c.h.b16 %v3176
        %v3321 = vunpack.c.l.b16 %v3177
        %v3322 = vunpack.c.h.b16 %v3177
        %v3323 = vunpack.c.l.b16 %v3178
        %v3324 = vunpack.c.h.b16 %v3178
        %v3325 = vunpack.c.l.b16 %v3179
        %v3326 = vunpack.c.h.b16 %v3179
        %v3327 = vunpack.c.l.b16 %v3180
        %v3328 = vunpack.c.h.b16 %v3180
        %v3329 = vunpack.c.l.b16 %v3181
        %v3330 = vunpack.c.h.b16 %v3181
        %v3331 = vunpack.c.l.b16 %v3182
        %v3332 = vunpack.c.h.b16 %v3182
        %v3333 = vunpack.c.l.b16 %v3183
        %v3334 = vunpack.c.h.b16 %v3183
        %v3335 = vunpack.c.l.b16 %v3184
        %v3336 = vunpack.c.h.b16 %v3184
        %v3337 = vunpack.c.l.b16 %v3185
        %v3338 = vunpack.c.h.b16 %v3185
        %v3339 = vunpack.c.l.b16 %v3186
        %v3340 = vunpack.c.h.b16 %v3186
        %v3341 = vunpack.c.l.b16 %v3187
        %v3342 = vunpack.c.h.b16 %v3187
        %v3343 = vunpack.c.l.b16 %v3188
        %v3344 = vunpack.c.h.b16 %v3188
        %v3345 = vunpack.c.l.b16 %v3189
        %v3346 = vunpack.c.h.b16 %v3189
        %v3347 = vunpack.c.l.b16 %v3190
        %v3348 = vunpack.c.h.b16 %v3190
        %v3349 = vunpack.c.l.b16 %v3191
        %v3350 = vunpack.c.h.b16 %v3191
        %v3351 = vunpack.c.l.b16 %v3192
        %v3352 = vunpack.c.h.b16 %v3192
        %v3353 = vunpack.c.l.b16 %v3193
        %v3354 = vunpack.c.h.b16 %v3193
        %v3355 = vpack.c.b16 %v3293, %v3291
        %v3356 = vpack.c.b16 %v3294, %v3292
        %v3357 = vpack.c.b16 %v3297, %v3295
        %v3358 = vpack.c.b16 %v3298, %v3296
        %v3359 = vpack.c.b16 %v3301, %v3299
        %v3360 = vpack.c.b16 %v3302, %v3300
        %v3361 = vpack.c.b16 %v3305, %v3303
        %v3362 = vpack.c.b16 %v3306, %v3304
        %v3363 = vpack.c.b16 %v3309, %v3307
        %v3364 = vpack.c.b16 %v3310, %v3308
        %v3365 = vpack.c.b16 %v3313, %v3311
        %v3366 = vpack.c.b16 %v3314, %v3312
        %v3367 = vpack.c.b16 %v3317, %v3315
        %v3368 = vpack.c.b16 %v3318, %v3316
        %v3369 = vpack.c.b16 %v3321, %v3319
        %v3370 = vpack.c.b16 %v3322, %v3320
        %v3371 = vpack.c.b16 %v3325, %v3323
        %v3372 = vpack.c.b16 %v3326, %v3324
        %v3373 = vpack.c.b16 %v3329, %v3327
        %v3374 = vpack.c.b16 %v3330, %v3328
        %v3375 = vpack.c.b16 %v3333, %v3331
        %v3376 = vpack.c.b16 %v3334, %v3332
        %v3377 = vpack.c.b16 %v3337, %v3335
        %v3378 = vpack.c.b16 %v3338, %v3336
        %v3379 = vpack.c.b16 %v3341, %v3339
        %v3380 = vpack.c.b16 %v3342, %v3340
        %v3381 = vpack.c.b16 %v3345, %v3343
        %v3382 = vpack.c.b16 %v3346, %v3344
        %v3383 = vpack.c.b16 %v3349, %v3347
        %v3384 = vpack.c.b16 %v3350, %v3348
        %v3385 = vpack.c.b16 %v3353, %v3351
        %v3386 = vpack.c.b16 %v3354, %v3352
        %3419 = vmatprep.subr.bf16.mxu0 %v3370
        %3420 = vmatpush1.bf16.msra.mxu0 %v3369
        %3421 = vmatprep.subr.bf16.mxu0 %v3368
        %3422 = vmatpush1.bf16.msra.mxu0 %v3367
        %3423 = vmatprep.subr.bf16.mxu0 %v3366
        %3424 = vmatpush1.bf16.msra.mxu0 %v3365
        %3425 = vmatprep.subr.bf16.mxu0 %v3364
        %3426 = vmatpush1.bf16.msra.mxu0 %v3363
        %3427 = vmatprep.subr.bf16.mxu0 %v3362
        %3428 = vmatpush1.bf16.msra.mxu0 %v3361
        %3429 = vmatprep.subr.bf16.mxu0 %v3360
        %3430 = vmatpush1.bf16.msra.mxu0 %v3359
        %3431 = vmatprep.subr.bf16.mxu0 %v3358
        %3432 = vmatpush1.bf16.msra.mxu0 %v3357
        %3433 = vmatprep.subr.bf16.mxu0 %v3356
        %3434 = vmatpush1.bf16.msra.mxu0 %v3355
        %3435 = vmatprep.subr.bf16.mxu0 %v3386
        %3436 = vmatpush2.bf16.msra.mxu0 %v3385
        %3437 = vmatprep.subr.bf16.mxu0 %v3384
        %3438 = vmatpush2.bf16.msra.mxu0 %v3383
        %3439 = vmatprep.subr.bf16.mxu0 %v3382
        %3440 = vmatpush2.bf16.msra.mxu0 %v3381
        %3441 = vmatprep.subr.bf16.mxu0 %v3380
        %3442 = vmatpush2.bf16.msra.mxu0 %v3379
        %3443 = vmatprep.subr.bf16.mxu0 %v3378
        %3444 = vmatpush2.bf16.msra.mxu0 %v3377
        %3445 = vmatprep.subr.bf16.mxu0 %v3376
        %3446 = vmatpush2.bf16.msra.mxu0 %v3375
        %3447 = vmatprep.subr.bf16.mxu0 %v3374
        %3448 = vmatpush2.bf16.msra.mxu0 %v3373
        %3449 = vmatprep.subr.bf16.mxu0 %v3372
        %3450 = vmatpush2.bf16.msra.mxu0 %v3371
        %3451 = vmatprep.mubr.bf16.mxu0 %v3238
        %3452 = vmatmul.mubr.bf16.gmra.mxu0 %v3226
        %v3453 = vpop.f32.mrf.mxu0
        %v3454 = vadd.f32 0.0, %v3453
        %v3455 = vpop.f32.mrf.mxu0
        %v3456 = vadd.f32 0.0, %v3455
        %v3457 = vpop.f32.mrf.mxu0
        %v3458 = vadd.f32 0.0, %v3457
        %v3459 = vpop.f32.mrf.mxu0
        %v3460 = vadd.f32 0.0, %v3459
        %3461 = vmatprep.mubr.bf16.mxu0 %v3254
        %3462 = vmatmul.mubr.bf16.gmra.mxu0 %v3246
        %v3463 = vpop.f32.mrf.mxu0
        %v3464 = vadd.f32 0.0, %v3463
        %v3465 = vpop.f32.mrf.mxu0
        %v3466 = vadd.f32 0.0, %v3465
        %v3467 = vpop.f32.mrf.mxu0
        %v3468 = vadd.f32 0.0, %v3467
        %v3469 = vpop.f32.mrf.mxu0
        %v3470 = vadd.f32 0.0, %v3469
        %3471 = vdwg.mxu0
        %v3476 = vunpack.c.l.b16 %v3120
        %v3477 = vunpack.c.h.b16 %v3120
        %v3478 = vunpack.c.l.b16 %v3121
        %v3479 = vunpack.c.h.b16 %v3121
        %v3480 = vunpack.c.l.b16 %v3122
        %v3481 = vunpack.c.h.b16 %v3122
        %v3482 = vunpack.c.l.b16 %v3123
        %v3483 = vunpack.c.h.b16 %v3123
        %v3484 = vpack.c.b16 %v3478, %v3476
        %v3485 = vpack.c.b16 %v3479, %v3477
        %v3486 = vpack.c.b16 %v3482, %v3480
        %v3487 = vpack.c.b16 %v3483, %v3481
        %v3524 = vunpack.c.l.b16 %v3124
        %v3525 = vunpack.c.h.b16 %v3124
        %v3526 = vunpack.c.l.b16 %v3125
        %v3527 = vunpack.c.h.b16 %v3125
        %v3528 = vunpack.c.l.b16 %v3126
        %v3529 = vunpack.c.h.b16 %v3126
        %v3530 = vunpack.c.l.b16 %v3127
        %v3531 = vunpack.c.h.b16 %v3127
        %v3532 = vunpack.c.l.b16 %v3128
        %v3533 = vunpack.c.h.b16 %v3128
        %v3534 = vunpack.c.l.b16 %v3129
        %v3535 = vunpack.c.h.b16 %v3129
        %v3536 = vunpack.c.l.b16 %v3130
        %v3537 = vunpack.c.h.b16 %v3130
        %v3538 = vunpack.c.l.b16 %v3131
        %v3539 = vunpack.c.h.b16 %v3131
        %v3540 = vunpack.c.l.b16 %v3132
        %v3541 = vunpack.c.h.b16 %v3132
        %v3542 = vunpack.c.l.b16 %v3133
        %v3543 = vunpack.c.h.b16 %v3133
        %v3544 = vunpack.c.l.b16 %v3134
        %v3545 = vunpack.c.h.b16 %v3134
        %v3546 = vunpack.c.l.b16 %v3135
        %v3547 = vunpack.c.h.b16 %v3135
        %v3548 = vunpack.c.l.b16 %v3136
        %v3549 = vunpack.c.h.b16 %v3136
        %v3550 = vunpack.c.l.b16 %v3137
        %v3551 = vunpack.c.h.b16 %v3137
        %v3552 = vunpack.c.l.b16 %v3138
        %v3553 = vunpack.c.h.b16 %v3138
        %v3554 = vunpack.c.l.b16 %v3139
        %v3555 = vunpack.c.h.b16 %v3139
        %v3556 = vunpack.c.l.b16 %v3140
        %v3557 = vunpack.c.h.b16 %v3140
        %v3558 = vunpack.c.l.b16 %v3141
        %v3559 = vunpack.c.h.b16 %v3141
        %v3560 = vunpack.c.l.b16 %v3142
        %v3561 = vunpack.c.h.b16 %v3142
        %v3562 = vunpack.c.l.b16 %v3143
        %v3563 = vunpack.c.h.b16 %v3143
        %v3564 = vunpack.c.l.b16 %v3144
        %v3565 = vunpack.c.h.b16 %v3144
        %v3566 = vunpack.c.l.b16 %v3145
        %v3567 = vunpack.c.h.b16 %v3145
        %v3568 = vunpack.c.l.b16 %v3146
        %v3569 = vunpack.c.h.b16 %v3146
        %v3570 = vunpack.c.l.b16 %v3147
        %v3571 = vunpack.c.h.b16 %v3147
        %v3572 = vunpack.c.l.b16 %v3148
        %v3573 = vunpack.c.h.b16 %v3148
        %v3574 = vunpack.c.l.b16 %v3149
        %v3575 = vunpack.c.h.b16 %v3149
        %v3576 = vunpack.c.l.b16 %v3150
        %v3577 = vunpack.c.h.b16 %v3150
        %v3578 = vunpack.c.l.b16 %v3151
        %v3579 = vunpack.c.h.b16 %v3151
        %v3580 = vunpack.c.l.b16 %v3152
        %v3581 = vunpack.c.h.b16 %v3152
        %v3582 = vunpack.c.l.b16 %v3153
        %v3583 = vunpack.c.h.b16 %v3153
        %v3584 = vunpack.c.l.b16 %v3154
        %v3585 = vunpack.c.h.b16 %v3154
        %v3586 = vunpack.c.l.b16 %v3155
        %v3587 = vunpack.c.h.b16 %v3155
        %v3588 = vpack.c.b16 %v3526, %v3524
        %v3589 = vpack.c.b16 %v3527, %v3525
        %v3590 = vpack.c.b16 %v3530, %v3528
        %v3591 = vpack.c.b16 %v3531, %v3529
        %v3592 = vpack.c.b16 %v3534, %v3532
        %v3593 = vpack.c.b16 %v3535, %v3533
        %v3594 = vpack.c.b16 %v3538, %v3536
        %v3595 = vpack.c.b16 %v3539, %v3537
        %v3596 = vpack.c.b16 %v3542, %v3540
        %v3597 = vpack.c.b16 %v3543, %v3541
        %v3598 = vpack.c.b16 %v3546, %v3544
        %v3599 = vpack.c.b16 %v3547, %v3545
        %v3600 = vpack.c.b16 %v3550, %v3548
        %v3601 = vpack.c.b16 %v3551, %v3549
        %v3602 = vpack.c.b16 %v3554, %v3552
        %v3603 = vpack.c.b16 %v3555, %v3553
        %v3604 = vpack.c.b16 %v3558, %v3556
        %v3605 = vpack.c.b16 %v3559, %v3557
        %v3606 = vpack.c.b16 %v3562, %v3560
        %v3607 = vpack.c.b16 %v3563, %v3561
        %v3608 = vpack.c.b16 %v3566, %v3564
        %v3609 = vpack.c.b16 %v3567, %v3565
        %v3610 = vpack.c.b16 %v3570, %v3568
        %v3611 = vpack.c.b16 %v3571, %v3569
        %v3612 = vpack.c.b16 %v3574, %v3572
        %v3613 = vpack.c.b16 %v3575, %v3573
        %v3614 = vpack.c.b16 %v3578, %v3576
        %v3615 = vpack.c.b16 %v3579, %v3577
        %v3616 = vpack.c.b16 %v3582, %v3580
        %v3617 = vpack.c.b16 %v3583, %v3581
        %v3618 = vpack.c.b16 %v3586, %v3584
        %v3619 = vpack.c.b16 %v3587, %v3585
        %3652 = vmatprep.subr.bf16.mxu0 %v3603
        %3653 = vmatpush1.bf16.msra.mxu0 %v3602
        %3654 = vmatprep.subr.bf16.mxu0 %v3601
        %3655 = vmatpush1.bf16.msra.mxu0 %v3600
        %3656 = vmatprep.subr.bf16.mxu0 %v3599
        %3657 = vmatpush1.bf16.msra.mxu0 %v3598
        %3658 = vmatprep.subr.bf16.mxu0 %v3597
        %3659 = vmatpush1.bf16.msra.mxu0 %v3596
        %3660 = vmatprep.subr.bf16.mxu0 %v3595
        %3661 = vmatpush1.bf16.msra.mxu0 %v3594
        %3662 = vmatprep.subr.bf16.mxu0 %v3593
        %3663 = vmatpush1.bf16.msra.mxu0 %v3592
        %3664 = vmatprep.subr.bf16.mxu0 %v3591
        %3665 = vmatpush1.bf16.msra.mxu0 %v3590
        %3666 = vmatprep.subr.bf16.mxu0 %v3589
        %3667 = vmatpush1.bf16.msra.mxu0 %v3588
        %3668 = vmatprep.subr.bf16.mxu0 %v3619
        %3669 = vmatpush2.bf16.msra.mxu0 %v3618
        %3670 = vmatprep.subr.bf16.mxu0 %v3617
        %3671 = vmatpush2.bf16.msra.mxu0 %v3616
        %3672 = vmatprep.subr.bf16.mxu0 %v3615
        %3673 = vmatpush2.bf16.msra.mxu0 %v3614
        %3674 = vmatprep.subr.bf16.mxu0 %v3613
        %3675 = vmatpush2.bf16.msra.mxu0 %v3612
        %3676 = vmatprep.subr.bf16.mxu0 %v3611
        %3677 = vmatpush2.bf16.msra.mxu0 %v3610
        %3678 = vmatprep.subr.bf16.mxu0 %v3609
        %3679 = vmatpush2.bf16.msra.mxu0 %v3608
        %3680 = vmatprep.subr.bf16.mxu0 %v3607
        %3681 = vmatpush2.bf16.msra.mxu0 %v3606
        %3682 = vmatprep.subr.bf16.mxu0 %v3605
        %3683 = vmatpush2.bf16.msra.mxu0 %v3604
        %3684 = vmatprep.mubr.bf16.mxu0 %v3485
        %3685 = vmatmul.mubr.bf16.gmra.mxu0 %v3484
        %v3686 = vpop.f32.mrf.mxu0
        %v3687 = vadd.f32 %v3454, %v3686
        %v3688 = vpop.f32.mrf.mxu0
        %v3689 = vadd.f32 %v3456, %v3688
        %v3690 = vpop.f32.mrf.mxu0
        %v3691 = vadd.f32 %v3458, %v3690
        %v3692 = vpop.f32.mrf.mxu0
        %v3693 = vadd.f32 %v3460, %v3692
        %3694 = vmatprep.mubr.bf16.mxu0 %v3487
        %3695 = vmatmul.mubr.bf16.gmra.mxu0 %v3486
        %v3696 = vpop.f32.mrf.mxu0
        %v3697 = vadd.f32 %v3464, %v3696
        %v3698 = vpop.f32.mrf.mxu0
        %v3699 = vadd.f32 %v3466, %v3698
        %v3700 = vpop.f32.mrf.mxu0
        %v3701 = vadd.f32 %v3468, %v3700
        %v3702 = vpop.f32.mrf.mxu0
        %v3703 = vadd.f32 %v3470, %v3702
        %3704 = vdwg.mxu0
        %v3705 = vld [vmem:[#allocation4] sm:$0xee]
        %s3706 = scalar_lea.vmem [#allocation11], 512
        %v3707 = vld [vmem:[%s3706] sm:$0xff]
        %v3708 = vld [vmem:[%s3706 + $0x8] sm:$0xff]
        %v3709 = vld [vmem:[%s3706 + $0x10] sm:$0xff]
        %v3710 = vld [vmem:[%s3706 + $0x18] sm:$0xff]
        %v3711 = vld [vmem:[%s3706 + $0x20] sm:$0xff]
        %v3712 = vld [vmem:[%s3706 + $0x28] sm:$0xff]
        %v3713 = vld [vmem:[%s3706 + $0x30] sm:$0xff]
        %v3714 = vld [vmem:[%s3706 + $0x38] sm:$0xff]
        %v3715 = vld [vmem:[%s3706 + $0x40] sm:$0xff]
        %v3716 = vld [vmem:[%s3706 + $0x48] sm:$0xff]
        %v3717 = vld [vmem:[%s3706 + $0x50] sm:$0xff]
        %v3718 = vld [vmem:[%s3706 + $0x58] sm:$0xff]
        %v3719 = vld [vmem:[%s3706 + $0x60] sm:$0xff]
        %v3720 = vld [vmem:[%s3706 + $0x68] sm:$0xff]
        %v3721 = vld [vmem:[%s3706 + $0x70] sm:$0xff]
        %v3722 = vld [vmem:[%s3706 + $0x78] sm:$0xff]
        %v3723 = vld [vmem:[%s3706 + $0x80] sm:$0xff]
        %v3724 = vld [vmem:[%s3706 + $0x88] sm:$0xff]
        %v3725 = vld [vmem:[%s3706 + $0x90] sm:$0xff]
        %v3726 = vld [vmem:[%s3706 + $0x98] sm:$0xff]
        %v3727 = vld [vmem:[%s3706 + $0xa0] sm:$0xff]
        %v3728 = vld [vmem:[%s3706 + $0xa8] sm:$0xff]
        %v3729 = vld [vmem:[%s3706 + $0xb0] sm:$0xff]
        %v3730 = vld [vmem:[%s3706 + $0xb8] sm:$0xff]
        %v3731 = vld [vmem:[%s3706 + $0xc0] sm:$0xff]
        %v3732 = vld [vmem:[%s3706 + $0xc8] sm:$0xff]
        %v3733 = vld [vmem:[%s3706 + $0xd0] sm:$0xff]
        %v3734 = vld [vmem:[%s3706 + $0xd8] sm:$0xff]
        %v3735 = vld [vmem:[%s3706 + $0xe0] sm:$0xff]
        %v3736 = vld [vmem:[%s3706 + $0xe8] sm:$0xff]
        %v3737 = vld [vmem:[%s3706 + $0xf0] sm:$0xff]
        %v3738 = vld [vmem:[%s3706 + $0xf8] sm:$0xff]
        %v3740 = vunpack.c.l.b16 %v3705
        %v3741 = vunpack.c.h.b16 %v3705
        %v3742 = vpack.c.b16 %v3201, %v3740
        %v3743 = vpack.c.b16 %v3202, %v3741
        %v3744 = vrot.slane %v3742, 1
        %v3745 = vrot.slane %v3211, 1
        %v3746 = vsel %vm1634, %v3744, %v3745
        %v3747 = vrot.slane %v3743, 1
        %v3748 = vrot.slane %v3212, 1
        %v3749 = vsel %vm1634, %v3747, %v3748
        %v3750 = vrot.slane %v3213, 1
        %v3751 = vsel %vm1634, %v3745, %v3750
        %v3752 = vrot.slane %v3214, 1
        %v3753 = vsel %vm1634, %v3748, %v3752
        %v3790 = vunpack.c.l.b16 %v3707
        %v3791 = vunpack.c.h.b16 %v3707
        %v3792 = vunpack.c.l.b16 %v3708
        %v3793 = vunpack.c.h.b16 %v3708
        %v3794 = vunpack.c.l.b16 %v3709
        %v3795 = vunpack.c.h.b16 %v3709
        %v3796 = vunpack.c.l.b16 %v3710
        %v3797 = vunpack.c.h.b16 %v3710
        %v3798 = vunpack.c.l.b16 %v3711
        %v3799 = vunpack.c.h.b16 %v3711
        %v3800 = vunpack.c.l.b16 %v3712
        %v3801 = vunpack.c.h.b16 %v3712
        %v3802 = vunpack.c.l.b16 %v3713
        %v3803 = vunpack.c.h.b16 %v3713
        %v3804 = vunpack.c.l.b16 %v3714
        %v3805 = vunpack.c.h.b16 %v3714
        %v3806 = vunpack.c.l.b16 %v3715
        %v3807 = vunpack.c.h.b16 %v3715
        %v3808 = vunpack.c.l.b16 %v3716
        %v3809 = vunpack.c.h.b16 %v3716
        %v3810 = vunpack.c.l.b16 %v3717
        %v3811 = vunpack.c.h.b16 %v3717
        %v3812 = vunpack.c.l.b16 %v3718
        %v3813 = vunpack.c.h.b16 %v3718
        %v3814 = vunpack.c.l.b16 %v3719
        %v3815 = vunpack.c.h.b16 %v3719
        %v3816 = vunpack.c.l.b16 %v3720
        %v3817 = vunpack.c.h.b16 %v3720
        %v3818 = vunpack.c.l.b16 %v3721
        %v3819 = vunpack.c.h.b16 %v3721
        %v3820 = vunpack.c.l.b16 %v3722
        %v3821 = vunpack.c.h.b16 %v3722
        %v3822 = vunpack.c.l.b16 %v3723
        %v3823 = vunpack.c.h.b16 %v3723
        %v3824 = vunpack.c.l.b16 %v3724
        %v3825 = vunpack.c.h.b16 %v3724
        %v3826 = vunpack.c.l.b16 %v3725
        %v3827 = vunpack.c.h.b16 %v3725
        %v3828 = vunpack.c.l.b16 %v3726
        %v3829 = vunpack.c.h.b16 %v3726
        %v3830 = vunpack.c.l.b16 %v3727
        %v3831 = vunpack.c.h.b16 %v3727
        %v3832 = vunpack.c.l.b16 %v3728
        %v3833 = vunpack.c.h.b16 %v3728
        %v3834 = vunpack.c.l.b16 %v3729
        %v3835 = vunpack.c.h.b16 %v3729
        %v3836 = vunpack.c.l.b16 %v3730
        %v3837 = vunpack.c.h.b16 %v3730
        %v3838 = vunpack.c.l.b16 %v3731
        %v3839 = vunpack.c.h.b16 %v3731
        %v3840 = vunpack.c.l.b16 %v3732
        %v3841 = vunpack.c.h.b16 %v3732
        %v3842 = vunpack.c.l.b16 %v3733
        %v3843 = vunpack.c.h.b16 %v3733
        %v3844 = vunpack.c.l.b16 %v3734
        %v3845 = vunpack.c.h.b16 %v3734
        %v3846 = vunpack.c.l.b16 %v3735
        %v3847 = vunpack.c.h.b16 %v3735
        %v3848 = vunpack.c.l.b16 %v3736
        %v3849 = vunpack.c.h.b16 %v3736
        %v3850 = vunpack.c.l.b16 %v3737
        %v3851 = vunpack.c.h.b16 %v3737
        %v3852 = vunpack.c.l.b16 %v3738
        %v3853 = vunpack.c.h.b16 %v3738
        %v3854 = vpack.c.b16 %v3792, %v3790
        %v3855 = vpack.c.b16 %v3793, %v3791
        %v3856 = vpack.c.b16 %v3796, %v3794
        %v3857 = vpack.c.b16 %v3797, %v3795
        %v3858 = vpack.c.b16 %v3800, %v3798
        %v3859 = vpack.c.b16 %v3801, %v3799
        %v3860 = vpack.c.b16 %v3804, %v3802
        %v3861 = vpack.c.b16 %v3805, %v3803
        %v3862 = vpack.c.b16 %v3808, %v3806
        %v3863 = vpack.c.b16 %v3809, %v3807
        %v3864 = vpack.c.b16 %v3812, %v3810
        %v3865 = vpack.c.b16 %v3813, %v3811
        %v3866 = vpack.c.b16 %v3816, %v3814
        %v3867 = vpack.c.b16 %v3817, %v3815
        %v3868 = vpack.c.b16 %v3820, %v3818
        %v3869 = vpack.c.b16 %v3821, %v3819
        %v3870 = vpack.c.b16 %v3824, %v3822
        %v3871 = vpack.c.b16 %v3825, %v3823
        %v3872 = vpack.c.b16 %v3828, %v3826
        %v3873 = vpack.c.b16 %v3829, %v3827
        %v3874 = vpack.c.b16 %v3832, %v3830
        %v3875 = vpack.c.b16 %v3833, %v3831
        %v3876 = vpack.c.b16 %v3836, %v3834
        %v3877 = vpack.c.b16 %v3837, %v3835
        %v3878 = vpack.c.b16 %v3840, %v3838
        %v3879 = vpack.c.b16 %v3841, %v3839
        %v3880 = vpack.c.b16 %v3844, %v3842
        %v3881 = vpack.c.b16 %v3845, %v3843
        %v3882 = vpack.c.b16 %v3848, %v3846
        %v3883 = vpack.c.b16 %v3849, %v3847
        %v3884 = vpack.c.b16 %v3852, %v3850
        %v3885 = vpack.c.b16 %v3853, %v3851
        %3918 = vmatprep.subr.bf16.mxu0 %v3869
        %3919 = vmatpush1.bf16.msra.mxu0 %v3868
        %3920 = vmatprep.subr.bf16.mxu0 %v3867
        %3921 = vmatpush1.bf16.msra.mxu0 %v3866
        %3922 = vmatprep.subr.bf16.mxu0 %v3865
        %3923 = vmatpush1.bf16.msra.mxu0 %v3864
        %3924 = vmatprep.subr.bf16.mxu0 %v3863
        %3925 = vmatpush1.bf16.msra.mxu0 %v3862
        %3926 = vmatprep.subr.bf16.mxu0 %v3861
        %3927 = vmatpush1.bf16.msra.mxu0 %v3860
        %3928 = vmatprep.subr.bf16.mxu0 %v3859
        %3929 = vmatpush1.bf16.msra.mxu0 %v3858
        %3930 = vmatprep.subr.bf16.mxu0 %v3857
        %3931 = vmatpush1.bf16.msra.mxu0 %v3856
        %3932 = vmatprep.subr.bf16.mxu0 %v3855
        %3933 = vmatpush1.bf16.msra.mxu0 %v3854
        %3934 = vmatprep.subr.bf16.mxu0 %v3885
        %3935 = vmatpush2.bf16.msra.mxu0 %v3884
        %3936 = vmatprep.subr.bf16.mxu0 %v3883
        %3937 = vmatpush2.bf16.msra.mxu0 %v3882
        %3938 = vmatprep.subr.bf16.mxu0 %v3881
        %3939 = vmatpush2.bf16.msra.mxu0 %v3880
        %3940 = vmatprep.subr.bf16.mxu0 %v3879
        %3941 = vmatpush2.bf16.msra.mxu0 %v3878
        %3942 = vmatprep.subr.bf16.mxu0 %v3877
        %3943 = vmatpush2.bf16.msra.mxu0 %v3876
        %3944 = vmatprep.subr.bf16.mxu0 %v3875
        %3945 = vmatpush2.bf16.msra.mxu0 %v3874
        %3946 = vmatprep.subr.bf16.mxu0 %v3873
        %3947 = vmatpush2.bf16.msra.mxu0 %v3872
        %3948 = vmatprep.subr.bf16.mxu0 %v3871
        %3949 = vmatpush2.bf16.msra.mxu0 %v3870
        %3950 = vmatprep.mubr.bf16.mxu0 %v3749
        %3951 = vmatmul.mubr.bf16.gmra.mxu0 %v3746
        %v3952 = vpop.f32.mrf.mxu0
        %v3953 = vadd.f32 0.0, %v3952
        %v3954 = vpop.f32.mrf.mxu0
        %v3955 = vadd.f32 0.0, %v3954
        %v3956 = vpop.f32.mrf.mxu0
        %v3957 = vadd.f32 0.0, %v3956
        %v3958 = vpop.f32.mrf.mxu0
        %v3959 = vadd.f32 0.0, %v3958
        %3960 = vmatprep.mubr.bf16.mxu0 %v3753
        %3961 = vmatmul.mubr.bf16.gmra.mxu0 %v3751
        %v3962 = vpop.f32.mrf.mxu0
        %v3963 = vadd.f32 0.0, %v3962
        %v3964 = vpop.f32.mrf.mxu0
        %v3965 = vadd.f32 0.0, %v3964
        %v3966 = vpop.f32.mrf.mxu0
        %v3967 = vadd.f32 0.0, %v3966
        %v3968 = vpop.f32.mrf.mxu0
        %v3969 = vadd.f32 0.0, %v3968
        %3970 = vdwg.mxu0
        %v3971 = vadd.f32 %v3687, %v3953
        %v3972 = vadd.f32 %v3689, %v3955
        %v3973 = vadd.f32 %v3691, %v3957
        %v3974 = vadd.f32 %v3693, %v3959
        %v3975 = vadd.f32 %v3697, %v3963
        %v3976 = vadd.f32 %v3699, %v3965
        %v3977 = vadd.f32 %v3701, %v3967
        %v3978 = vadd.f32 %v3703, %v3969
        %v3979 = vld [vmem:[#allocation4 + $0x20] sm:$0x33]
        %s3980 = scalar_lea.vmem [#allocation11], 768
        %v3981 = vld [vmem:[%s3980] sm:$0xff]
        %v3982 = vld [vmem:[%s3980 + $0x8] sm:$0xff]
        %v3983 = vld [vmem:[%s3980 + $0x10] sm:$0xff]
        %v3984 = vld [vmem:[%s3980 + $0x18] sm:$0xff]
        %v3985 = vld [vmem:[%s3980 + $0x20] sm:$0xff]
        %v3986 = vld [vmem:[%s3980 + $0x28] sm:$0xff]
        %v3987 = vld [vmem:[%s3980 + $0x30] sm:$0xff]
        %v3988 = vld [vmem:[%s3980 + $0x38] sm:$0xff]
        %v3989 = vld [vmem:[%s3980 + $0x40] sm:$0xff]
        %v3990 = vld [vmem:[%s3980 + $0x48] sm:$0xff]
        %v3991 = vld [vmem:[%s3980 + $0x50] sm:$0xff]
        %v3992 = vld [vmem:[%s3980 + $0x58] sm:$0xff]
        %v3993 = vld [vmem:[%s3980 + $0x60] sm:$0xff]
        %v3994 = vld [vmem:[%s3980 + $0x68] sm:$0xff]
        %v3995 = vld [vmem:[%s3980 + $0x70] sm:$0xff]
        %v3996 = vld [vmem:[%s3980 + $0x78] sm:$0xff]
        %v3997 = vld [vmem:[%s3980 + $0x80] sm:$0xff]
        %v3998 = vld [vmem:[%s3980 + $0x88] sm:$0xff]
        %v3999 = vld [vmem:[%s3980 + $0x90] sm:$0xff]
        %v4000 = vld [vmem:[%s3980 + $0x98] sm:$0xff]
        %v4001 = vld [vmem:[%s3980 + $0xa0] sm:$0xff]
        %v4002 = vld [vmem:[%s3980 + $0xa8] sm:$0xff]
        %v4003 = vld [vmem:[%s3980 + $0xb0] sm:$0xff]
        %v4004 = vld [vmem:[%s3980 + $0xb8] sm:$0xff]
        %v4005 = vld [vmem:[%s3980 + $0xc0] sm:$0xff]
        %v4006 = vld [vmem:[%s3980 + $0xc8] sm:$0xff]
        %v4007 = vld [vmem:[%s3980 + $0xd0] sm:$0xff]
        %v4008 = vld [vmem:[%s3980 + $0xd8] sm:$0xff]
        %v4009 = vld [vmem:[%s3980 + $0xe0] sm:$0xff]
        %v4010 = vld [vmem:[%s3980 + $0xe8] sm:$0xff]
        %v4011 = vld [vmem:[%s3980 + $0xf0] sm:$0xff]
        %v4012 = vld [vmem:[%s3980 + $0xf8] sm:$0xff]
        %v4014 = vunpack.c.l.b16 %v3979
        %v4015 = vunpack.c.h.b16 %v3979
        %v4016 = vpack.c.b16 %v4014, %v4014
        %v4017 = vpack.c.b16 %v4015, %v4015
        %v4019 = vshrl.u32 %v3742, 16
        %v4021 = vrot.slane %v4019, 1
        %v4022 = vshll.u32 %v3742, 16
        %v4024 = vrot.slane %v4022, 2
        %v4025 = vor.u32 %v4021, %v4024
        %v4026 = vrot.slane %v3239, 1
        %v4027 = vrot.slane %v3223, 2
        %v4028 = vor.u32 %v4026, %v4027
        %v4029 = vsel %vm2183, %v4025, %v4028
        %v4031 = vshrl.u32 %v3743, 16
        %v4033 = vrot.slane %v4031, 1
        %v4034 = vshll.u32 %v3743, 16
        %v4036 = vrot.slane %v4034, 2
        %v4037 = vor.u32 %v4033, %v4036
        %v4038 = vrot.slane %v3247, 1
        %v4039 = vrot.slane %v3235, 2
        %v4040 = vor.u32 %v4038, %v4039
        %v4041 = vsel %vm2183, %v4037, %v4040
        %v4043 = vshrl.u32 %v4016, 16
        %v4045 = vrot.slane %v4043, 1
        %v4046 = vshll.u32 %v4016, 16
        %v4048 = vrot.slane %v4046, 2
        %v4049 = vor.u32 %v4045, %v4048
        %v4050 = vsel %vm2183, %v4028, %v4049
        %v4052 = vshrl.u32 %v4017, 16
        %v4054 = vrot.slane %v4052, 1
        %v4055 = vshll.u32 %v4017, 16
        %v4057 = vrot.slane %v4055, 2
        %v4058 = vor.u32 %v4054, %v4057
        %v4059 = vsel %vm2183, %v4040, %v4058
        %v4096 = vunpack.c.l.b16 %v3981
        %v4097 = vunpack.c.h.b16 %v3981
        %v4098 = vunpack.c.l.b16 %v3982
        %v4099 = vunpack.c.h.b16 %v3982
        %v4100 = vunpack.c.l.b16 %v3983
        %v4101 = vunpack.c.h.b16 %v3983
        %v4102 = vunpack.c.l.b16 %v3984
        %v4103 = vunpack.c.h.b16 %v3984
        %v4104 = vunpack.c.l.b16 %v3985
        %v4105 = vunpack.c.h.b16 %v3985
        %v4106 = vunpack.c.l.b16 %v3986
        %v4107 = vunpack.c.h.b16 %v3986
        %v4108 = vunpack.c.l.b16 %v3987
        %v4109 = vunpack.c.h.b16 %v3987
        %v4110 = vunpack.c.l.b16 %v3988
        %v4111 = vunpack.c.h.b16 %v3988
        %v4112 = vunpack.c.l.b16 %v3989
        %v4113 = vunpack.c.h.b16 %v3989
        %v4114 = vunpack.c.l.b16 %v3990
        %v4115 = vunpack.c.h.b16 %v3990
        %v4116 = vunpack.c.l.b16 %v3991
        %v4117 = vunpack.c.h.b16 %v3991
        %v4118 = vunpack.c.l.b16 %v3992
        %v4119 = vunpack.c.h.b16 %v3992
        %v4120 = vunpack.c.l.b16 %v3993
        %v4121 = vunpack.c.h.b16 %v3993
        %v4122 = vunpack.c.l.b16 %v3994
        %v4123 = vunpack.c.h.b16 %v3994
        %v4124 = vunpack.c.l.b16 %v3995
        %v4125 = vunpack.c.h.b16 %v3995
        %v4126 = vunpack.c.l.b16 %v3996
        %v4127 = vunpack.c.h.b16 %v3996
        %v4128 = vunpack.c.l.b16 %v3997
        %v4129 = vunpack.c.h.b16 %v3997
        %v4130 = vunpack.c.l.b16 %v3998
        %v4131 = vunpack.c.h.b16 %v3998
        %v4132 = vunpack.c.l.b16 %v3999
        %v4133 = vunpack.c.h.b16 %v3999
        %v4134 = vunpack.c.l.b16 %v4000
        %v4135 = vunpack.c.h.b16 %v4000
        %v4136 = vunpack.c.l.b16 %v4001
        %v4137 = vunpack.c.h.b16 %v4001
        %v4138 = vunpack.c.l.b16 %v4002
        %v4139 = vunpack.c.h.b16 %v4002
        %v4140 = vunpack.c.l.b16 %v4003
        %v4141 = vunpack.c.h.b16 %v4003
        %v4142 = vunpack.c.l.b16 %v4004
        %v4143 = vunpack.c.h.b16 %v4004
        %v4144 = vunpack.c.l.b16 %v4005
        %v4145 = vunpack.c.h.b16 %v4005
        %v4146 = vunpack.c.l.b16 %v4006
        %v4147 = vunpack.c.h.b16 %v4006
        %v4148 = vunpack.c.l.b16 %v4007
        %v4149 = vunpack.c.h.b16 %v4007
        %v4150 = vunpack.c.l.b16 %v4008
        %v4151 = vunpack.c.h.b16 %v4008
        %v4152 = vunpack.c.l.b16 %v4009
        %v4153 = vunpack.c.h.b16 %v4009
        %v4154 = vunpack.c.l.b16 %v4010
        %v4155 = vunpack.c.h.b16 %v4010
        %v4156 = vunpack.c.l.b16 %v4011
        %v4157 = vunpack.c.h.b16 %v4011
        %v4158 = vunpack.c.l.b16 %v4012
        %v4159 = vunpack.c.h.b16 %v4012
        %v4160 = vpack.c.b16 %v4098, %v4096
        %v4161 = vpack.c.b16 %v4099, %v4097
        %v4162 = vpack.c.b16 %v4102, %v4100
        %v4163 = vpack.c.b16 %v4103, %v4101
        %v4164 = vpack.c.b16 %v4106, %v4104
        %v4165 = vpack.c.b16 %v4107, %v4105
        %v4166 = vpack.c.b16 %v4110, %v4108
        %v4167 = vpack.c.b16 %v4111, %v4109
        %v4168 = vpack.c.b16 %v4114, %v4112
        %v4169 = vpack.c.b16 %v4115, %v4113
        %v4170 = vpack.c.b16 %v4118, %v4116
        %v4171 = vpack.c.b16 %v4119, %v4117
        %v4172 = vpack.c.b16 %v4122, %v4120
        %v4173 = vpack.c.b16 %v4123, %v4121
        %v4174 = vpack.c.b16 %v4126, %v4124
        %v4175 = vpack.c.b16 %v4127, %v4125
        %v4176 = vpack.c.b16 %v4130, %v4128
        %v4177 = vpack.c.b16 %v4131, %v4129
        %v4178 = vpack.c.b16 %v4134, %v4132
        %v4179 = vpack.c.b16 %v4135, %v4133
        %v4180 = vpack.c.b16 %v4138, %v4136
        %v4181 = vpack.c.b16 %v4139, %v4137
        %v4182 = vpack.c.b16 %v4142, %v4140
        %v4183 = vpack.c.b16 %v4143, %v4141
        %v4184 = vpack.c.b16 %v4146, %v4144
        %v4185 = vpack.c.b16 %v4147, %v4145
        %v4186 = vpack.c.b16 %v4150, %v4148
        %v4187 = vpack.c.b16 %v4151, %v4149
        %v4188 = vpack.c.b16 %v4154, %v4152
        %v4189 = vpack.c.b16 %v4155, %v4153
        %v4190 = vpack.c.b16 %v4158, %v4156
        %v4191 = vpack.c.b16 %v4159, %v4157
        %4224 = vmatprep.subr.bf16.mxu0 %v4175
        %4225 = vmatpush1.bf16.msra.mxu0 %v4174
        %4226 = vmatprep.subr.bf16.mxu0 %v4173
        %4227 = vmatpush1.bf16.msra.mxu0 %v4172
        %4228 = vmatprep.subr.bf16.mxu0 %v4171
        %4229 = vmatpush1.bf16.msra.mxu0 %v4170
        %4230 = vmatprep.subr.bf16.mxu0 %v4169
        %4231 = vmatpush1.bf16.msra.mxu0 %v4168
        %4232 = vmatprep.subr.bf16.mxu0 %v4167
        %4233 = vmatpush1.bf16.msra.mxu0 %v4166
        %4234 = vmatprep.subr.bf16.mxu0 %v4165
        %4235 = vmatpush1.bf16.msra.mxu0 %v4164
        %4236 = vmatprep.subr.bf16.mxu0 %v4163
        %4237 = vmatpush1.bf16.msra.mxu0 %v4162
        %4238 = vmatprep.subr.bf16.mxu0 %v4161
        %4239 = vmatpush1.bf16.msra.mxu0 %v4160
        %4240 = vmatprep.subr.bf16.mxu0 %v4191
        %4241 = vmatpush2.bf16.msra.mxu0 %v4190
        %4242 = vmatprep.subr.bf16.mxu0 %v4189
        %4243 = vmatpush2.bf16.msra.mxu0 %v4188
        %4244 = vmatprep.subr.bf16.mxu0 %v4187
        %4245 = vmatpush2.bf16.msra.mxu0 %v4186
        %4246 = vmatprep.subr.bf16.mxu0 %v4185
        %4247 = vmatpush2.bf16.msra.mxu0 %v4184
        %4248 = vmatprep.subr.bf16.mxu0 %v4183
        %4249 = vmatpush2.bf16.msra.mxu0 %v4182
        %4250 = vmatprep.subr.bf16.mxu0 %v4181
        %4251 = vmatpush2.bf16.msra.mxu0 %v4180
        %4252 = vmatprep.subr.bf16.mxu0 %v4179
        %4253 = vmatpush2.bf16.msra.mxu0 %v4178
        %4254 = vmatprep.subr.bf16.mxu0 %v4177
        %4255 = vmatpush2.bf16.msra.mxu0 %v4176
        %4256 = vmatprep.mubr.bf16.mxu0 %v4041
        %4257 = vmatmul.mubr.bf16.gmra.mxu0 %v4029
        %v4258 = vpop.f32.mrf.mxu0
        %v4259 = vadd.f32 0.0, %v4258
        %v4260 = vpop.f32.mrf.mxu0
        %v4261 = vadd.f32 0.0, %v4260
        %v4262 = vpop.f32.mrf.mxu0
        %v4263 = vadd.f32 0.0, %v4262
        %v4264 = vpop.f32.mrf.mxu0
        %v4265 = vadd.f32 0.0, %v4264
        %4266 = vmatprep.mubr.bf16.mxu0 %v4059
        %4267 = vmatmul.mubr.bf16.gmra.mxu0 %v4050
        %v4268 = vpop.f32.mrf.mxu0
        %v4269 = vadd.f32 0.0, %v4268
        %v4270 = vpop.f32.mrf.mxu0
        %v4271 = vadd.f32 0.0, %v4270
        %v4272 = vpop.f32.mrf.mxu0
        %v4273 = vadd.f32 0.0, %v4272
        %v4274 = vpop.f32.mrf.mxu0
        %v4275 = vadd.f32 0.0, %v4274
        %4276 = vdwg.mxu0
        %v4277 = vadd.f32 %v3971, %v4259
        %v4278 = vadd.f32 %v3972, %v4261
        %v4279 = vadd.f32 %v3973, %v4263
        %v4280 = vadd.f32 %v3974, %v4265
        %v4281 = vadd.f32 %v3975, %v4269
        %v4282 = vadd.f32 %v3976, %v4271
        %v4283 = vadd.f32 %v3977, %v4273
        %v4284 = vadd.f32 %v3978, %v4275
        %v4285 = vld [vmem:[#allocation4] sm:$0xcc]
        %s4286 = scalar_lea.vmem [#allocation11], 1024
        %v4287 = vld [vmem:[%s4286] sm:$0xff]
        %v4288 = vld [vmem:[%s4286 + $0x8] sm:$0xff]
        %v4289 = vld [vmem:[%s4286 + $0x10] sm:$0xff]
        %v4290 = vld [vmem:[%s4286 + $0x18] sm:$0xff]
        %v4291 = vld [vmem:[%s4286 + $0x20] sm:$0xff]
        %v4292 = vld [vmem:[%s4286 + $0x28] sm:$0xff]
        %v4293 = vld [vmem:[%s4286 + $0x30] sm:$0xff]
        %v4294 = vld [vmem:[%s4286 + $0x38] sm:$0xff]
        %v4295 = vld [vmem:[%s4286 + $0x40] sm:$0xff]
        %v4296 = vld [vmem:[%s4286 + $0x48] sm:$0xff]
        %v4297 = vld [vmem:[%s4286 + $0x50] sm:$0xff]
        %v4298 = vld [vmem:[%s4286 + $0x58] sm:$0xff]
        %v4299 = vld [vmem:[%s4286 + $0x60] sm:$0xff]
        %v4300 = vld [vmem:[%s4286 + $0x68] sm:$0xff]
        %v4301 = vld [vmem:[%s4286 + $0x70] sm:$0xff]
        %v4302 = vld [vmem:[%s4286 + $0x78] sm:$0xff]
        %v4303 = vld [vmem:[%s4286 + $0x80] sm:$0xff]
        %v4304 = vld [vmem:[%s4286 + $0x88] sm:$0xff]
        %v4305 = vld [vmem:[%s4286 + $0x90] sm:$0xff]
        %v4306 = vld [vmem:[%s4286 + $0x98] sm:$0xff]
        %v4307 = vld [vmem:[%s4286 + $0xa0] sm:$0xff]
        %v4308 = vld [vmem:[%s4286 + $0xa8] sm:$0xff]
        %v4309 = vld [vmem:[%s4286 + $0xb0] sm:$0xff]
        %v4310 = vld [vmem:[%s4286 + $0xb8] sm:$0xff]
        %v4311 = vld [vmem:[%s4286 + $0xc0] sm:$0xff]
        %v4312 = vld [vmem:[%s4286 + $0xc8] sm:$0xff]
        %v4313 = vld [vmem:[%s4286 + $0xd0] sm:$0xff]
        %v4314 = vld [vmem:[%s4286 + $0xd8] sm:$0xff]
        %v4315 = vld [vmem:[%s4286 + $0xe0] sm:$0xff]
        %v4316 = vld [vmem:[%s4286 + $0xe8] sm:$0xff]
        %v4317 = vld [vmem:[%s4286 + $0xf0] sm:$0xff]
        %v4318 = vld [vmem:[%s4286 + $0xf8] sm:$0xff]
        %v4320 = vunpack.c.l.b16 %v4285
        %v4321 = vunpack.c.h.b16 %v4285
        %v4322 = vpack.c.b16 %v3201, %v4320
        %v4323 = vpack.c.b16 %v3202, %v4321
        %v4324 = vrot.slane %v4322, 2
        %v4325 = vrot.slane %v3211, 2
        %v4326 = vsel %vm2796, %v4324, %v4325
        %v4327 = vrot.slane %v4323, 2
        %v4328 = vrot.slane %v3212, 2
        %v4329 = vsel %vm2796, %v4327, %v4328
        %v4330 = vrot.slane %v4016, 2
        %v4331 = vsel %vm2796, %v4325, %v4330
        %v4332 = vrot.slane %v4017, 2
        %v4333 = vsel %vm2796, %v4328, %v4332
        %v4370 = vunpack.c.l.b16 %v4287
        %v4371 = vunpack.c.h.b16 %v4287
        %v4372 = vunpack.c.l.b16 %v4288
        %v4373 = vunpack.c.h.b16 %v4288
        %v4374 = vunpack.c.l.b16 %v4289
        %v4375 = vunpack.c.h.b16 %v4289
        %v4376 = vunpack.c.l.b16 %v4290
        %v4377 = vunpack.c.h.b16 %v4290
        %v4378 = vunpack.c.l.b16 %v4291
        %v4379 = vunpack.c.h.b16 %v4291
        %v4380 = vunpack.c.l.b16 %v4292
        %v4381 = vunpack.c.h.b16 %v4292
        %v4382 = vunpack.c.l.b16 %v4293
        %v4383 = vunpack.c.h.b16 %v4293
        %v4384 = vunpack.c.l.b16 %v4294
        %v4385 = vunpack.c.h.b16 %v4294
        %v4386 = vunpack.c.l.b16 %v4295
        %v4387 = vunpack.c.h.b16 %v4295
        %v4388 = vunpack.c.l.b16 %v4296
        %v4389 = vunpack.c.h.b16 %v4296
        %v4390 = vunpack.c.l.b16 %v4297
        %v4391 = vunpack.c.h.b16 %v4297
        %v4392 = vunpack.c.l.b16 %v4298
        %v4393 = vunpack.c.h.b16 %v4298
        %v4394 = vunpack.c.l.b16 %v4299
        %v4395 = vunpack.c.h.b16 %v4299
        %v4396 = vunpack.c.l.b16 %v4300
        %v4397 = vunpack.c.h.b16 %v4300
        %v4398 = vunpack.c.l.b16 %v4301
        %v4399 = vunpack.c.h.b16 %v4301
        %v4400 = vunpack.c.l.b16 %v4302
        %v4401 = vunpack.c.h.b16 %v4302
        %v4402 = vunpack.c.l.b16 %v4303
        %v4403 = vunpack.c.h.b16 %v4303
        %v4404 = vunpack.c.l.b16 %v4304
        %v4405 = vunpack.c.h.b16 %v4304
        %v4406 = vunpack.c.l.b16 %v4305
        %v4407 = vunpack.c.h.b16 %v4305
        %v4408 = vunpack.c.l.b16 %v4306
        %v4409 = vunpack.c.h.b16 %v4306
        %v4410 = vunpack.c.l.b16 %v4307
        %v4411 = vunpack.c.h.b16 %v4307
        %v4412 = vunpack.c.l.b16 %v4308
        %v4413 = vunpack.c.h.b16 %v4308
        %v4414 = vunpack.c.l.b16 %v4309
        %v4415 = vunpack.c.h.b16 %v4309
        %v4416 = vunpack.c.l.b16 %v4310
        %v4417 = vunpack.c.h.b16 %v4310
        %v4418 = vunpack.c.l.b16 %v4311
        %v4419 = vunpack.c.h.b16 %v4311
        %v4420 = vunpack.c.l.b16 %v4312
        %v4421 = vunpack.c.h.b16 %v4312
        %v4422 = vunpack.c.l.b16 %v4313
        %v4423 = vunpack.c.h.b16 %v4313
        %v4424 = vunpack.c.l.b16 %v4314
        %v4425 = vunpack.c.h.b16 %v4314
        %v4426 = vunpack.c.l.b16 %v4315
        %v4427 = vunpack.c.h.b16 %v4315
        %v4428 = vunpack.c.l.b16 %v4316
        %v4429 = vunpack.c.h.b16 %v4316
        %v4430 = vunpack.c.l.b16 %v4317
        %v4431 = vunpack.c.h.b16 %v4317
        %v4432 = vunpack.c.l.b16 %v4318
        %v4433 = vunpack.c.h.b16 %v4318
        %v4434 = vpack.c.b16 %v4372, %v4370
        %v4435 = vpack.c.b16 %v4373, %v4371
        %v4436 = vpack.c.b16 %v4376, %v4374
        %v4437 = vpack.c.b16 %v4377, %v4375
        %v4438 = vpack.c.b16 %v4380, %v4378
        %v4439 = vpack.c.b16 %v4381, %v4379
        %v4440 = vpack.c.b16 %v4384, %v4382
        %v4441 = vpack.c.b16 %v4385, %v4383
        %v4442 = vpack.c.b16 %v4388, %v4386
        %v4443 = vpack.c.b16 %v4389, %v4387
        %v4444 = vpack.c.b16 %v4392, %v4390
        %v4445 = vpack.c.b16 %v4393, %v4391
        %v4446 = vpack.c.b16 %v4396, %v4394
        %v4447 = vpack.c.b16 %v4397, %v4395
        %v4448 = vpack.c.b16 %v4400, %v4398
        %v4449 = vpack.c.b16 %v4401, %v4399
        %v4450 = vpack.c.b16 %v4404, %v4402
        %v4451 = vpack.c.b16 %v4405, %v4403
        %v4452 = vpack.c.b16 %v4408, %v4406
        %v4453 = vpack.c.b16 %v4409, %v4407
        %v4454 = vpack.c.b16 %v4412, %v4410
        %v4455 = vpack.c.b16 %v4413, %v4411
        %v4456 = vpack.c.b16 %v4416, %v4414
        %v4457 = vpack.c.b16 %v4417, %v4415
        %v4458 = vpack.c.b16 %v4420, %v4418
        %v4459 = vpack.c.b16 %v4421, %v4419
        %v4460 = vpack.c.b16 %v4424, %v4422
        %v4461 = vpack.c.b16 %v4425, %v4423
        %v4462 = vpack.c.b16 %v4428, %v4426
        %v4463 = vpack.c.b16 %v4429, %v4427
        %v4464 = vpack.c.b16 %v4432, %v4430
        %v4465 = vpack.c.b16 %v4433, %v4431
        %4498 = vmatprep.subr.bf16.mxu0 %v4449
        %4499 = vmatpush1.bf16.msra.mxu0 %v4448
        %4500 = vmatprep.subr.bf16.mxu0 %v4447
        %4501 = vmatpush1.bf16.msra.mxu0 %v4446
        %4502 = vmatprep.subr.bf16.mxu0 %v4445
        %4503 = vmatpush1.bf16.msra.mxu0 %v4444
        %4504 = vmatprep.subr.bf16.mxu0 %v4443
        %4505 = vmatpush1.bf16.msra.mxu0 %v4442
        %4506 = vmatprep.subr.bf16.mxu0 %v4441
        %4507 = vmatpush1.bf16.msra.mxu0 %v4440
        %4508 = vmatprep.subr.bf16.mxu0 %v4439
        %4509 = vmatpush1.bf16.msra.mxu0 %v4438
        %4510 = vmatprep.subr.bf16.mxu0 %v4437
        %4511 = vmatpush1.bf16.msra.mxu0 %v4436
        %4512 = vmatprep.subr.bf16.mxu0 %v4435
        %4513 = vmatpush1.bf16.msra.mxu0 %v4434
        %4514 = vmatprep.subr.bf16.mxu0 %v4465
        %4515 = vmatpush2.bf16.msra.mxu0 %v4464
        %4516 = vmatprep.subr.bf16.mxu0 %v4463
        %4517 = vmatpush2.bf16.msra.mxu0 %v4462
        %4518 = vmatprep.subr.bf16.mxu0 %v4461
        %4519 = vmatpush2.bf16.msra.mxu0 %v4460
        %4520 = vmatprep.subr.bf16.mxu0 %v4459
        %4521 = vmatpush2.bf16.msra.mxu0 %v4458
        %4522 = vmatprep.subr.bf16.mxu0 %v4457
        %4523 = vmatpush2.bf16.msra.mxu0 %v4456
        %4524 = vmatprep.subr.bf16.mxu0 %v4455
        %4525 = vmatpush2.bf16.msra.mxu0 %v4454
        %4526 = vmatprep.subr.bf16.mxu0 %v4453
        %4527 = vmatpush2.bf16.msra.mxu0 %v4452
        %4528 = vmatprep.subr.bf16.mxu0 %v4451
        %4529 = vmatpush2.bf16.msra.mxu0 %v4450
        %4530 = vmatprep.mubr.bf16.mxu0 %v4329
        %4531 = vmatmul.mubr.bf16.gmra.mxu0 %v4326
        %v4532 = vpop.f32.mrf.mxu0
        %v4533 = vadd.f32 0.0, %v4532
        %v4534 = vpop.f32.mrf.mxu0
        %v4535 = vadd.f32 0.0, %v4534
        %v4536 = vpop.f32.mrf.mxu0
        %v4537 = vadd.f32 0.0, %v4536
        %v4538 = vpop.f32.mrf.mxu0
        %v4539 = vadd.f32 0.0, %v4538
        %4540 = vmatprep.mubr.bf16.mxu0 %v4333
        %4541 = vmatmul.mubr.bf16.gmra.mxu0 %v4331
        %v4542 = vpop.f32.mrf.mxu0
        %v4543 = vadd.f32 0.0, %v4542
        %v4544 = vpop.f32.mrf.mxu0
        %v4545 = vadd.f32 0.0, %v4544
        %v4546 = vpop.f32.mrf.mxu0
        %v4547 = vadd.f32 0.0, %v4546
        %v4548 = vpop.f32.mrf.mxu0
        %v4549 = vadd.f32 0.0, %v4548
        %4550 = vdwg.mxu0
        %v4551 = vadd.f32 %v4277, %v4533
        %v4552 = vadd.f32 %v4278, %v4535
        %v4553 = vadd.f32 %v4279, %v4537
        %v4554 = vadd.f32 %v4280, %v4539
        %v4555 = vadd.f32 %v4281, %v4543
        %v4556 = vadd.f32 %v4282, %v4545
        %v4557 = vadd.f32 %v4283, %v4547
        %v4558 = vadd.f32 %v4284, %v4549
        %v4559 = vld [vmem:[#allocation4 + $0x20] sm:$0x77]
        %s4560 = scalar_lea.vmem [#allocation11], 1280
        %v4561 = vld [vmem:[%s4560] sm:$0xff]
        %v4562 = vld [vmem:[%s4560 + $0x8] sm:$0xff]
        %v4563 = vld [vmem:[%s4560 + $0x10] sm:$0xff]
        %v4564 = vld [vmem:[%s4560 + $0x18] sm:$0xff]
        %v4565 = vld [vmem:[%s4560 + $0x20] sm:$0xff]
        %v4566 = vld [vmem:[%s4560 + $0x28] sm:$0xff]
        %v4567 = vld [vmem:[%s4560 + $0x30] sm:$0xff]
        %v4568 = vld [vmem:[%s4560 + $0x38] sm:$0xff]
        %v4569 = vld [vmem:[%s4560 + $0x40] sm:$0xff]
        %v4570 = vld [vmem:[%s4560 + $0x48] sm:$0xff]
        %v4571 = vld [vmem:[%s4560 + $0x50] sm:$0xff]
        %v4572 = vld [vmem:[%s4560 + $0x58] sm:$0xff]
        %v4573 = vld [vmem:[%s4560 + $0x60] sm:$0xff]
        %v4574 = vld [vmem:[%s4560 + $0x68] sm:$0xff]
        %v4575 = vld [vmem:[%s4560 + $0x70] sm:$0xff]
        %v4576 = vld [vmem:[%s4560 + $0x78] sm:$0xff]
        %v4577 = vld [vmem:[%s4560 + $0x80] sm:$0xff]
        %v4578 = vld [vmem:[%s4560 + $0x88] sm:$0xff]
        %v4579 = vld [vmem:[%s4560 + $0x90] sm:$0xff]
        %v4580 = vld [vmem:[%s4560 + $0x98] sm:$0xff]
        %v4581 = vld [vmem:[%s4560 + $0xa0] sm:$0xff]
        %v4582 = vld [vmem:[%s4560 + $0xa8] sm:$0xff]
        %v4583 = vld [vmem:[%s4560 + $0xb0] sm:$0xff]
        %v4584 = vld [vmem:[%s4560 + $0xb8] sm:$0xff]
        %v4585 = vld [vmem:[%s4560 + $0xc0] sm:$0xff]
        %v4586 = vld [vmem:[%s4560 + $0xc8] sm:$0xff]
        %v4587 = vld [vmem:[%s4560 + $0xd0] sm:$0xff]
        %v4588 = vld [vmem:[%s4560 + $0xd8] sm:$0xff]
        %v4589 = vld [vmem:[%s4560 + $0xe0] sm:$0xff]
        %v4590 = vld [vmem:[%s4560 + $0xe8] sm:$0xff]
        %v4591 = vld [vmem:[%s4560 + $0xf0] sm:$0xff]
        %v4592 = vld [vmem:[%s4560 + $0xf8] sm:$0xff]
        %v4594 = vunpack.c.l.b16 %v4559
        %v4595 = vunpack.c.h.b16 %v4559
        %v4596 = vpack.c.b16 %v4594, %v4594
        %v4597 = vpack.c.b16 %v4595, %v4595
        %vm4598 = vsmask.f32 5376
        %v4600 = vshrl.u32 %v4322, 16
        %v4602 = vrot.slane %v4600, 2
        %v4603 = vshll.u32 %v4322, 16
        %v4605 = vrot.slane %v4603, 3
        %v4606 = vor.u32 %v4602, %v4605
        %v4607 = vrot.slane %v3239, 2
        %v4608 = vrot.slane %v3223, 3
        %v4609 = vor.u32 %v4607, %v4608
        %v4610 = vsel %vm4598, %v4606, %v4609
        %v4612 = vshrl.u32 %v4323, 16
        %v4614 = vrot.slane %v4612, 2
        %v4615 = vshll.u32 %v4323, 16
        %v4617 = vrot.slane %v4615, 3
        %v4618 = vor.u32 %v4614, %v4617
        %v4619 = vrot.slane %v3247, 2
        %v4620 = vrot.slane %v3235, 3
        %v4621 = vor.u32 %v4619, %v4620
        %v4622 = vsel %vm4598, %v4618, %v4621
        %v4624 = vshrl.u32 %v4596, 16
        %v4626 = vrot.slane %v4624, 2
        %v4627 = vshll.u32 %v4596, 16
        %v4629 = vrot.slane %v4627, 3
        %v4630 = vor.u32 %v4626, %v4629
        %v4631 = vsel %vm4598, %v4609, %v4630
        %v4633 = vshrl.u32 %v4597, 16
        %v4635 = vrot.slane %v4633, 2
        %v4636 = vshll.u32 %v4597, 16
        %v4638 = vrot.slane %v4636, 3
        %v4639 = vor.u32 %v4635, %v4638
        %v4640 = vsel %vm4598, %v4621, %v4639
        %v4677 = vunpack.c.l.b16 %v4561
        %v4678 = vunpack.c.h.b16 %v4561
        %v4679 = vunpack.c.l.b16 %v4562
        %v4680 = vunpack.c.h.b16 %v4562
        %v4681 = vunpack.c.l.b16 %v4563
        %v4682 = vunpack.c.h.b16 %v4563
        %v4683 = vunpack.c.l.b16 %v4564
        %v4684 = vunpack.c.h.b16 %v4564
        %v4685 = vunpack.c.l.b16 %v4565
        %v4686 = vunpack.c.h.b16 %v4565
        %v4687 = vunpack.c.l.b16 %v4566
        %v4688 = vunpack.c.h.b16 %v4566
        %v4689 = vunpack.c.l.b16 %v4567
        %v4690 = vunpack.c.h.b16 %v4567
        %v4691 = vunpack.c.l.b16 %v4568
        %v4692 = vunpack.c.h.b16 %v4568
        %v4693 = vunpack.c.l.b16 %v4569
        %v4694 = vunpack.c.h.b16 %v4569
        %v4695 = vunpack.c.l.b16 %v4570
        %v4696 = vunpack.c.h.b16 %v4570
        %v4697 = vunpack.c.l.b16 %v4571
        %v4698 = vunpack.c.h.b16 %v4571
        %v4699 = vunpack.c.l.b16 %v4572
        %v4700 = vunpack.c.h.b16 %v4572
        %v4701 = vunpack.c.l.b16 %v4573
        %v4702 = vunpack.c.h.b16 %v4573
        %v4703 = vunpack.c.l.b16 %v4574
        %v4704 = vunpack.c.h.b16 %v4574
        %v4705 = vunpack.c.l.b16 %v4575
        %v4706 = vunpack.c.h.b16 %v4575
        %v4707 = vunpack.c.l.b16 %v4576
        %v4708 = vunpack.c.h.b16 %v4576
        %v4709 = vunpack.c.l.b16 %v4577
        %v4710 = vunpack.c.h.b16 %v4577
        %v4711 = vunpack.c.l.b16 %v4578
        %v4712 = vunpack.c.h.b16 %v4578
        %v4713 = vunpack.c.l.b16 %v4579
        %v4714 = vunpack.c.h.b16 %v4579
        %v4715 = vunpack.c.l.b16 %v4580
        %v4716 = vunpack.c.h.b16 %v4580
        %v4717 = vunpack.c.l.b16 %v4581
        %v4718 = vunpack.c.h.b16 %v4581
        %v4719 = vunpack.c.l.b16 %v4582
        %v4720 = vunpack.c.h.b16 %v4582
        %v4721 = vunpack.c.l.b16 %v4583
        %v4722 = vunpack.c.h.b16 %v4583
        %v4723 = vunpack.c.l.b16 %v4584
        %v4724 = vunpack.c.h.b16 %v4584
        %v4725 = vunpack.c.l.b16 %v4585
        %v4726 = vunpack.c.h.b16 %v4585
        %v4727 = vunpack.c.l.b16 %v4586
        %v4728 = vunpack.c.h.b16 %v4586
        %v4729 = vunpack.c.l.b16 %v4587
        %v4730 = vunpack.c.h.b16 %v4587
        %v4731 = vunpack.c.l.b16 %v4588
        %v4732 = vunpack.c.h.b16 %v4588
        %v4733 = vunpack.c.l.b16 %v4589
        %v4734 = vunpack.c.h.b16 %v4589
        %v4735 = vunpack.c.l.b16 %v4590
        %v4736 = vunpack.c.h.b16 %v4590
        %v4737 = vunpack.c.l.b16 %v4591
        %v4738 = vunpack.c.h.b16 %v4591
        %v4739 = vunpack.c.l.b16 %v4592
        %v4740 = vunpack.c.h.b16 %v4592
        %v4741 = vpack.c.b16 %v4679, %v4677
        %v4742 = vpack.c.b16 %v4680, %v4678
        %v4743 = vpack.c.b16 %v4683, %v4681
        %v4744 = vpack.c.b16 %v4684, %v4682
        %v4745 = vpack.c.b16 %v4687, %v4685
        %v4746 = vpack.c.b16 %v4688, %v4686
        %v4747 = vpack.c.b16 %v4691, %v4689
        %v4748 = vpack.c.b16 %v4692, %v4690
        %v4749 = vpack.c.b16 %v4695, %v4693
        %v4750 = vpack.c.b16 %v4696, %v4694
        %v4751 = vpack.c.b16 %v4699, %v4697
        %v4752 = vpack.c.b16 %v4700, %v4698
        %v4753 = vpack.c.b16 %v4703, %v4701
        %v4754 = vpack.c.b16 %v4704, %v4702
        %v4755 = vpack.c.b16 %v4707, %v4705
        %v4756 = vpack.c.b16 %v4708, %v4706
        %v4757 = vpack.c.b16 %v4711, %v4709
        %v4758 = vpack.c.b16 %v4712, %v4710
        %v4759 = vpack.c.b16 %v4715, %v4713
        %v4760 = vpack.c.b16 %v4716, %v4714
        %v4761 = vpack.c.b16 %v4719, %v4717
        %v4762 = vpack.c.b16 %v4720, %v4718
        %v4763 = vpack.c.b16 %v4723, %v4721
        %v4764 = vpack.c.b16 %v4724, %v4722
        %v4765 = vpack.c.b16 %v4727, %v4725
        %v4766 = vpack.c.b16 %v4728, %v4726
        %v4767 = vpack.c.b16 %v4731, %v4729
        %v4768 = vpack.c.b16 %v4732, %v4730
        %v4769 = vpack.c.b16 %v4735, %v4733
        %v4770 = vpack.c.b16 %v4736, %v4734
        %v4771 = vpack.c.b16 %v4739, %v4737
        %v4772 = vpack.c.b16 %v4740, %v4738
        %4805 = vmatprep.subr.bf16.mxu0 %v4756
        %4806 = vmatpush1.bf16.msra.mxu0 %v4755
        %4807 = vmatprep.subr.bf16.mxu0 %v4754
        %4808 = vmatpush1.bf16.msra.mxu0 %v4753
        %4809 = vmatprep.subr.bf16.mxu0 %v4752
        %4810 = vmatpush1.bf16.msra.mxu0 %v4751
        %4811 = vmatprep.subr.bf16.mxu0 %v4750
        %4812 = vmatpush1.bf16.msra.mxu0 %v4749
        %4813 = vmatprep.subr.bf16.mxu0 %v4748
        %4814 = vmatpush1.bf16.msra.mxu0 %v4747
        %4815 = vmatprep.subr.bf16.mxu0 %v4746
        %4816 = vmatpush1.bf16.msra.mxu0 %v4745
        %4817 = vmatprep.subr.bf16.mxu0 %v4744
        %4818 = vmatpush1.bf16.msra.mxu0 %v4743
        %4819 = vmatprep.subr.bf16.mxu0 %v4742
        %4820 = vmatpush1.bf16.msra.mxu0 %v4741
        %4821 = vmatprep.subr.bf16.mxu0 %v4772
        %4822 = vmatpush2.bf16.msra.mxu0 %v4771
        %4823 = vmatprep.subr.bf16.mxu0 %v4770
        %4824 = vmatpush2.bf16.msra.mxu0 %v4769
        %4825 = vmatprep.subr.bf16.mxu0 %v4768
        %4826 = vmatpush2.bf16.msra.mxu0 %v4767
        %4827 = vmatprep.subr.bf16.mxu0 %v4766
        %4828 = vmatpush2.bf16.msra.mxu0 %v4765
        %4829 = vmatprep.subr.bf16.mxu0 %v4764
        %4830 = vmatpush2.bf16.msra.mxu0 %v4763
        %4831 = vmatprep.subr.bf16.mxu0 %v4762
        %4832 = vmatpush2.bf16.msra.mxu0 %v4761
        %4833 = vmatprep.subr.bf16.mxu0 %v4760
        %4834 = vmatpush2.bf16.msra.mxu0 %v4759
        %4835 = vmatprep.subr.bf16.mxu0 %v4758
        %4836 = vmatpush2.bf16.msra.mxu0 %v4757
        %4837 = vmatprep.mubr.bf16.mxu0 %v4622
        %4838 = vmatmul.mubr.bf16.gmra.mxu0 %v4610
        %v4839 = vpop.f32.mrf.mxu0
        %v4840 = vadd.f32 0.0, %v4839
        %v4841 = vpop.f32.mrf.mxu0
        %v4842 = vadd.f32 0.0, %v4841
        %v4843 = vpop.f32.mrf.mxu0
        %v4844 = vadd.f32 0.0, %v4843
        %v4845 = vpop.f32.mrf.mxu0
        %v4846 = vadd.f32 0.0, %v4845
        %4847 = vmatprep.mubr.bf16.mxu0 %v4640
        %4848 = vmatmul.mubr.bf16.gmra.mxu0 %v4631
        %v4849 = vpop.f32.mrf.mxu0
        %v4850 = vadd.f32 0.0, %v4849
        %v4851 = vpop.f32.mrf.mxu0
        %v4852 = vadd.f32 0.0, %v4851
        %v4853 = vpop.f32.mrf.mxu0
        %v4854 = vadd.f32 0.0, %v4853
        %v4855 = vpop.f32.mrf.mxu0
        %v4856 = vadd.f32 0.0, %v4855
        %4857 = vdwg.mxu0
        %v4858 = vadd.f32 %v4551, %v4840
        %v4859 = vadd.f32 %v4552, %v4842
        %v4860 = vadd.f32 %v4553, %v4844
        %v4861 = vadd.f32 %v4554, %v4846
        %v4862 = vadd.f32 %v4555, %v4850
        %v4863 = vadd.f32 %v4556, %v4852
        %v4864 = vadd.f32 %v4557, %v4854
        %v4865 = vadd.f32 %v4558, %v4856
        %v4866 = vld [vmem:[#allocation4] sm:$0x88]
        %s4867 = scalar_lea.vmem [#allocation11], 1536
        %v4868 = vld [vmem:[%s4867] sm:$0xff]
        %v4869 = vld [vmem:[%s4867 + $0x8] sm:$0xff]
        %v4870 = vld [vmem:[%s4867 + $0x10] sm:$0xff]
        %v4871 = vld [vmem:[%s4867 + $0x18] sm:$0xff]
        %v4872 = vld [vmem:[%s4867 + $0x20] sm:$0xff]
        %v4873 = vld [vmem:[%s4867 + $0x28] sm:$0xff]
        %v4874 = vld [vmem:[%s4867 + $0x30] sm:$0xff]
        %v4875 = vld [vmem:[%s4867 + $0x38] sm:$0xff]
        %v4876 = vld [vmem:[%s4867 + $0x40] sm:$0xff]
        %v4877 = vld [vmem:[%s4867 + $0x48] sm:$0xff]
        %v4878 = vld [vmem:[%s4867 + $0x50] sm:$0xff]
        %v4879 = vld [vmem:[%s4867 + $0x58] sm:$0xff]
        %v4880 = vld [vmem:[%s4867 + $0x60] sm:$0xff]
        %v4881 = vld [vmem:[%s4867 + $0x68] sm:$0xff]
        %v4882 = vld [vmem:[%s4867 + $0x70] sm:$0xff]
        %v4883 = vld [vmem:[%s4867 + $0x78] sm:$0xff]
        %v4884 = vld [vmem:[%s4867 + $0x80] sm:$0xff]
        %v4885 = vld [vmem:[%s4867 + $0x88] sm:$0xff]
        %v4886 = vld [vmem:[%s4867 + $0x90] sm:$0xff]
        %v4887 = vld [vmem:[%s4867 + $0x98] sm:$0xff]
        %v4888 = vld [vmem:[%s4867 + $0xa0] sm:$0xff]
        %v4889 = vld [vmem:[%s4867 + $0xa8] sm:$0xff]
        %v4890 = vld [vmem:[%s4867 + $0xb0] sm:$0xff]
        %v4891 = vld [vmem:[%s4867 + $0xb8] sm:$0xff]
        %v4892 = vld [vmem:[%s4867 + $0xc0] sm:$0xff]
        %v4893 = vld [vmem:[%s4867 + $0xc8] sm:$0xff]
        %v4894 = vld [vmem:[%s4867 + $0xd0] sm:$0xff]
        %v4895 = vld [vmem:[%s4867 + $0xd8] sm:$0xff]
        %v4896 = vld [vmem:[%s4867 + $0xe0] sm:$0xff]
        %v4897 = vld [vmem:[%s4867 + $0xe8] sm:$0xff]
        %v4898 = vld [vmem:[%s4867 + $0xf0] sm:$0xff]
        %v4899 = vld [vmem:[%s4867 + $0xf8] sm:$0xff]
        %v4901 = vunpack.c.l.b16 %v4866
        %v4902 = vunpack.c.h.b16 %v4866
        %v4903 = vpack.c.b16 %v3201, %v4901
        %v4904 = vpack.c.b16 %v3202, %v4902
        %vm4905 = vcmask 1044480
        %v4906 = vrot.slane %v4903, 3
        %v4907 = vrot.slane %v3211, 3
        %v4908 = vsel %vm4905, %v4906, %v4907
        %v4909 = vrot.slane %v4904, 3
        %v4910 = vrot.slane %v3212, 3
        %v4911 = vsel %vm4905, %v4909, %v4910
        %v4912 = vrot.slane %v4596, 3
        %v4913 = vsel %vm4905, %v4907, %v4912
        %v4914 = vrot.slane %v4597, 3
        %v4915 = vsel %vm4905, %v4910, %v4914
        %v4952 = vunpack.c.l.b16 %v4868
        %v4953 = vunpack.c.h.b16 %v4868
        %v4954 = vunpack.c.l.b16 %v4869
        %v4955 = vunpack.c.h.b16 %v4869
        %v4956 = vunpack.c.l.b16 %v4870
        %v4957 = vunpack.c.h.b16 %v4870
        %v4958 = vunpack.c.l.b16 %v4871
        %v4959 = vunpack.c.h.b16 %v4871
        %v4960 = vunpack.c.l.b16 %v4872
        %v4961 = vunpack.c.h.b16 %v4872
        %v4962 = vunpack.c.l.b16 %v4873
        %v4963 = vunpack.c.h.b16 %v4873
        %v4964 = vunpack.c.l.b16 %v4874
        %v4965 = vunpack.c.h.b16 %v4874
        %v4966 = vunpack.c.l.b16 %v4875
        %v4967 = vunpack.c.h.b16 %v4875
        %v4968 = vunpack.c.l.b16 %v4876
        %v4969 = vunpack.c.h.b16 %v4876
        %v4970 = vunpack.c.l.b16 %v4877
        %v4971 = vunpack.c.h.b16 %v4877
        %v4972 = vunpack.c.l.b16 %v4878
        %v4973 = vunpack.c.h.b16 %v4878
        %v4974 = vunpack.c.l.b16 %v4879
        %v4975 = vunpack.c.h.b16 %v4879
        %v4976 = vunpack.c.l.b16 %v4880
        %v4977 = vunpack.c.h.b16 %v4880
        %v4978 = vunpack.c.l.b16 %v4881
        %v4979 = vunpack.c.h.b16 %v4881
        %v4980 = vunpack.c.l.b16 %v4882
        %v4981 = vunpack.c.h.b16 %v4882
        %v4982 = vunpack.c.l.b16 %v4883
        %v4983 = vunpack.c.h.b16 %v4883
        %v4984 = vunpack.c.l.b16 %v4884
        %v4985 = vunpack.c.h.b16 %v4884
        %v4986 = vunpack.c.l.b16 %v4885
        %v4987 = vunpack.c.h.b16 %v4885
        %v4988 = vunpack.c.l.b16 %v4886
        %v4989 = vunpack.c.h.b16 %v4886
        %v4990 = vunpack.c.l.b16 %v4887
        %v4991 = vunpack.c.h.b16 %v4887
        %v4992 = vunpack.c.l.b16 %v4888
        %v4993 = vunpack.c.h.b16 %v4888
        %v4994 = vunpack.c.l.b16 %v4889
        %v4995 = vunpack.c.h.b16 %v4889
        %v4996 = vunpack.c.l.b16 %v4890
        %v4997 = vunpack.c.h.b16 %v4890
        %v4998 = vunpack.c.l.b16 %v4891
        %v4999 = vunpack.c.h.b16 %v4891
        %v5000 = vunpack.c.l.b16 %v4892
        %v5001 = vunpack.c.h.b16 %v4892
        %v5002 = vunpack.c.l.b16 %v4893
        %v5003 = vunpack.c.h.b16 %v4893
        %v5004 = vunpack.c.l.b16 %v4894
        %v5005 = vunpack.c.h.b16 %v4894
        %v5006 = vunpack.c.l.b16 %v4895
        %v5007 = vunpack.c.h.b16 %v4895
        %v5008 = vunpack.c.l.b16 %v4896
        %v5009 = vunpack.c.h.b16 %v4896
        %v5010 = vunpack.c.l.b16 %v4897
        %v5011 = vunpack.c.h.b16 %v4897
        %v5012 = vunpack.c.l.b16 %v4898
        %v5013 = vunpack.c.h.b16 %v4898
        %v5014 = vunpack.c.l.b16 %v4899
        %v5015 = vunpack.c.h.b16 %v4899
        %v5016 = vpack.c.b16 %v4954, %v4952
        %v5017 = vpack.c.b16 %v4955, %v4953
        %v5018 = vpack.c.b16 %v4958, %v4956
        %v5019 = vpack.c.b16 %v4959, %v4957
        %v5020 = vpack.c.b16 %v4962, %v4960
        %v5021 = vpack.c.b16 %v4963, %v4961
        %v5022 = vpack.c.b16 %v4966, %v4964
        %v5023 = vpack.c.b16 %v4967, %v4965
        %v5024 = vpack.c.b16 %v4970, %v4968
        %v5025 = vpack.c.b16 %v4971, %v4969
        %v5026 = vpack.c.b16 %v4974, %v4972
        %v5027 = vpack.c.b16 %v4975, %v4973
        %v5028 = vpack.c.b16 %v4978, %v4976
        %v5029 = vpack.c.b16 %v4979, %v4977
        %v5030 = vpack.c.b16 %v4982, %v4980
        %v5031 = vpack.c.b16 %v4983, %v4981
        %v5032 = vpack.c.b16 %v4986, %v4984
        %v5033 = vpack.c.b16 %v4987, %v4985
        %v5034 = vpack.c.b16 %v4990, %v4988
        %v5035 = vpack.c.b16 %v4991, %v4989
        %v5036 = vpack.c.b16 %v4994, %v4992
        %v5037 = vpack.c.b16 %v4995, %v4993
        %v5038 = vpack.c.b16 %v4998, %v4996
        %v5039 = vpack.c.b16 %v4999, %v4997
        %v5040 = vpack.c.b16 %v5002, %v5000
        %v5041 = vpack.c.b16 %v5003, %v5001
        %v5042 = vpack.c.b16 %v5006, %v5004
        %v5043 = vpack.c.b16 %v5007, %v5005
        %v5044 = vpack.c.b16 %v5010, %v5008
        %v5045 = vpack.c.b16 %v5011, %v5009
        %v5046 = vpack.c.b16 %v5014, %v5012
        %v5047 = vpack.c.b16 %v5015, %v5013
        %5080 = vmatprep.subr.bf16.mxu0 %v5031
        %5081 = vmatpush1.bf16.msra.mxu0 %v5030
        %5082 = vmatprep.subr.bf16.mxu0 %v5029
        %5083 = vmatpush1.bf16.msra.mxu0 %v5028
        %5084 = vmatprep.subr.bf16.mxu0 %v5027
        %5085 = vmatpush1.bf16.msra.mxu0 %v5026
        %5086 = vmatprep.subr.bf16.mxu0 %v5025
        %5087 = vmatpush1.bf16.msra.mxu0 %v5024
        %5088 = vmatprep.subr.bf16.mxu0 %v5023
        %5089 = vmatpush1.bf16.msra.mxu0 %v5022
        %5090 = vmatprep.subr.bf16.mxu0 %v5021
        %5091 = vmatpush1.bf16.msra.mxu0 %v5020
        %5092 = vmatprep.subr.bf16.mxu0 %v5019
        %5093 = vmatpush1.bf16.msra.mxu0 %v5018
        %5094 = vmatprep.subr.bf16.mxu0 %v5017
        %5095 = vmatpush1.bf16.msra.mxu0 %v5016
        %5096 = vmatprep.subr.bf16.mxu0 %v5047
        %5097 = vmatpush2.bf16.msra.mxu0 %v5046
        %5098 = vmatprep.subr.bf16.mxu0 %v5045
        %5099 = vmatpush2.bf16.msra.mxu0 %v5044
        %5100 = vmatprep.subr.bf16.mxu0 %v5043
        %5101 = vmatpush2.bf16.msra.mxu0 %v5042
        %5102 = vmatprep.subr.bf16.mxu0 %v5041
        %5103 = vmatpush2.bf16.msra.mxu0 %v5040
        %5104 = vmatprep.subr.bf16.mxu0 %v5039
        %5105 = vmatpush2.bf16.msra.mxu0 %v5038
        %5106 = vmatprep.subr.bf16.mxu0 %v5037
        %5107 = vmatpush2.bf16.msra.mxu0 %v5036
        %5108 = vmatprep.subr.bf16.mxu0 %v5035
        %5109 = vmatpush2.bf16.msra.mxu0 %v5034
        %5110 = vmatprep.subr.bf16.mxu0 %v5033
        %5111 = vmatpush2.bf16.msra.mxu0 %v5032
        %5112 = vmatprep.mubr.bf16.mxu0 %v4911
        %5113 = vmatmul.mubr.bf16.gmra.mxu0 %v4908
        %v5114 = vpop.f32.mrf.mxu0
        %v5115 = vadd.f32 0.0, %v5114
        %v5116 = vpop.f32.mrf.mxu0
        %v5117 = vadd.f32 0.0, %v5116
        %v5118 = vpop.f32.mrf.mxu0
        %v5119 = vadd.f32 0.0, %v5118
        %v5120 = vpop.f32.mrf.mxu0
        %v5121 = vadd.f32 0.0, %v5120
        %5122 = vmatprep.mubr.bf16.mxu0 %v4915
        %5123 = vmatmul.mubr.bf16.gmra.mxu0 %v4913
        %v5124 = vpop.f32.mrf.mxu0
        %v5125 = vadd.f32 0.0, %v5124
        %v5126 = vpop.f32.mrf.mxu0
        %v5127 = vadd.f32 0.0, %v5126
        %v5128 = vpop.f32.mrf.mxu0
        %v5129 = vadd.f32 0.0, %v5128
        %v5130 = vpop.f32.mrf.mxu0
        %v5131 = vadd.f32 0.0, %v5130
        %5132 = vdwg.mxu0
        %v5133 = vadd.f32 %v4858, %v5115
        %v5134 = vadd.f32 %v4859, %v5117
        %v5135 = vadd.f32 %v4860, %v5119
        %v5136 = vadd.f32 %v4861, %v5121
        %v5137 = vadd.f32 %v4862, %v5125
        %v5138 = vadd.f32 %v4863, %v5127
        %v5139 = vadd.f32 %v4864, %v5129
        %v5140 = vadd.f32 %v4865, %v5131
        %v5141 = vld [vmem:[#allocation4 + $0x20] sm:$0xff]
        %s5142 = scalar_lea.vmem [#allocation11], 1792
        %v5143 = vld [vmem:[%s5142] sm:$0xff]
        %v5144 = vld [vmem:[%s5142 + $0x8] sm:$0xff]
        %v5145 = vld [vmem:[%s5142 + $0x10] sm:$0xff]
        %v5146 = vld [vmem:[%s5142 + $0x18] sm:$0xff]
        %v5147 = vld [vmem:[%s5142 + $0x20] sm:$0xff]
        %v5148 = vld [vmem:[%s5142 + $0x28] sm:$0xff]
        %v5149 = vld [vmem:[%s5142 + $0x30] sm:$0xff]
        %v5150 = vld [vmem:[%s5142 + $0x38] sm:$0xff]
        %v5151 = vld [vmem:[%s5142 + $0x40] sm:$0xff]
        %v5152 = vld [vmem:[%s5142 + $0x48] sm:$0xff]
        %v5153 = vld [vmem:[%s5142 + $0x50] sm:$0xff]
        %v5154 = vld [vmem:[%s5142 + $0x58] sm:$0xff]
        %v5155 = vld [vmem:[%s5142 + $0x60] sm:$0xff]
        %v5156 = vld [vmem:[%s5142 + $0x68] sm:$0xff]
        %v5157 = vld [vmem:[%s5142 + $0x70] sm:$0xff]
        %v5158 = vld [vmem:[%s5142 + $0x78] sm:$0xff]
        %v5159 = vld [vmem:[%s5142 + $0x80] sm:$0xff]
        %v5160 = vld [vmem:[%s5142 + $0x88] sm:$0xff]
        %v5161 = vld [vmem:[%s5142 + $0x90] sm:$0xff]
        %v5162 = vld [vmem:[%s5142 + $0x98] sm:$0xff]
        %v5163 = vld [vmem:[%s5142 + $0xa0] sm:$0xff]
        %v5164 = vld [vmem:[%s5142 + $0xa8] sm:$0xff]
        %v5165 = vld [vmem:[%s5142 + $0xb0] sm:$0xff]
        %v5166 = vld [vmem:[%s5142 + $0xb8] sm:$0xff]
        %v5167 = vld [vmem:[%s5142 + $0xc0] sm:$0xff]
        %v5168 = vld [vmem:[%s5142 + $0xc8] sm:$0xff]
        %v5169 = vld [vmem:[%s5142 + $0xd0] sm:$0xff]
        %v5170 = vld [vmem:[%s5142 + $0xd8] sm:$0xff]
        %v5171 = vld [vmem:[%s5142 + $0xe0] sm:$0xff]
        %v5172 = vld [vmem:[%s5142 + $0xe8] sm:$0xff]
        %v5173 = vld [vmem:[%s5142 + $0xf0] sm:$0xff]
        %v5174 = vld [vmem:[%s5142 + $0xf8] sm:$0xff]
        %v5176 = vunpack.c.l.b16 %v5141
        %v5177 = vunpack.c.h.b16 %v5141
        %v5178 = vpack.c.b16 %v5176, %v5176
        %v5179 = vpack.c.b16 %v5177, %v5177
        %vm5180 = vsmask.f32 4352
        %v5182 = vshrl.u32 %v4903, 16
        %v5184 = vrot.slane %v5182, 3
        %v5185 = vshll.u32 %v4903, 16
        %v5187 = vrot.slane %v5185, 4
        %v5188 = vor.u32 %v5184, %v5187
        %v5189 = vrot.slane %v3239, 3
        %v5190 = vrot.slane %v3223, 4
        %v5191 = vor.u32 %v5189, %v5190
        %v5192 = vsel %vm5180, %v5188, %v5191
        %v5194 = vshrl.u32 %v4904, 16
        %v5196 = vrot.slane %v5194, 3
        %v5197 = vshll.u32 %v4904, 16
        %v5199 = vrot.slane %v5197, 4
        %v5200 = vor.u32 %v5196, %v5199
        %v5201 = vrot.slane %v3247, 3
        %v5202 = vrot.slane %v3235, 4
        %v5203 = vor.u32 %v5201, %v5202
        %v5204 = vsel %vm5180, %v5200, %v5203
        %v5206 = vshrl.u32 %v5178, 16
        %v5208 = vrot.slane %v5206, 3
        %v5209 = vshll.u32 %v5178, 16
        %v5211 = vrot.slane %v5209, 4
        %v5212 = vor.u32 %v5208, %v5211
        %v5213 = vsel %vm5180, %v5191, %v5212
        %v5215 = vshrl.u32 %v5179, 16
        %v5217 = vrot.slane %v5215, 3
        %v5218 = vshll.u32 %v5179, 16
        %v5220 = vrot.slane %v5218, 4
        %v5221 = vor.u32 %v5217, %v5220
        %v5222 = vsel %vm5180, %v5203, %v5221
        %v5259 = vunpack.c.l.b16 %v5143
        %v5260 = vunpack.c.h.b16 %v5143
        %v5261 = vunpack.c.l.b16 %v5144
        %v5262 = vunpack.c.h.b16 %v5144
        %v5263 = vunpack.c.l.b16 %v5145
        %v5264 = vunpack.c.h.b16 %v5145
        %v5265 = vunpack.c.l.b16 %v5146
        %v5266 = vunpack.c.h.b16 %v5146
        %v5267 = vunpack.c.l.b16 %v5147
        %v5268 = vunpack.c.h.b16 %v5147
        %v5269 = vunpack.c.l.b16 %v5148
        %v5270 = vunpack.c.h.b16 %v5148
        %v5271 = vunpack.c.l.b16 %v5149
        %v5272 = vunpack.c.h.b16 %v5149
        %v5273 = vunpack.c.l.b16 %v5150
        %v5274 = vunpack.c.h.b16 %v5150
        %v5275 = vunpack.c.l.b16 %v5151
        %v5276 = vunpack.c.h.b16 %v5151
        %v5277 = vunpack.c.l.b16 %v5152
        %v5278 = vunpack.c.h.b16 %v5152
        %v5279 = vunpack.c.l.b16 %v5153
        %v5280 = vunpack.c.h.b16 %v5153
        %v5281 = vunpack.c.l.b16 %v5154
        %v5282 = vunpack.c.h.b16 %v5154
        %v5283 = vunpack.c.l.b16 %v5155
        %v5284 = vunpack.c.h.b16 %v5155
        %v5285 = vunpack.c.l.b16 %v5156
        %v5286 = vunpack.c.h.b16 %v5156
        %v5287 = vunpack.c.l.b16 %v5157
        %v5288 = vunpack.c.h.b16 %v5157
        %v5289 = vunpack.c.l.b16 %v5158
        %v5290 = vunpack.c.h.b16 %v5158
        %v5291 = vunpack.c.l.b16 %v5159
        %v5292 = vunpack.c.h.b16 %v5159
        %v5293 = vunpack.c.l.b16 %v5160
        %v5294 = vunpack.c.h.b16 %v5160
        %v5295 = vunpack.c.l.b16 %v5161
        %v5296 = vunpack.c.h.b16 %v5161
        %v5297 = vunpack.c.l.b16 %v5162
        %v5298 = vunpack.c.h.b16 %v5162
        %v5299 = vunpack.c.l.b16 %v5163
        %v5300 = vunpack.c.h.b16 %v5163
        %v5301 = vunpack.c.l.b16 %v5164
        %v5302 = vunpack.c.h.b16 %v5164
        %v5303 = vunpack.c.l.b16 %v5165
        %v5304 = vunpack.c.h.b16 %v5165
        %v5305 = vunpack.c.l.b16 %v5166
        %v5306 = vunpack.c.h.b16 %v5166
        %v5307 = vunpack.c.l.b16 %v5167
        %v5308 = vunpack.c.h.b16 %v5167
        %v5309 = vunpack.c.l.b16 %v5168
        %v5310 = vunpack.c.h.b16 %v5168
        %v5311 = vunpack.c.l.b16 %v5169
        %v5312 = vunpack.c.h.b16 %v5169
        %v5313 = vunpack.c.l.b16 %v5170
        %v5314 = vunpack.c.h.b16 %v5170
        %v5315 = vunpack.c.l.b16 %v5171
        %v5316 = vunpack.c.h.b16 %v5171
        %v5317 = vunpack.c.l.b16 %v5172
        %v5318 = vunpack.c.h.b16 %v5172
        %v5319 = vunpack.c.l.b16 %v5173
        %v5320 = vunpack.c.h.b16 %v5173
        %v5321 = vunpack.c.l.b16 %v5174
        %v5322 = vunpack.c.h.b16 %v5174
        %v5323 = vpack.c.b16 %v5261, %v5259
        %v5324 = vpack.c.b16 %v5262, %v5260
        %v5325 = vpack.c.b16 %v5265, %v5263
        %v5326 = vpack.c.b16 %v5266, %v5264
        %v5327 = vpack.c.b16 %v5269, %v5267
        %v5328 = vpack.c.b16 %v5270, %v5268
        %v5329 = vpack.c.b16 %v5273, %v5271
        %v5330 = vpack.c.b16 %v5274, %v5272
        %v5331 = vpack.c.b16 %v5277, %v5275
        %v5332 = vpack.c.b16 %v5278, %v5276
        %v5333 = vpack.c.b16 %v5281, %v5279
        %v5334 = vpack.c.b16 %v5282, %v5280
        %v5335 = vpack.c.b16 %v5285, %v5283
        %v5336 = vpack.c.b16 %v5286, %v5284
        %v5337 = vpack.c.b16 %v5289, %v5287
        %v5338 = vpack.c.b16 %v5290, %v5288
        %v5339 = vpack.c.b16 %v5293, %v5291
        %v5340 = vpack.c.b16 %v5294, %v5292
        %v5341 = vpack.c.b16 %v5297, %v5295
        %v5342 = vpack.c.b16 %v5298, %v5296
        %v5343 = vpack.c.b16 %v5301, %v5299
        %v5344 = vpack.c.b16 %v5302, %v5300
        %v5345 = vpack.c.b16 %v5305, %v5303
        %v5346 = vpack.c.b16 %v5306, %v5304
        %v5347 = vpack.c.b16 %v5309, %v5307
        %v5348 = vpack.c.b16 %v5310, %v5308
        %v5349 = vpack.c.b16 %v5313, %v5311
        %v5350 = vpack.c.b16 %v5314, %v5312
        %v5351 = vpack.c.b16 %v5317, %v5315
        %v5352 = vpack.c.b16 %v5318, %v5316
        %v5353 = vpack.c.b16 %v5321, %v5319
        %v5354 = vpack.c.b16 %v5322, %v5320
        %5387 = vmatprep.subr.bf16.mxu0 %v5338
        %5388 = vmatpush1.bf16.msra.mxu0 %v5337
        %5389 = vmatprep.subr.bf16.mxu0 %v5336
        %5390 = vmatpush1.bf16.msra.mxu0 %v5335
        %5391 = vmatprep.subr.bf16.mxu0 %v5334
        %5392 = vmatpush1.bf16.msra.mxu0 %v5333
        %5393 = vmatprep.subr.bf16.mxu0 %v5332
        %5394 = vmatpush1.bf16.msra.mxu0 %v5331
        %5395 = vmatprep.subr.bf16.mxu0 %v5330
        %5396 = vmatpush1.bf16.msra.mxu0 %v5329
        %5397 = vmatprep.subr.bf16.mxu0 %v5328
        %5398 = vmatpush1.bf16.msra.mxu0 %v5327
        %5399 = vmatprep.subr.bf16.mxu0 %v5326
        %5400 = vmatpush1.bf16.msra.mxu0 %v5325
        %5401 = vmatprep.subr.bf16.mxu0 %v5324
        %5402 = vmatpush1.bf16.msra.mxu0 %v5323
        %5403 = vmatprep.subr.bf16.mxu0 %v5354
        %5404 = vmatpush2.bf16.msra.mxu0 %v5353
        %5405 = vmatprep.subr.bf16.mxu0 %v5352
        %5406 = vmatpush2.bf16.msra.mxu0 %v5351
        %5407 = vmatprep.subr.bf16.mxu0 %v5350
        %5408 = vmatpush2.bf16.msra.mxu0 %v5349
        %5409 = vmatprep.subr.bf16.mxu0 %v5348
        %5410 = vmatpush2.bf16.msra.mxu0 %v5347
        %5411 = vmatprep.subr.bf16.mxu0 %v5346
        %5412 = vmatpush2.bf16.msra.mxu0 %v5345
        %5413 = vmatprep.subr.bf16.mxu0 %v5344
        %5414 = vmatpush2.bf16.msra.mxu0 %v5343
        %5415 = vmatprep.subr.bf16.mxu0 %v5342
        %5416 = vmatpush2.bf16.msra.mxu0 %v5341
        %5417 = vmatprep.subr.bf16.mxu0 %v5340
        %5418 = vmatpush2.bf16.msra.mxu0 %v5339
        %5419 = vmatprep.mubr.bf16.mxu0 %v5204
        %5420 = vmatmul.mubr.bf16.gmra.mxu0 %v5192
        %v5421 = vpop.f32.mrf.mxu0
        %v5422 = vadd.f32 0.0, %v5421
        %v5423 = vpop.f32.mrf.mxu0
        %v5424 = vadd.f32 0.0, %v5423
        %v5425 = vpop.f32.mrf.mxu0
        %v5426 = vadd.f32 0.0, %v5425
        %v5427 = vpop.f32.mrf.mxu0
        %v5428 = vadd.f32 0.0, %v5427
        %5429 = vmatprep.mubr.bf16.mxu0 %v5222
        %5430 = vmatmul.mubr.bf16.gmra.mxu0 %v5213
        %v5431 = vpop.f32.mrf.mxu0
        %v5432 = vadd.f32 0.0, %v5431
        %v5433 = vpop.f32.mrf.mxu0
        %v5434 = vadd.f32 0.0, %v5433
        %v5435 = vpop.f32.mrf.mxu0
        %v5436 = vadd.f32 0.0, %v5435
        %v5437 = vpop.f32.mrf.mxu0
        %v5438 = vadd.f32 0.0, %v5437
        %5439 = vdwg.mxu0
        %v5440 = vadd.f32 %v5133, %v5422
        %v5441 = vadd.f32 %v5134, %v5424
        %v5442 = vadd.f32 %v5135, %v5426
        %v5443 = vadd.f32 %v5136, %v5428
        %v5444 = vadd.f32 %v5137, %v5432
        %v5445 = vadd.f32 %v5138, %v5434
        %v5446 = vadd.f32 %v5139, %v5436
        %v5447 = vadd.f32 %v5140, %v5438
        %s5448 = scalar_lea.vmem [#allocation11], 2048
        %v5449 = vld [vmem:[%s5448] sm:$0xff]
        %v5450 = vld [vmem:[%s5448 + $0x8] sm:$0xff]
        %v5451 = vld [vmem:[%s5448 + $0x10] sm:$0xff]
        %v5452 = vld [vmem:[%s5448 + $0x18] sm:$0xff]
        %v5453 = vld [vmem:[%s5448 + $0x20] sm:$0xff]
        %v5454 = vld [vmem:[%s5448 + $0x28] sm:$0xff]
        %v5455 = vld [vmem:[%s5448 + $0x30] sm:$0xff]
        %v5456 = vld [vmem:[%s5448 + $0x38] sm:$0xff]
        %v5457 = vld [vmem:[%s5448 + $0x40] sm:$0xff]
        %v5458 = vld [vmem:[%s5448 + $0x48] sm:$0xff]
        %v5459 = vld [vmem:[%s5448 + $0x50] sm:$0xff]
        %v5460 = vld [vmem:[%s5448 + $0x58] sm:$0xff]
        %v5461 = vld [vmem:[%s5448 + $0x60] sm:$0xff]
        %v5462 = vld [vmem:[%s5448 + $0x68] sm:$0xff]
        %v5463 = vld [vmem:[%s5448 + $0x70] sm:$0xff]
        %v5464 = vld [vmem:[%s5448 + $0x78] sm:$0xff]
        %v5465 = vld [vmem:[%s5448 + $0x80] sm:$0xff]
        %v5466 = vld [vmem:[%s5448 + $0x88] sm:$0xff]
        %v5467 = vld [vmem:[%s5448 + $0x90] sm:$0xff]
        %v5468 = vld [vmem:[%s5448 + $0x98] sm:$0xff]
        %v5469 = vld [vmem:[%s5448 + $0xa0] sm:$0xff]
        %v5470 = vld [vmem:[%s5448 + $0xa8] sm:$0xff]
        %v5471 = vld [vmem:[%s5448 + $0xb0] sm:$0xff]
        %v5472 = vld [vmem:[%s5448 + $0xb8] sm:$0xff]
        %v5473 = vld [vmem:[%s5448 + $0xc0] sm:$0xff]
        %v5474 = vld [vmem:[%s5448 + $0xc8] sm:$0xff]
        %v5475 = vld [vmem:[%s5448 + $0xd0] sm:$0xff]
        %v5476 = vld [vmem:[%s5448 + $0xd8] sm:$0xff]
        %v5477 = vld [vmem:[%s5448 + $0xe0] sm:$0xff]
        %v5478 = vld [vmem:[%s5448 + $0xe8] sm:$0xff]
        %v5479 = vld [vmem:[%s5448 + $0xf0] sm:$0xff]
        %v5480 = vld [vmem:[%s5448 + $0xf8] sm:$0xff]
        %v5481 = vpack.c.b16 %v3203, %v3201
        %v5482 = vpack.c.b16 %v3204, %v3202
        %v5483 = vpack.c.b16 %v5176, %v3205
        %v5484 = vpack.c.b16 %v5177, %v3206
        %v5521 = vunpack.c.l.b16 %v5449
        %v5522 = vunpack.c.h.b16 %v5449
        %v5523 = vunpack.c.l.b16 %v5450
        %v5524 = vunpack.c.h.b16 %v5450
        %v5525 = vunpack.c.l.b16 %v5451
        %v5526 = vunpack.c.h.b16 %v5451
        %v5527 = vunpack.c.l.b16 %v5452
        %v5528 = vunpack.c.h.b16 %v5452
        %v5529 = vunpack.c.l.b16 %v5453
        %v5530 = vunpack.c.h.b16 %v5453
        %v5531 = vunpack.c.l.b16 %v5454
        %v5532 = vunpack.c.h.b16 %v5454
        %v5533 = vunpack.c.l.b16 %v5455
        %v5534 = vunpack.c.h.b16 %v5455
        %v5535 = vunpack.c.l.b16 %v5456
        %v5536 = vunpack.c.h.b16 %v5456
        %v5537 = vunpack.c.l.b16 %v5457
        %v5538 = vunpack.c.h.b16 %v5457
        %v5539 = vunpack.c.l.b16 %v5458
        %v5540 = vunpack.c.h.b16 %v5458
        %v5541 = vunpack.c.l.b16 %v5459
        %v5542 = vunpack.c.h.b16 %v5459
        %v5543 = vunpack.c.l.b16 %v5460
        %v5544 = vunpack.c.h.b16 %v5460
        %v5545 = vunpack.c.l.b16 %v5461
        %v5546 = vunpack.c.h.b16 %v5461
        %v5547 = vunpack.c.l.b16 %v5462
        %v5548 = vunpack.c.h.b16 %v5462
        %v5549 = vunpack.c.l.b16 %v5463
        %v5550 = vunpack.c.h.b16 %v5463
        %v5551 = vunpack.c.l.b16 %v5464
        %v5552 = vunpack.c.h.b16 %v5464
        %v5553 = vunpack.c.l.b16 %v5465
        %v5554 = vunpack.c.h.b16 %v5465
        %v5555 = vunpack.c.l.b16 %v5466
        %v5556 = vunpack.c.h.b16 %v5466
        %v5557 = vunpack.c.l.b16 %v5467
        %v5558 = vunpack.c.h.b16 %v5467
        %v5559 = vunpack.c.l.b16 %v5468
        %v5560 = vunpack.c.h.b16 %v5468
        %v5561 = vunpack.c.l.b16 %v5469
        %v5562 = vunpack.c.h.b16 %v5469
        %v5563 = vunpack.c.l.b16 %v5470
        %v5564 = vunpack.c.h.b16 %v5470
        %v5565 = vunpack.c.l.b16 %v5471
        %v5566 = vunpack.c.h.b16 %v5471
        %v5567 = vunpack.c.l.b16 %v5472
        %v5568 = vunpack.c.h.b16 %v5472
        %v5569 = vunpack.c.l.b16 %v5473
        %v5570 = vunpack.c.h.b16 %v5473
        %v5571 = vunpack.c.l.b16 %v5474
        %v5572 = vunpack.c.h.b16 %v5474
        %v5573 = vunpack.c.l.b16 %v5475
        %v5574 = vunpack.c.h.b16 %v5475
        %v5575 = vunpack.c.l.b16 %v5476
        %v5576 = vunpack.c.h.b16 %v5476
        %v5577 = vunpack.c.l.b16 %v5477
        %v5578 = vunpack.c.h.b16 %v5477
        %v5579 = vunpack.c.l.b16 %v5478
        %v5580 = vunpack.c.h.b16 %v5478
        %v5581 = vunpack.c.l.b16 %v5479
        %v5582 = vunpack.c.h.b16 %v5479
        %v5583 = vunpack.c.l.b16 %v5480
        %v5584 = vunpack.c.h.b16 %v5480
        %v5585 = vpack.c.b16 %v5523, %v5521
        %v5586 = vpack.c.b16 %v5524, %v5522
        %v5587 = vpack.c.b16 %v5527, %v5525
        %v5588 = vpack.c.b16 %v5528, %v5526
        %v5589 = vpack.c.b16 %v5531, %v5529
        %v5590 = vpack.c.b16 %v5532, %v5530
        %v5591 = vpack.c.b16 %v5535, %v5533
        %v5592 = vpack.c.b16 %v5536, %v5534
        %v5593 = vpack.c.b16 %v5539, %v5537
        %v5594 = vpack.c.b16 %v5540, %v5538
        %v5595 = vpack.c.b16 %v5543, %v5541
        %v5596 = vpack.c.b16 %v5544, %v5542
        %v5597 = vpack.c.b16 %v5547, %v5545
        %v5598 = vpack.c.b16 %v5548, %v5546
        %v5599 = vpack.c.b16 %v5551, %v5549
        %v5600 = vpack.c.b16 %v5552, %v5550
        %v5601 = vpack.c.b16 %v5555, %v5553
        %v5602 = vpack.c.b16 %v5556, %v5554
        %v5603 = vpack.c.b16 %v5559, %v5557
        %v5604 = vpack.c.b16 %v5560, %v5558
        %v5605 = vpack.c.b16 %v5563, %v5561
        %v5606 = vpack.c.b16 %v5564, %v5562
        %v5607 = vpack.c.b16 %v5567, %v5565
        %v5608 = vpack.c.b16 %v5568, %v5566
        %v5609 = vpack.c.b16 %v5571, %v5569
        %v5610 = vpack.c.b16 %v5572, %v5570
        %v5611 = vpack.c.b16 %v5575, %v5573
        %v5612 = vpack.c.b16 %v5576, %v5574
        %v5613 = vpack.c.b16 %v5579, %v5577
        %v5614 = vpack.c.b16 %v5580, %v5578
        %v5615 = vpack.c.b16 %v5583, %v5581
        %v5616 = vpack.c.b16 %v5584, %v5582
        %5649 = vmatprep.subr.bf16.mxu0 %v5600
        %5650 = vmatpush1.bf16.msra.mxu0 %v5599
        %5651 = vmatprep.subr.bf16.mxu0 %v5598
        %5652 = vmatpush1.bf16.msra.mxu0 %v5597
        %5653 = vmatprep.subr.bf16.mxu0 %v5596
        %5654 = vmatpush1.bf16.msra.mxu0 %v5595
        %5655 = vmatprep.subr.bf16.mxu0 %v5594
        %5656 = vmatpush1.bf16.msra.mxu0 %v5593
        %5657 = vmatprep.subr.bf16.mxu0 %v5592
        %5658 = vmatpush1.bf16.msra.mxu0 %v5591
        %5659 = vmatprep.subr.bf16.mxu0 %v5590
        %5660 = vmatpush1.bf16.msra.mxu0 %v5589
        %5661 = vmatprep.subr.bf16.mxu0 %v5588
        %5662 = vmatpush1.bf16.msra.mxu0 %v5587
        %5663 = vmatprep.subr.bf16.mxu0 %v5586
        %5664 = vmatpush1.bf16.msra.mxu0 %v5585
        %5665 = vmatprep.subr.bf16.mxu0 %v5616
        %5666 = vmatpush2.bf16.msra.mxu0 %v5615
        %5667 = vmatprep.subr.bf16.mxu0 %v5614
        %5668 = vmatpush2.bf16.msra.mxu0 %v5613
        %5669 = vmatprep.subr.bf16.mxu0 %v5612
        %5670 = vmatpush2.bf16.msra.mxu0 %v5611
        %5671 = vmatprep.subr.bf16.mxu0 %v5610
        %5672 = vmatpush2.bf16.msra.mxu0 %v5609
        %5673 = vmatprep.subr.bf16.mxu0 %v5608
        %5674 = vmatpush2.bf16.msra.mxu0 %v5607
        %5675 = vmatprep.subr.bf16.mxu0 %v5606
        %5676 = vmatpush2.bf16.msra.mxu0 %v5605
        %5677 = vmatprep.subr.bf16.mxu0 %v5604
        %5678 = vmatpush2.bf16.msra.mxu0 %v5603
        %5679 = vmatprep.subr.bf16.mxu0 %v5602
        %5680 = vmatpush2.bf16.msra.mxu0 %v5601
        %5681 = vmatprep.mubr.bf16.mxu0 %v5482
        %5682 = vmatmul.mubr.bf16.gmra.mxu0 %v5481
        %v5683 = vpop.f32.mrf.mxu0
        %v5684 = vadd.f32 0.0, %v5683
        %v5685 = vpop.f32.mrf.mxu0
        %v5686 = vadd.f32 0.0, %v5685
        %v5687 = vpop.f32.mrf.mxu0
        %v5688 = vadd.f32 0.0, %v5687
        %v5689 = vpop.f32.mrf.mxu0
        %v5690 = vadd.f32 0.0, %v5689
        %5691 = vmatprep.mubr.bf16.mxu0 %v5484
        %5692 = vmatmul.mubr.bf16.gmra.mxu0 %v5483
        %v5693 = vpop.f32.mrf.mxu0
        %v5694 = vadd.f32 0.0, %v5693
        %v5695 = vpop.f32.mrf.mxu0
        %v5696 = vadd.f32 0.0, %v5695
        %v5697 = vpop.f32.mrf.mxu0
        %v5698 = vadd.f32 0.0, %v5697
        %v5699 = vpop.f32.mrf.mxu0
        %v5700 = vadd.f32 0.0, %v5699
        %5701 = vdwg.mxu0
        %v5702 = vadd.f32 %v5440, %v5684
        %v5703 = vadd.f32 %v5441, %v5686
        %v5704 = vadd.f32 %v5442, %v5688
        %v5705 = vadd.f32 %v5443, %v5690
        %v5706 = vadd.f32 %v5444, %v5694
        %v5707 = vadd.f32 %v5445, %v5696
        %v5708 = vadd.f32 %v5446, %v5698
        %v5709 = vadd.f32 %v5447, %v5700
        %v5710 = vld [vmem:[#allocation13] sm:$0x3]
        %v5712 = vlaneseq
        %v5713 = vshrl.u32 %v5712, 7
        %v5714 = vsub.s32 0, %v5713
        %v5715 = vrot.slane %v5710, %v5714
        %v5716 = vlaneseq
        %v5717 = vshrl.u32 %v5716, 7
        %v5718 = vsub.s32 1, %v5717
        %v5719 = vrot.slane %v5710, %v5718
        %v5722 = vadd.f32 %v5702, %v5715
        %v5723 = vadd.f32 %v5703, %v5719
        %v5724 = vadd.f32 %v5704, %v5715
        %v5725 = vadd.f32 %v5705, %v5719
        %v5726 = vadd.f32 %v5706, %v5715
        %v5727 = vadd.f32 %v5707, %v5719
        %v5728 = vadd.f32 %v5708, %v5715
        %v5729 = vadd.f32 %v5709, %v5719
        %vm5730 = vcmp.ge.f32.partialorder %v5722, 0.0
        %vm5731 = vcmp.ge.f32.partialorder %v5723, 0.0
        %vm5732 = vcmp.ge.f32.partialorder %v5724, 0.0
        %vm5733 = vcmp.ge.f32.partialorder %v5725, 0.0
        %vm5734 = vcmp.ge.f32.partialorder %v5726, 0.0
        %vm5735 = vcmp.ge.f32.partialorder %v5727, 0.0
        %vm5736 = vcmp.ge.f32.partialorder %v5728, 0.0
        %vm5737 = vcmp.ge.f32.partialorder %v5729, 0.0
        %v5738 = vmul.f32 %v5722, 0.01
        %v5739 = vmul.f32 %v5723, 0.01
        %v5740 = vmul.f32 %v5724, 0.01
        %v5741 = vmul.f32 %v5725, 0.01
        %v5742 = vmul.f32 %v5726, 0.01
        %v5743 = vmul.f32 %v5727, 0.01
        %v5744 = vmul.f32 %v5728, 0.01
        %v5745 = vmul.f32 %v5729, 0.01
        %v5746 = vsel %vm5730, %v5722, %v5738
        %v5747 = vsel %vm5731, %v5723, %v5739
        %v5748 = vsel %vm5732, %v5724, %v5740
        %v5749 = vsel %vm5733, %v5725, %v5741
        %v5750 = vsel %vm5734, %v5726, %v5742
        %v5751 = vsel %vm5735, %v5727, %v5743
        %v5752 = vsel %vm5736, %v5728, %v5744
        %v5753 = vsel %vm5737, %v5729, %v5745
        %v5754 = vunpack.c.l.bf16 %v346
        %v5755 = vunpack.c.h.bf16 %v346
        %v5756 = vunpack.c.l.bf16 %v348
        %v5757 = vunpack.c.h.bf16 %v348
        %v5758 = vunpack.c.l.bf16 %v350
        %v5759 = vunpack.c.h.bf16 %v350
        %v5760 = vunpack.c.l.bf16 %v352
        %v5761 = vunpack.c.h.bf16 %v352
        %v5762 = vunpack.c.l.bf16 %v347
        %v5763 = vunpack.c.h.bf16 %v347
        %v5764 = vunpack.c.l.bf16 %v349
        %v5765 = vunpack.c.h.bf16 %v349
        %v5766 = vunpack.c.l.bf16 %v351
        %v5767 = vunpack.c.h.bf16 %v351
        %v5768 = vunpack.c.l.bf16 %v353
        %v5769 = vunpack.c.h.bf16 %v353
        %v5770 = vadd.f32 %v5754, %v5762
        %v5771 = vadd.f32 %v5755, %v5763
        %v5772 = vadd.f32 %v5756, %v5764
        %v5773 = vadd.f32 %v5757, %v5765
        %v5774 = vadd.f32 %v5758, %v5766
        %v5775 = vadd.f32 %v5759, %v5767
        %v5776 = vadd.f32 %v5760, %v5768
        %v5777 = vadd.f32 %v5761, %v5769
        %v5778 = vmul.f32 %v5770, 0.5
        %v5779 = vmul.f32 %v5771, 0.5
        %v5780 = vmul.f32 %v5772, 0.5
        %v5781 = vmul.f32 %v5773, 0.5
        %v5782 = vmul.f32 %v5774, 0.5
        %v5783 = vmul.f32 %v5775, 0.5
        %v5784 = vmul.f32 %v5776, 0.5
        %v5785 = vmul.f32 %v5777, 0.5
        %v5786 = vpack.c.bf16 %v5780, %v5778
        %v5787 = vpack.c.bf16 %v5781, %v5779
        %v5788 = vpack.c.bf16 %v5784, %v5782
        %v5789 = vpack.c.bf16 %v5785, %v5783
        %v5790 = vld [vmem:[#allocation14] sm:$0xff]
        %v5791 = vld [vmem:[#allocation14 + $0x8] sm:$0xff]
        %v5792 = vld [vmem:[#allocation14 + $0x10] sm:$0xff]
        %v5793 = vld [vmem:[#allocation14 + $0x18] sm:$0xff]
        %v5794 = vld [vmem:[#allocation14 + $0x20] sm:$0xff]
        %v5795 = vld [vmem:[#allocation14 + $0x28] sm:$0xff]
        %v5796 = vld [vmem:[#allocation14 + $0x30] sm:$0xff]
        %v5797 = vld [vmem:[#allocation14 + $0x38] sm:$0xff]
        %v5798 = vld [vmem:[#allocation14 + $0x40] sm:$0xff]
        %v5799 = vld [vmem:[#allocation14 + $0x48] sm:$0xff]
        %v5800 = vld [vmem:[#allocation14 + $0x50] sm:$0xff]
        %v5801 = vld [vmem:[#allocation14 + $0x58] sm:$0xff]
        %v5802 = vld [vmem:[#allocation14 + $0x60] sm:$0xff]
        %v5803 = vld [vmem:[#allocation14 + $0x68] sm:$0xff]
        %v5804 = vld [vmem:[#allocation14 + $0x70] sm:$0xff]
        %v5805 = vld [vmem:[#allocation14 + $0x78] sm:$0xff]
        %v5806 = vld [vmem:[#allocation14 + $0x80] sm:$0xff]
        %v5807 = vld [vmem:[#allocation14 + $0x88] sm:$0xff]
        %v5808 = vld [vmem:[#allocation14 + $0x90] sm:$0xff]
        %v5809 = vld [vmem:[#allocation14 + $0x98] sm:$0xff]
        %v5810 = vld [vmem:[#allocation14 + $0xa0] sm:$0xff]
        %v5811 = vld [vmem:[#allocation14 + $0xa8] sm:$0xff]
        %v5812 = vld [vmem:[#allocation14 + $0xb0] sm:$0xff]
        %v5813 = vld [vmem:[#allocation14 + $0xb8] sm:$0xff]
        %v5814 = vld [vmem:[#allocation14 + $0xc0] sm:$0xff]
        %v5815 = vld [vmem:[#allocation14 + $0xc8] sm:$0xff]
        %v5816 = vld [vmem:[#allocation14 + $0xd0] sm:$0xff]
        %v5817 = vld [vmem:[#allocation14 + $0xd8] sm:$0xff]
        %v5818 = vld [vmem:[#allocation14 + $0xe0] sm:$0xff]
        %v5819 = vld [vmem:[#allocation14 + $0xe8] sm:$0xff]
        %v5820 = vld [vmem:[#allocation14 + $0xf0] sm:$0xff]
        %v5821 = vld [vmem:[#allocation14 + $0xf8] sm:$0xff]
        %v5854 = vunpack.c.l.b16 %v5790
        %v5855 = vunpack.c.h.b16 %v5790
        %v5856 = vunpack.c.l.b16 %v5791
        %v5857 = vunpack.c.h.b16 %v5791
        %v5858 = vunpack.c.l.b16 %v5792
        %v5859 = vunpack.c.h.b16 %v5792
        %v5860 = vunpack.c.l.b16 %v5793
        %v5861 = vunpack.c.h.b16 %v5793
        %v5862 = vunpack.c.l.b16 %v5794
        %v5863 = vunpack.c.h.b16 %v5794
        %v5864 = vunpack.c.l.b16 %v5795
        %v5865 = vunpack.c.h.b16 %v5795
        %v5866 = vunpack.c.l.b16 %v5796
        %v5867 = vunpack.c.h.b16 %v5796
        %v5868 = vunpack.c.l.b16 %v5797
        %v5869 = vunpack.c.h.b16 %v5797
        %v5870 = vunpack.c.l.b16 %v5798
        %v5871 = vunpack.c.h.b16 %v5798
        %v5872 = vunpack.c.l.b16 %v5799
        %v5873 = vunpack.c.h.b16 %v5799
        %v5874 = vunpack.c.l.b16 %v5800
        %v5875 = vunpack.c.h.b16 %v5800
        %v5876 = vunpack.c.l.b16 %v5801
        %v5877 = vunpack.c.h.b16 %v5801
        %v5878 = vunpack.c.l.b16 %v5802
        %v5879 = vunpack.c.h.b16 %v5802
        %v5880 = vunpack.c.l.b16 %v5803
        %v5881 = vunpack.c.h.b16 %v5803
        %v5882 = vunpack.c.l.b16 %v5804
        %v5883 = vunpack.c.h.b16 %v5804
        %v5884 = vunpack.c.l.b16 %v5805
        %v5885 = vunpack.c.h.b16 %v5805
        %v5886 = vunpack.c.l.b16 %v5806
        %v5887 = vunpack.c.h.b16 %v5806
        %v5888 = vunpack.c.l.b16 %v5807
        %v5889 = vunpack.c.h.b16 %v5807
        %v5890 = vunpack.c.l.b16 %v5808
        %v5891 = vunpack.c.h.b16 %v5808
        %v5892 = vunpack.c.l.b16 %v5809
        %v5893 = vunpack.c.h.b16 %v5809
        %v5894 = vunpack.c.l.b16 %v5810
        %v5895 = vunpack.c.h.b16 %v5810
        %v5896 = vunpack.c.l.b16 %v5811
        %v5897 = vunpack.c.h.b16 %v5811
        %v5898 = vunpack.c.l.b16 %v5812
        %v5899 = vunpack.c.h.b16 %v5812
        %v5900 = vunpack.c.l.b16 %v5813
        %v5901 = vunpack.c.h.b16 %v5813
        %v5902 = vunpack.c.l.b16 %v5814
        %v5903 = vunpack.c.h.b16 %v5814
        %v5904 = vunpack.c.l.b16 %v5815
        %v5905 = vunpack.c.h.b16 %v5815
        %v5906 = vunpack.c.l.b16 %v5816
        %v5907 = vunpack.c.h.b16 %v5816
        %v5908 = vunpack.c.l.b16 %v5817
        %v5909 = vunpack.c.h.b16 %v5817
        %v5910 = vunpack.c.l.b16 %v5818
        %v5911 = vunpack.c.h.b16 %v5818
        %v5912 = vunpack.c.l.b16 %v5819
        %v5913 = vunpack.c.h.b16 %v5819
        %v5914 = vunpack.c.l.b16 %v5820
        %v5915 = vunpack.c.h.b16 %v5820
        %v5916 = vunpack.c.l.b16 %v5821
        %v5917 = vunpack.c.h.b16 %v5821
        %v5918 = vpack.c.b16 %v5856, %v5854
        %v5919 = vpack.c.b16 %v5857, %v5855
        %v5920 = vpack.c.b16 %v5860, %v5858
        %v5921 = vpack.c.b16 %v5861, %v5859
        %v5922 = vpack.c.b16 %v5864, %v5862
        %v5923 = vpack.c.b16 %v5865, %v5863
        %v5924 = vpack.c.b16 %v5868, %v5866
        %v5925 = vpack.c.b16 %v5869, %v5867
        %v5926 = vpack.c.b16 %v5872, %v5870
        %v5927 = vpack.c.b16 %v5873, %v5871
        %v5928 = vpack.c.b16 %v5876, %v5874
        %v5929 = vpack.c.b16 %v5877, %v5875
        %v5930 = vpack.c.b16 %v5880, %v5878
        %v5931 = vpack.c.b16 %v5881, %v5879
        %v5932 = vpack.c.b16 %v5884, %v5882
        %v5933 = vpack.c.b16 %v5885, %v5883
        %v5934 = vpack.c.b16 %v5888, %v5886
        %v5935 = vpack.c.b16 %v5889, %v5887
        %v5936 = vpack.c.b16 %v5892, %v5890
        %v5937 = vpack.c.b16 %v5893, %v5891
        %v5938 = vpack.c.b16 %v5896, %v5894
        %v5939 = vpack.c.b16 %v5897, %v5895
        %v5940 = vpack.c.b16 %v5900, %v5898
        %v5941 = vpack.c.b16 %v5901, %v5899
        %v5942 = vpack.c.b16 %v5904, %v5902
        %v5943 = vpack.c.b16 %v5905, %v5903
        %v5944 = vpack.c.b16 %v5908, %v5906
        %v5945 = vpack.c.b16 %v5909, %v5907
        %v5946 = vpack.c.b16 %v5912, %v5910
        %v5947 = vpack.c.b16 %v5913, %v5911
        %v5948 = vpack.c.b16 %v5916, %v5914
        %v5949 = vpack.c.b16 %v5917, %v5915
        %5982 = vmatprep.subr.bf16.mxu0 %v5933
        %5983 = vmatpush1.bf16.msra.mxu0 %v5932
        %5984 = vmatprep.subr.bf16.mxu0 %v5931
        %5985 = vmatpush1.bf16.msra.mxu0 %v5930
        %5986 = vmatprep.subr.bf16.mxu0 %v5929
        %5987 = vmatpush1.bf16.msra.mxu0 %v5928
        %5988 = vmatprep.subr.bf16.mxu0 %v5927
        %5989 = vmatpush1.bf16.msra.mxu0 %v5926
        %5990 = vmatprep.subr.bf16.mxu0 %v5925
        %5991 = vmatpush1.bf16.msra.mxu0 %v5924
        %5992 = vmatprep.subr.bf16.mxu0 %v5923
        %5993 = vmatpush1.bf16.msra.mxu0 %v5922
        %5994 = vmatprep.subr.bf16.mxu0 %v5921
        %5995 = vmatpush1.bf16.msra.mxu0 %v5920
        %5996 = vmatprep.subr.bf16.mxu0 %v5919
        %5997 = vmatpush1.bf16.msra.mxu0 %v5918
        %5998 = vmatprep.subr.bf16.mxu0 %v5949
        %5999 = vmatpush2.bf16.msra.mxu0 %v5948
        %6000 = vmatprep.subr.bf16.mxu0 %v5947
        %6001 = vmatpush2.bf16.msra.mxu0 %v5946
        %6002 = vmatprep.subr.bf16.mxu0 %v5945
        %6003 = vmatpush2.bf16.msra.mxu0 %v5944
        %6004 = vmatprep.subr.bf16.mxu0 %v5943
        %6005 = vmatpush2.bf16.msra.mxu0 %v5942
        %6006 = vmatprep.subr.bf16.mxu0 %v5941
        %6007 = vmatpush2.bf16.msra.mxu0 %v5940
        %6008 = vmatprep.subr.bf16.mxu0 %v5939
        %6009 = vmatpush2.bf16.msra.mxu0 %v5938
        %6010 = vmatprep.subr.bf16.mxu0 %v5937
        %6011 = vmatpush2.bf16.msra.mxu0 %v5936
        %6012 = vmatprep.subr.bf16.mxu0 %v5935
        %6013 = vmatpush2.bf16.msra.mxu0 %v5934
        %6014 = vmatprep.mubr.bf16.mxu0 %v5787
        %6015 = vmatmul.mubr.bf16.gmra.mxu0 %v5786
        %v6016 = vpop.f32.mrf.mxu0
        %v6017 = vadd.f32 0.0, %v6016
        %v6018 = vpop.f32.mrf.mxu0
        %v6019 = vadd.f32 0.0, %v6018
        %v6020 = vpop.f32.mrf.mxu0
        %v6021 = vadd.f32 0.0, %v6020
        %v6022 = vpop.f32.mrf.mxu0
        %v6023 = vadd.f32 0.0, %v6022
        %6024 = vmatprep.mubr.bf16.mxu0 %v5789
        %6025 = vmatmul.mubr.bf16.gmra.mxu0 %v5788
        %v6026 = vpop.f32.mrf.mxu0
        %v6027 = vadd.f32 0.0, %v6026
        %v6028 = vpop.f32.mrf.mxu0
        %v6029 = vadd.f32 0.0, %v6028
        %v6030 = vpop.f32.mrf.mxu0
        %v6031 = vadd.f32 0.0, %v6030
        %v6032 = vpop.f32.mrf.mxu0
        %v6033 = vadd.f32 0.0, %v6032
        %6034 = vdwg.mxu0
        %v6035 = vadd.f32 %v5746, %v6017
        %v6036 = vadd.f32 %v5747, %v6019
        %v6037 = vadd.f32 %v5748, %v6021
        %v6038 = vadd.f32 %v5749, %v6023
        %v6039 = vadd.f32 %v5750, %v6027
        %v6040 = vadd.f32 %v5751, %v6029
        %v6041 = vadd.f32 %v5752, %v6031
        %v6042 = vadd.f32 %v5753, %v6033
        %6043 = vst [vmem:[%s338] sm:$0xff] %v6035
        %6044 = vst [vmem:[%s338 + $0x8] sm:$0xff] %v6036
        %6045 = vst [vmem:[%s338 + $0x10] sm:$0xff] %v6037
        %6046 = vst [vmem:[%s338 + $0x18] sm:$0xff] %v6038
        %6047 = vst [vmem:[%s338 + $0x20] sm:$0xff] %v6039
        %6048 = vst [vmem:[%s338 + $0x28] sm:$0xff] %v6040
        %6049 = vst [vmem:[%s338 + $0x30] sm:$0xff] %v6041
        %6050 = vst [vmem:[%s338 + $0x38] sm:$0xff] %v6042
        %s6051 = sand.u32 %s165, 1
        %s6052 = scalar_lea.sflag [#allocation7], %s6051
        %s6053 = sand.u32 %s165, 1
        %s6054 = smul.addr %s6053, 64
        %s6055 = scalar_lea.vmem [#allocation16], %s6054
        // Predicated region
        $region69: #{tpu_custom_call.1} parent=43 // pred_check
          %p6056 = pneg %p175
        $region70: #{tpu_custom_call.1} parent=43 // pred_check_branch
          %6058 = sbr.rel (%p6056) target = $region72
        $region71: #{tpu_custom_call.1} parent=43 // pred_region
          %s6060 = ssub.s32 1024, 1024
          %6061 = vsyncadd %s6052, %s6060
          %s6062 = smul.addr %s26, 8
          %s6063 = smul.addr %s6062, 128
          %s6064 = scalar_lea.hbm %s6, %s6063
          %s6065 = sshll.u32 %s6055, 4
          %s6066 = int_to_ptr.vmem [resolvable:$true] %s6065
          %6071 = dma.vmem_to_hbm [thread:$0]  %s6066, 1024, %s6064, %s6052, 256, 256, 16
        $region72: #{tpu_custom_call.1} parent=43 // pred_fallthru
          _
      $region44: #{tpu_custom_call.1} parent=5 // pred_fallthru
        _
      %p6072 = scmp.le.s32.totalorder 2, %s21
      // Predicated region
      $region73: #{tpu_custom_call.1} parent=5 // pred_check
        %p6073 = pneg %p6072
      $region74: #{tpu_custom_call.1} parent=5 // pred_check_branch
        %6075 = sbr.rel (%p6073) target = $region76
      $region75: #{tpu_custom_call.1} parent=5 // pred_region
        %s6076 = ssub.s32 %s21, 2
        // Predicated region
        $region77: #{tpu_custom_call.1} parent=75 // pred_check
          %p6077 = pneg %p181
        $region78: #{tpu_custom_call.1} parent=75 // pred_check_branch
          %6079 = sbr.rel (%p6077) target = $region80
        $region79: #{tpu_custom_call.1} parent=75 // pred_region
          %s6080 = sand.u32 %s166, 1
          %s6081 = scalar_lea.sflag [#allocation7], %s6080
          %s6082 = sand.u32 %s166, 1
          %s6083 = smul.addr %s6082, 64
          %s6084 = scalar_lea.vmem [#allocation16], %s6083
          %6085 = dma.done %s6081, 1024
        $region80: #{tpu_custom_call.1} parent=75 // pred_fallthru
          _
      $region76: #{tpu_custom_call.1} parent=5 // pred_fallthru
        _
    $region6: #{tpu_custom_call.1} parent=1 // loop_footer
      %s25 = sadd.s32 1, %s21
    $region7: #{tpu_custom_call.1} parent=1 // loop_footer_branch
      %20 = sbr.rel target = $region3
    $region8: #{tpu_custom_call.1} parent=1 // loop_exit
      _
    %6086 = vsyncpa [#allocation6], 1
    %s6087 = scalar_lea.sflag [#allocation6], 1
    %6088 = vsyncpa %s6087, 1
    %6089 = vsyncpa [#allocation9], 1
    %6090 = vsyncpa [#allocation12], 1
    %6091 = vsyncpa [#allocation15], 1
    %6092 = vsyncpa [#allocation7], 1
    %s6093 = scalar_lea.sflag [#allocation7], 1
    %6094 = vsyncpa %s6093, 1

</llo_original>
